<compile_context>
chip_gen: v6e
topology: v6e:2x2x1
jax: 0.10.0
libtpu: 0.0.40
codegen_flags: <defaults>
</compile_context>

<pallas_src>
import math
import functools

import jax
import jax.numpy as jnp
from jax import lax
from jax.experimental import pallas as pl
from jax.experimental.pallas import tpu as pltpu

_VMEM_LIMIT = 32 * 1024 * 1024
_NEG_BIG = -1e30
USE_CORE_PARALLEL = False   # set True on v7x to split the batch grid across its 2 TensorCores


def _full_spec(a):
    nd = a.ndim
    return pl.BlockSpec(a.shape, lambda *_, _nd=nd: (0,) * _nd)


def _ln_rows(x, g, b, eps):
    mu = jnp.mean(x, axis=-1, keepdims=True)
    xc = x - mu
    var = jnp.mean(xc * xc, axis=-1, keepdims=True)
    return xc * lax.rsqrt(var + eps) * g + b


def _gelu_exact(x):
    # PyTorch nn.GELU default: 0.5*x*(1+erf(x/sqrt(2)))
    return 0.5 * x * (1.0 + lax.erf(x * (1.0 / math.sqrt(2.0))))


# ---------------------------------------------------------------------------------------------
# One-time host-side folding of weights + constant selector/placement matrices (review: hoist
# all constants out of the kernels; cast weights to bf16 on the host; build kron/selectors once).
# ---------------------------------------------------------------------------------------------
def prepare_params(p, *, B, H, W, nq=1):
    f32, bf16 = jnp.float32, jnp.bfloat16
    D = int(p["in_dim"]); hidden = int(p["hidden_dim"])
    heads = int(p["heads"]); n_trans = int(p["n_trans"])
    depth = len(p["layers"])
    H2, W2 = H // 2, W // 2
    HW, nc = H * W, H2 * W2
    nk = nq + nc
    inner = p["layers"][0]["wq"].shape[1]
    dh = inner // heads
    mlp = p["layers"][0]["w1"].shape[1]
    n_out = 6 * n_trans
    NG = n_trans * HW
    Cg = hidden // n_trans
    assert H % 2 == 0 and W % 2 == 0 and inner % heads == 0 and hidden % n_trans == 0

    eyeB = jnp.eye(B, dtype=f32)
    eye_nq = jnp.eye(nq, dtype=f32)

    # depthwise 2x2/s2 conv folded into a dense (2*W*D, W2*D) matmul on the free row-pair reshape
    rin = 2 * W * D
    r = jnp.arange(rin)
    pp, w_in, c_in = r // (W * D), (r % (W * D)) // D, r % D
    dcol = jnp.arange(W2 * D)
    w2c, c2c = dcol // D, dcol % D
    qoff = w_in[:, None] - 2 * w2c[None, :]
    valid = (c_in[:, None] == c2c[None, :]) & (qoff >= 0) & (qoff <= 1)
    dw_mat = jnp.where(valid, p["dw_w"][c_in[:, None], pp[:, None], jnp.clip(qoff, 0, 1)],
                       0.0).astype(f32)
    dw_bias = jnp.tile(p["dw_b"], (W2,)).reshape(1, W2 * D).astype(f32)

    # placement of the conv output (B*H2, W2*D) into the stacked (B*nk, D) query+context layout:
    # ctx_placed = ((L_ctx @ conv) * colpick) @ sum_c     (query rows stay zero, filled per layer)
    Lp = jnp.zeros((nk, H2), f32).at[nq + jnp.arange(nc), jnp.arange(nc) // W2].set(1.0)
    L_ctx = jnp.kron(eyeB, Lp)
    tok = jnp.arange(nk)
    col = jnp.arange(W2 * D)
    Cp = ((tok[:, None] >= nq) & ((col[None, :] // D) == ((tok[:, None] - nq) % W2))).astype(f32)
    colpick = jnp.kron(jnp.ones((B, 1), f32), Cp)
    sum_c = jnp.tile(jnp.eye(D, dtype=f32), (W2, 1))

    # attention: whole batch in one block; heads stacked block-diagonally (single MXU matmuls)
    Ptop = jnp.zeros((nk, nq), f32).at[jnp.arange(nq), jnp.arange(nq)].set(1.0)
    E_top = jnp.kron(eyeB, Ptop)                                             # (B*nk, B*nq)
    Rep = jnp.kron(eyeB, jnp.kron(jnp.ones((heads, 1), f32), eye_nq))        # (B*h*nq, B*nq)
    headmask = (jnp.arange(inner)[None, :] // dh == jnp.arange(heads)[:, None]).astype(f32)
    HeadMaskR = jnp.kron(jnp.ones((B, 1), f32), jnp.kron(headmask, jnp.ones((nq, 1), f32)))
    Collapse = jnp.kron(eyeB, jnp.kron(jnp.ones((1, heads), f32), eye_nq))   # (B*nq, B*h*nq)
    rowb = jnp.arange(B * heads * nq) // (heads * nq)
    colb = jnp.arange(B * nk) // nk
    negmask = jnp.where(rowb[:, None] == colb[None, :], 0.0, _NEG_BIG).astype(f32)
    ClsSel = jnp.zeros((B, B * nq), f32).at[jnp.arange(B), jnp.arange(B) * nq].set(1.0)

    layers = []
    for lyr in p["layers"]:
        wk_, wv_ = lyr["wkv"][:, :inner], lyr["wkv"][:, inner:]
        layers.append([
            lyr["ln1_g"].reshape(1, D).astype(f32), lyr["ln1_b"].reshape(1, D).astype(f32),
            lyr["wq"].astype(bf16), wk_.astype(bf16), wv_.astype(bf16),
            jnp.kron(eyeB, jnp.kron(lyr["mix_pre"].T.astype(f32), eye_nq)),   # talking-heads pre
            jnp.kron(eyeB, jnp.kron(lyr["mix_post"].T.astype(f32), eye_nq)),  # talking-heads post
            lyr["wo"].astype(bf16), lyr["bo"].reshape(1, D).astype(f32),
            lyr["ln2_g"].reshape(1, D).astype(f32), lyr["ln2_b"].reshape(1, D).astype(f32),
            lyr["w1"].astype(bf16), lyr["b1"].reshape(1, mlp).astype(f32),
            lyr["w2"].astype(bf16), lyr["b2"].reshape(1, D).astype(f32),
        ])
    head = [p["head_ln_g"].reshape(1, D).astype(f32), p["head_ln_b"].reshape(1, D).astype(f32),
            p["head_w"].astype(f32), p["head_b"].reshape(1, n_out).astype(f32)]

    # affine_grid / grid_sample constants (everything theta-independent hoisted out of the kernel)
    pidx = jnp.arange(HW)
    xnorm = (2.0 * (pidx % W).astype(f32) + 1.0) / W - 1.0      # align_corners=False base grid
    ynorm = (2.0 * (pidx // W).astype(f32) + 1.0) / H - 1.0
    coefs = jnp.stack([xnorm, ynorm, jnp.ones((HW,), f32)], axis=-1)          # (HW, 3)
    rowg = jnp.arange(NG) // HW
    rowp = jnp.arange(NG) % HW
    kk = jnp.arange(n_out)[None, :]
    krx = kk - 6 * rowg[:, None]
    Ax = jnp.where((krx >= 0) & (krx < 3), coefs[rowp[:, None], jnp.clip(krx, 0, 2)], 0.0).astype(f32)
    kry = kk - 6 * rowg[:, None] - 3
    Ay = jnp.where((kry >= 0) & (kry < 3), coefs[rowp[:, None], jnp.clip(kry, 0, 2)], 0.0).astype(f32)
    riota = jnp.broadcast_to(jnp.arange(H, dtype=f32)[None, :], (NG, H)).astype(f32)
    lane = jnp.arange(W * hidden)
    # source-column index per lane, with non-own-group channels set to -1e6 so they never match
    # (folds the per-group channel selector into the bilinear column weights for free).
    wiota_m = jnp.where((lane[None, :] % hidden) // Cg == rowg[:, None],
                        (lane[None, :] // hidden).astype(f32), -1e6).astype(f32)
    pre_kron = jnp.kron(jnp.eye(W, dtype=f32), p["pre_w"].astype(f32)).astype(bf16)   # (W*D, W*hid)
    preb_row = jnp.tile(p["pre_b"], (W,)).reshape(1, W * hidden).astype(f32)
    selpost = jnp.tile(p["post_w"].astype(f32), (W, 1)).astype(bf16)         # post_w pre-folded
    postb_row = p["post_b"].reshape(1, D).astype(f32)
    Rsum = (rowp[None, :] == jnp.arange(HW)[:, None]).astype(f32)            # (HW, NG) group reduce

    dims = dict(B=B, H=H, W=W, D=D, hidden=hidden, heads=heads, dh=dh, inner=inner, nq=nq,
                nc=nc, nk=nk, depth=depth, mlp=mlp, n_trans=n_trans, n_out=n_out, HW=HW, NG=NG)
    return dict(dims=dims, dw_mat=dw_mat, dw_bias=dw_bias, L_ctx=L_ctx, colpick=colpick,
                sum_c=sum_c, E_top=E_top, Rep=Rep, HeadMaskR=HeadMaskR, Collapse=Collapse,
                negmask=negmask, ClsSel=ClsSel, layers=layers, head=head,
                Ax=Ax, Ay=Ay, riota=riota, wiota_m=wiota_m, pre_kron=pre_kron,
                preb_row=preb_row, selpost=selpost, postb_row=postb_row, Rsum=Rsum)


# ---------------------------------------------------------------------------------------------
# Kernel 1: depthwise context + param transformer + mlp_head + theta post-processing
# ---------------------------------------------------------------------------------------------
def _param_theta_kernel(xtok_ref, xpairs_ref, dwm_ref, dwb_ref, lctx_ref, cpick_ref, sumc_ref,
                        etop_ref, rep_ref, hmask_ref, collapse_ref, negm_ref, clssel_ref,
                        *rest, depth, attn_scale, eps):
    o_ref = rest[-1]
    layer_refs = rest[:15 * depth]
    hlng_ref, hlnb_ref, hw_ref, hb_ref, sc_ref, ini_ref = rest[15 * depth:15 * depth + 6]

    x = xtok_ref[...]                               # (B*nq, D)
    e_top = etop_ref[...]
    rep = rep_ref[...]
    hmask = hmask_ref[...]
    collapse = collapse_ref[...]
    negm = negm_ref[...]

    # depthwise 2x2/s2 conv -> context tokens, already placed in the stacked (B*nk, D) layout
    conv = jnp.dot(xpairs_ref[...], dwm_ref[...], preferred_element_type=jnp.float32) + dwb_ref[...]
    ctx_placed = jnp.dot(
        jnp.dot(lctx_ref[...], conv, preferred_element_type=jnp.float32) * cpick_ref[...],
        sumc_ref[...], preferred_element_type=jnp.float32)                       # (B*nk, D)

    for l in range(depth):
        (ln1g, ln1b, wq, wk, wv, mixpre, mixpost, wo, bo,
         ln2g, ln2b, w1, b1, w2, b2) = layer_refs[15 * l:15 * (l + 1)]

        # ---- PreNorm(Attention): context = cat([norm(x), conv_context]) ----
        xn = _ln_rows(x, ln1g[...], ln1b[...], eps)
        ctx_full = jnp.dot(e_top, xn, preferred_element_type=jnp.float32) + ctx_placed
        ctx_b = ctx_full.astype(jnp.bfloat16)
        q = jnp.dot(xn.astype(jnp.bfloat16), wq[...], preferred_element_type=jnp.float32)
        k = jnp.dot(ctx_b, wk[...], preferred_element_type=jnp.float32)
        v = jnp.dot(ctx_b, wv[...], preferred_element_type=jnp.float32)

        # block-diagonal (batch x head) stacking: one matmul for all heads / batch elements
        qbd = jnp.dot(rep, q, preferred_element_type=jnp.float32) * hmask          # (BHQ, inner)
        dots = lax.dot_general(qbd, k, (((1,), (1,)), ((), ())),
                               preferred_element_type=jnp.float32) * attn_scale    # (BHQ, B*nk)
        mixed = jnp.dot(mixpre[...], dots, preferred_element_type=jnp.float32) + negm
        m = jnp.max(mixed, axis=-1, keepdims=True)
        e = jnp.exp(mixed - m)
        attn = e * pl.reciprocal(jnp.sum(e, axis=-1, keepdims=True), approx=True)
        attn = jnp.dot(mixpost[...], attn, preferred_element_type=jnp.float32)
        outh = jnp.dot(attn, v, preferred_element_type=jnp.float32)                # (BHQ, inner)
        out = jnp.dot(collapse, outh * hmask, preferred_element_type=jnp.float32)  # (B*nq, inner)
        x = x + jnp.dot(out.astype(jnp.bfloat16), wo[...],
                        preferred_element_type=jnp.float32) + bo[...]

        # ---- PreNorm(FeedForward) ----
        xn2 = _ln_rows(x, ln2g[...], ln2b[...], eps)
        h1 = _gelu_exact(jnp.dot(xn2.astype(jnp.bfloat16), w1[...],
                                 preferred_element_type=jnp.float32) + b1[...])
        x = x + jnp.dot(h1.astype(jnp.bfloat16), w2[...],
                        preferred_element_type=jnp.float32) + b2[...]

    # ---- mlp_head + sigmoid/scale/init theta post-processing ----
    cls = jnp.dot(clssel_ref[...], x, preferred_element_type=jnp.float32)           # token 0
    hn = _ln_rows(cls, hlng_ref[...], hlnb_ref[...], eps)
    param = jnp.dot(hn, hw_ref[...], preferred_element_type=jnp.float32) + hb_ref[...]
    theta = 1.0 / (1.0 + jnp.exp(-param)) - 0.5
    o_ref[...] = theta * sc_ref[...] + ini_ref[...]


def _param_theta_call(prep, x_tok, x_pairs, scale_exp, init_exp):
    d = prep["dims"]
    inputs = [x_tok, x_pairs, prep["dw_mat"], prep["dw_bias"], prep["L_ctx"], prep["colpick"],
              prep["sum_c"], prep["E_top"], prep["Rep"], prep["HeadMaskR"], prep["Collapse"],
              prep["negmask"], prep["ClsSel"]]
    for lyr in prep["layers"]:
        inputs.extend(lyr)
    inputs.extend(prep["head"])
    inputs.extend([scale_exp, init_exp])
    kernel = functools.partial(_param_theta_kernel, depth=d["depth"],
                               attn_scale=d["dh"] ** -0.5, eps=1e-5)
    return pl.pallas_call(
        kernel,
        out_shape=jax.ShapeDtypeStruct((d["B"], d["n_out"]), jnp.float32),
        grid=(1,),
        in_specs=[_full_spec(a) for a in inputs],
        out_specs=pl.BlockSpec((d["B"], d["n_out"]), lambda i: (0, 0)),
        compiler_params=pltpu.CompilerParams(
            dimension_semantics=("arbitrary",), vmem_limit_bytes=_VMEM_LIMIT),
    )(*inputs)


# ---------------------------------------------------------------------------------------------
# Kernel 2: pre_linear + per-group affine_grid/grid_sample (bilinear, zeros pad) + post_linear
# ---------------------------------------------------------------------------------------------
def _affine_sample_kernel(theta_ref, xrows_ref, ax_ref, ay_ref, riota_ref, wiota_ref,
                          prek_ref, preb_ref, selpost_ref, postb_ref, rsum_ref, o_ref, *, H, W):
    th = theta_ref[0]                                                        # (1, 6*n_trans)
    # pre_linear (1x1 conv) in the lane-dense row view: (H, W*Cin) @ kron(I_W, pre_w)
    xp = jnp.dot(xrows_ref[0].astype(jnp.bfloat16), prek_ref[...],
                 preferred_element_type=jnp.float32) + preb_ref[...]         # (H, W*hidden)

    # per-(group, pixel) sampling coordinates from theta via hoisted constant coefficients
    gx = jnp.sum(ax_ref[...] * th, axis=-1, keepdims=True)                   # (NG, 1)
    gy = jnp.sum(ay_ref[...] * th, axis=-1, keepdims=True)
    ix = ((gx + 1.0) * W - 1.0) * 0.5                                        # align_corners=False
    iy = ((gy + 1.0) * H - 1.0) * 0.5
    ix0 = jnp.floor(ix)
    iy0 = jnp.floor(iy)
    fx = ix - ix0
    fy = iy - iy0
    # factored bilinear gather (OOB taps never match an iota -> padding_mode='zeros' for free);
    # group-channel selection is pre-folded into wiota (non-group lanes never match).
    w_row = (jnp.where(riota_ref[...] == iy0, 1.0 - fy, 0.0)
             + jnp.where(riota_ref[...] == iy0 + 1.0, fy, 0.0))              # (NG, H)
    w_col = (jnp.where(wiota_ref[...] == ix0, 1.0 - fx, 0.0)
             + jnp.where(wiota_ref[...] == ix0 + 1.0, fx, 0.0))              # (NG, W*hidden)

    rows_all = jnp.dot(w_row, xp, preferred_element_type=jnp.float32)        # (NG, W*hidden)
    weighted = (rows_all * w_col).astype(jnp.bfloat16)
    contrib = jnp.dot(weighted, selpost_ref[...],
                      preferred_element_type=jnp.float32)                    # (NG, Cin), post_w folded
    out = jnp.dot(rsum_ref[...], contrib,
                  preferred_element_type=jnp.float32) + postb_ref[...]       # (HW, Cin)
    o_ref[0] = out.astype(o_ref.dtype)


def _affine_sample_call(prep, theta3, x_rows):
    d = prep["dims"]
    B, H, W, D, hidden = d["B"], d["H"], d["W"], d["D"], d["hidden"]
    HW, NG, n_out = d["HW"], d["NG"], d["n_out"]
    kernel = functools.partial(_affine_sample_kernel, H=H, W=W)
    sem = pltpu.CORE_PARALLEL if USE_CORE_PARALLEL else "parallel"
    c = lambda shape: pl.BlockSpec(shape, lambda b: (0, 0))
    # TODO(synk): if H/W/hidden ever scale up, add an output-pixel tile axis to this grid
    # (blocks of >=256 pixels) before the per-block working set approaches v7x's 64 MiB VMEM.
    return pl.pallas_call(
        kernel,
        out_shape=jax.ShapeDtypeStruct((B, HW, D), jnp.float32),
        grid=(B,),
        in_specs=[pl.BlockSpec((1, 1, n_out), lambda b: (b, 0, 0)),
                  pl.BlockSpec((1, H, W * D), lambda b: (b, 0, 0)),
                  c((NG, n_out)), c((NG, n_out)), c((NG, H)), c((NG, W * hidden)),
                  c((W * D, W * hidden)), c((1, W * hidden)),
                  c((W * hidden, D)), c((1, D)), c((HW, NG))],
        out_specs=pl.BlockSpec((1, HW, D), lambda b: (b, 0, 0)),
        compiler_params=pltpu.CompilerParams(
            dimension_semantics=(sem,), vmem_limit_bytes=_VMEM_LIMIT),
    )(theta3, x_rows, prep["Ax"], prep["Ay"], prep["riota"], prep["wiota_m"],
      prep["pre_kron"], prep["preb_row"], prep["selpost"], prep["postb_row"], prep["Rsum"])


# ---------------------------------------------------------------------------------------------
# AffineNet forward
# ---------------------------------------------------------------------------------------------
def affine_net_forward(prep, param_token, x, init, scale=None):
    d = prep["dims"]
    B, H, W, D, nq = d["B"], d["H"], d["W"], d["D"], d["nq"]
    n_trans, n_out, HW = d["n_trans"], d["n_out"], d["HW"]
    assert x.shape == (B, HW, D)
    x = x.astype(jnp.float32)

    x_pairs = x.reshape(B * (H // 2), 2 * W * D)            # free row-pair reshape for the conv
    x_tok = jnp.broadcast_to(param_token.astype(jnp.float32), (B, nq, D)).reshape(B * nq, D)
    scale_vec = jnp.ones((n_trans,), jnp.float32) if scale is None else scale.astype(jnp.float32)
    scale_exp = jnp.repeat(scale_vec, 6).reshape(1, n_out)
    init_exp = jnp.tile(init.astype(jnp.float32), (n_trans,)).reshape(1, n_out)

    theta = _param_theta_call(prep, x_tok, x_pairs, scale_exp, init_exp)     # (B, 6*n_trans)

    x_rows = x.reshape(B, H, W * D)                          # free, lane-dense row view
    return _affine_sample_call(prep, theta.reshape(B, 1, n_out), x_rows)     # (B, HW, D)


# ---------------------------------------------------------------------------------------------
# deterministic parameter init (PyTorch-layout equivalents)
# ---------------------------------------------------------------------------------------------
def init_params(key, *, in_dim, hidden_dim, heads, depth, n_trans):
    inner = (in_dim // heads) * heads
    mlp_dim = in_dim * 2
    n_output = 6 * n_trans
    keys = iter(jax.random.split(key, 8 * depth + 16))

    def nrm(shape, s=0.05):
        return jax.random.normal(next(keys), shape, jnp.float32) * s

    layers = []
    for _ in range(depth):
        layers.append(dict(
            ln1_g=jnp.ones((in_dim,), jnp.float32), ln1_b=jnp.zeros((in_dim,), jnp.float32),
            wq=nrm((in_dim, inner)), wkv=nrm((in_dim, 2 * inner)),
            # NOTE: the module inits mix_heads_* to zeros; small random values exercise the path.
            mix_pre=nrm((heads, heads), 0.2), mix_post=nrm((heads, heads), 0.2),
            wo=nrm((inner, in_dim)), bo=nrm((in_dim,)),
            ln2_g=jnp.ones((in_dim,), jnp.float32), ln2_b=jnp.zeros((in_dim,), jnp.float32),
            w1=nrm((in_dim, mlp_dim)), b1=nrm((mlp_dim,)),
            w2=nrm((mlp_dim, in_dim)), b2=nrm((in_dim,)),
        ))
    return dict(
        in_dim=in_dim, hidden_dim=hidden_dim, heads=heads, n_trans=n_trans,
        layers=layers,
        dw_w=nrm((in_dim, 2, 2), 0.25), dw_b=nrm((in_dim,), 0.05),
        head_ln_g=jnp.ones((in_dim,), jnp.float32), head_ln_b=jnp.zeros((in_dim,), jnp.float32),
        head_w=nrm((in_dim, n_output)), head_b=nrm((n_output,), 0.05),
        pre_w=nrm((in_dim, hidden_dim)), pre_b=nrm((hidden_dim,), 0.05),
        post_w=nrm((hidden_dim, in_dim)), post_b=nrm((in_dim,), 0.05),
    )


# ---------------------------------------------------------------------------------------------
if __name__ == "__main__":
    key = jax.random.PRNGKey(0)
    k_p, k_x, k_t = jax.random.split(key, 3)

    B, H, W = 2, 8, 8
    in_dim, hidden_dim, heads, depth, n_trans = 16, 16, 4, 1, 4
    num_patches = H * W

    params = init_params(k_p, in_dim=in_dim, hidden_dim=hidden_dim, heads=heads,
                         depth=depth, n_trans=n_trans)
    prep = prepare_params(params, B=B, H=H, W=W, nq=1)      # one-time host folding of constants

    x = jax.random.normal(k_x, (B, num_patches, in_dim), jnp.float32)
    param_token = jax.random.normal(k_t, (1, 1, in_dim), jnp.float32) * 0.02
    init_theta = jnp.array([1.0, 0.0, 0.0, 0.0, 1.0, 0.0], jnp.float32)   # identity affine init
    scale = jnp.full((n_trans,), 4.0, jnp.float32)

    fwd = jax.jit(functools.partial(affine_net_forward, prep))
    out = fwd(param_token, x, init_theta, scale)
    out = jax.block_until_ready(out)
    assert out.shape == (B, num_patches, in_dim) and out.dtype == jnp.float32
    assert bool(jnp.all(jnp.isfinite(out)))
    print("KERNEL_OK")
</pallas_src>

<mosaic_0001>
module attributes {stable_mosaic.version = 11 : i64} {
  func.func @_affine_sample_kernel(%arg0: i32, %arg1: memref<1x1x24xf32, #tpu.memory_space<vmem>>, %arg2: memref<1x8x128xf32, #tpu.memory_space<vmem>>, %arg3: memref<256x24xf32, #tpu.memory_space<vmem>>, %arg4: memref<256x24xf32, #tpu.memory_space<vmem>>, %arg5: memref<256x8xf32, #tpu.memory_space<vmem>>, %arg6: memref<256x128xf32, #tpu.memory_space<vmem>>, %arg7: memref<128x128xbf16, #tpu.memory_space<vmem>>, %arg8: memref<1x128xf32, #tpu.memory_space<vmem>>, %arg9: memref<128x16xbf16, #tpu.memory_space<vmem>>, %arg10: memref<1x16xf32, #tpu.memory_space<vmem>>, %arg11: memref<64x256xf32, #tpu.memory_space<vmem>>, %arg12: memref<1x64x16xf32, #tpu.memory_space<vmem>>) attributes {dimension_semantics = [#tpu.dimension_semantics<parallel>], iteration_bounds = array<i64: 2>, scalar_prefetch = 0 : i64, scratch_operands = 0 : i64, tpu.core_type = #tpu.core_type<tc>, window_params = [{transform_indices = @transform_0, window_bounds = array<i64: 1, 1, 24>}, {transform_indices = @transform_1, window_bounds = array<i64: 1, 8, 128>}, {pipeline_mode = #tpu.pipeline_mode<synchronous>, transform_indices = @transform_2, window_bounds = array<i64: 256, 24>}, {pipeline_mode = #tpu.pipeline_mode<synchronous>, transform_indices = @transform_3, window_bounds = array<i64: 256, 24>}, {pipeline_mode = #tpu.pipeline_mode<synchronous>, transform_indices = @transform_4, window_bounds = array<i64: 256, 8>}, {pipeline_mode = #tpu.pipeline_mode<synchronous>, transform_indices = @transform_5, window_bounds = array<i64: 256, 128>}, {pipeline_mode = #tpu.pipeline_mode<synchronous>, transform_indices = @transform_6, window_bounds = array<i64: 128, 128>}, {pipeline_mode = #tpu.pipeline_mode<synchronous>, transform_indices = @transform_7, window_bounds = array<i64: 1, 128>}, {pipeline_mode = #tpu.pipeline_mode<synchronous>, transform_indices = @transform_8, window_bounds = array<i64: 128, 16>}, {pipeline_mode = #tpu.pipeline_mode<synchronous>, transform_indices = @transform_9, window_bounds = array<i64: 1, 16>}, {pipeline_mode = #tpu.pipeline_mode<synchronous>, transform_indices = @transform_10, window_bounds = array<i64: 64, 256>}, {transform_indices = @transform_11, window_bounds = array<i64: 1, 64, 16>}]} {
    %c0 = arith.constant 0 : index
    %c0_0 = arith.constant 0 : index
    %c0_1 = arith.constant 0 : index
    %0 = vector.load %arg1[%c0, %c0_0, %c0_1] : memref<1x1x24xf32, #tpu.memory_space<vmem>>, vector<1x1x24xf32>
    %1 = vector.shape_cast %0 : vector<1x1x24xf32> to vector<1x24xf32>
    %c0_2 = arith.constant 0 : index
    %c0_3 = arith.constant 0 : index
    %c0_4 = arith.constant 0 : index
    %2 = vector.load %arg2[%c0_2, %c0_3, %c0_4] : memref<1x8x128xf32, #tpu.memory_space<vmem>>, vector<1x8x128xf32>
    %3 = vector.shape_cast %2 : vector<1x8x128xf32> to vector<8x128xf32>
    %4 = arith.truncf %3 : vector<8x128xf32> to vector<8x128xbf16>
    %c0_5 = arith.constant 0 : index
    %c0_6 = arith.constant 0 : index
    %5 = vector.load %arg7[%c0_5, %c0_6] : memref<128x128xbf16, #tpu.memory_space<vmem>>, vector<128x128xbf16>
    %cst = arith.constant dense<0.000000e+00> : vector<8x128xf32>
    %6 = tpu.matmul %4, %5, %cst {dimension_numbers = #tpu.dot_dimension_numbers<[1], [0], [0], [1], [0, 0, 1, 1], [], []>} : vector<8x128xbf16>, vector<128x128xbf16>, vector<8x128xf32> -> vector<8x128xf32>
    %c0_7 = arith.constant 0 : index
    %c0_8 = arith.constant 0 : index
    %7 = vector.load %arg8[%c0_7, %c0_8] : memref<1x128xf32, #tpu.memory_space<vmem>>, vector<1x128xf32>
    %8 = vector.broadcast %7 : vector<1x128xf32> to vector<8x128xf32>
    %9 = arith.addf %6, %8 : vector<8x128xf32>
    %c0_9 = arith.constant 0 : index
    %c0_10 = arith.constant 0 : index
    %10 = vector.load %arg3[%c0_9, %c0_10] : memref<256x24xf32, #tpu.memory_space<vmem>>, vector<256x24xf32>
    %11 = vector.broadcast %1 : vector<1x24xf32> to vector<256x24xf32>
    %12 = arith.mulf %10, %11 : vector<256x24xf32>
    %cst_11 = arith.constant dense<0.000000e+00> : vector<256xf32>
    %13 = vector.multi_reduction <add>, %12, %cst_11 [1] : vector<256x24xf32> to vector<256xf32>
    %14 = vector.shape_cast %13 : vector<256xf32> to vector<256x1xf32>
    %c0_12 = arith.constant 0 : index
    %c0_13 = arith.constant 0 : index
    %15 = vector.load %arg4[%c0_12, %c0_13] : memref<256x24xf32, #tpu.memory_space<vmem>>, vector<256x24xf32>
    %16 = vector.broadcast %1 : vector<1x24xf32> to vector<256x24xf32>
    %17 = arith.mulf %15, %16 : vector<256x24xf32>
    %cst_14 = arith.constant dense<0.000000e+00> : vector<256xf32>
    %18 = vector.multi_reduction <add>, %17, %cst_14 [1] : vector<256x24xf32> to vector<256xf32>
    %19 = vector.shape_cast %18 : vector<256xf32> to vector<256x1xf32>
    %cst_15 = arith.constant 1.000000e+00 : f32
    %20 = vector.broadcast %cst_15 : f32 to vector<256x1xf32>
    %21 = arith.addf %14, %20 : vector<256x1xf32>
    %cst_16 = arith.constant 8.000000e+00 : f32
    %22 = vector.broadcast %cst_16 : f32 to vector<256x1xf32>
    %23 = arith.mulf %21, %22 : vector<256x1xf32>
    %cst_17 = arith.constant 1.000000e+00 : f32
    %24 = vector.broadcast %cst_17 : f32 to vector<256x1xf32>
    %25 = arith.subf %23, %24 : vector<256x1xf32>
    %cst_18 = arith.constant 5.000000e-01 : f32
    %26 = vector.broadcast %cst_18 : f32 to vector<256x1xf32>
    %27 = arith.mulf %25, %26 : vector<256x1xf32>
    %cst_19 = arith.constant 1.000000e+00 : f32
    %28 = vector.broadcast %cst_19 : f32 to vector<256x1xf32>
    %29 = arith.addf %19, %28 : vector<256x1xf32>
    %cst_20 = arith.constant 8.000000e+00 : f32
    %30 = vector.broadcast %cst_20 : f32 to vector<256x1xf32>
    %31 = arith.mulf %29, %30 : vector<256x1xf32>
    %cst_21 = arith.constant 1.000000e+00 : f32
    %32 = vector.broadcast %cst_21 : f32 to vector<256x1xf32>
    %33 = arith.subf %31, %32 : vector<256x1xf32>
    %cst_22 = arith.constant 5.000000e-01 : f32
    %34 = vector.broadcast %cst_22 : f32 to vector<256x1xf32>
    %35 = arith.mulf %33, %34 : vector<256x1xf32>
    %36 = math.floor %27 : vector<256x1xf32>
    %37 = math.floor %35 : vector<256x1xf32>
    %38 = arith.subf %27, %36 : vector<256x1xf32>
    %39 = arith.subf %35, %37 : vector<256x1xf32>
    %c0_23 = arith.constant 0 : index
    %c0_24 = arith.constant 0 : index
    %40 = vector.load %arg5[%c0_23, %c0_24] : memref<256x8xf32, #tpu.memory_space<vmem>>, vector<256x8xf32>
    %41 = vector.broadcast %37 : vector<256x1xf32> to vector<256x8xf32>
    %42 = arith.cmpf oeq, %40, %41 : vector<256x8xf32>
    %cst_25 = arith.constant 1.000000e+00 : f32
    %43 = vector.broadcast %cst_25 : f32 to vector<256x1xf32>
    %44 = arith.subf %43, %39 : vector<256x1xf32>
    %cst_26 = arith.constant 0.000000e+00 : f32
    %45 = vector.shape_cast %44 : vector<256x1xf32> to vector<256x1xf32>
    %46 = vector.broadcast %45 : vector<256x1xf32> to vector<256x8xf32>
    %47 = vector.broadcast %cst_26 : f32 to vector<256x8xf32>
    %48 = arith.select %42, %46, %47 : vector<256x8xi1>, vector<256x8xf32>
    %c0_27 = arith.constant 0 : index
    %c0_28 = arith.constant 0 : index
    %49 = vector.load %arg5[%c0_27, %c0_28] : memref<256x8xf32, #tpu.memory_space<vmem>>, vector<256x8xf32>
    %cst_29 = arith.constant 1.000000e+00 : f32
    %50 = vector.broadcast %cst_29 : f32 to vector<256x1xf32>
    %51 = arith.addf %37, %50 : vector<256x1xf32>
    %52 = vector.broadcast %51 : vector<256x1xf32> to vector<256x8xf32>
    %53 = arith.cmpf oeq, %49, %52 : vector<256x8xf32>
    %cst_30 = arith.constant 0.000000e+00 : f32
    %54 = vector.shape_cast %39 : vector<256x1xf32> to vector<256x1xf32>
    %55 = vector.broadcast %54 : vector<256x1xf32> to vector<256x8xf32>
    %56 = vector.broadcast %cst_30 : f32 to vector<256x8xf32>
    %57 = arith.select %53, %55, %56 : vector<256x8xi1>, vector<256x8xf32>
    %58 = arith.addf %48, %57 : vector<256x8xf32>
    %c0_31 = arith.constant 0 : index
    %c0_32 = arith.constant 0 : index
    %59 = vector.load %arg6[%c0_31, %c0_32] : memref<256x128xf32, #tpu.memory_space<vmem>>, vector<256x128xf32>
    %60 = vector.broadcast %36 : vector<256x1xf32> to vector<256x128xf32>
    %61 = arith.cmpf oeq, %59, %60 : vector<256x128xf32>
    %cst_33 = arith.constant 1.000000e+00 : f32
    %62 = vector.broadcast %cst_33 : f32 to vector<256x1xf32>
    %63 = arith.subf %62, %38 : vector<256x1xf32>
    %cst_34 = arith.constant 0.000000e+00 : f32
    %64 = vector.shape_cast %63 : vector<256x1xf32> to vector<256x1xf32>
    %65 = vector.broadcast %64 : vector<256x1xf32> to vector<256x128xf32>
    %66 = vector.broadcast %cst_34 : f32 to vector<256x128xf32>
    %67 = arith.select %61, %65, %66 : vector<256x128xi1>, vector<256x128xf32>
    %c0_35 = arith.constant 0 : index
    %c0_36 = arith.constant 0 : index
    %68 = vector.load %arg6[%c0_35, %c0_36] : memref<256x128xf32, #tpu.memory_space<vmem>>, vector<256x128xf32>
    %cst_37 = arith.constant 1.000000e+00 : f32
    %69 = vector.broadcast %cst_37 : f32 to vector<256x1xf32>
    %70 = arith.addf %36, %69 : vector<256x1xf32>
    %71 = vector.broadcast %70 : vector<256x1xf32> to vector<256x128xf32>
    %72 = arith.cmpf oeq, %68, %71 : vector<256x128xf32>
    %cst_38 = arith.constant 0.000000e+00 : f32
    %73 = vector.shape_cast %38 : vector<256x1xf32> to vector<256x1xf32>
    %74 = vector.broadcast %73 : vector<256x1xf32> to vector<256x128xf32>
    %75 = vector.broadcast %cst_38 : f32 to vector<256x128xf32>
    %76 = arith.select %72, %74, %75 : vector<256x128xi1>, vector<256x128xf32>
    %77 = arith.addf %67, %76 : vector<256x128xf32>
    %cst_39 = arith.constant dense<0.000000e+00> : vector<256x128xf32>
    %78 = tpu.matmul %58, %9, %cst_39 {dimension_numbers = #tpu.dot_dimension_numbers<[1], [0], [0], [1], [0, 0, 1, 1], [], []>} : vector<256x8xf32>, vector<8x128xf32>, vector<256x128xf32> -> vector<256x128xf32>
    %79 = arith.mulf %78, %77 : vector<256x128xf32>
    %80 = arith.truncf %79 : vector<256x128xf32> to vector<256x128xbf16>
    %c0_40 = arith.constant 0 : index
    %c0_41 = arith.constant 0 : index
    %81 = vector.load %arg9[%c0_40, %c0_41] : memref<128x16xbf16, #tpu.memory_space<vmem>>, vector<128x16xbf16>
    %cst_42 = arith.constant dense<0.000000e+00> : vector<256x16xf32>
    %82 = tpu.matmul %80, %81, %cst_42 {dimension_numbers = #tpu.dot_dimension_numbers<[1], [0], [0], [1], [0, 0, 1, 1], [], []>} : vector<256x128xbf16>, vector<128x16xbf16>, vector<256x16xf32> -> vector<256x16xf32>
    %c0_43 = arith.constant 0 : index
    %c0_44 = arith.constant 0 : index
    %83 = vector.load %arg11[%c0_43, %c0_44] : memref<64x256xf32, #tpu.memory_space<vmem>>, vector<64x256xf32>
    %cst_45 = arith.constant dense<0.000000e+00> : vector<64x16xf32>
    %84 = tpu.matmul %83, %82, %cst_45 {dimension_numbers = #tpu.dot_dimension_numbers<[1], [0], [0], [1], [0, 0, 1, 1], [], []>} : vector<64x256xf32>, vector<256x16xf32>, vector<64x16xf32> -> vector<64x16xf32>
    %c0_46 = arith.constant 0 : index
    %c0_47 = arith.constant 0 : index
    %85 = vector.load %arg10[%c0_46, %c0_47] : memref<1x16xf32, #tpu.memory_space<vmem>>, vector<1x16xf32>
    %86 = vector.broadcast %85 : vector<1x16xf32> to vector<64x16xf32>
    %87 = arith.addf %84, %86 : vector<64x16xf32>
    %c0_48 = arith.constant 0 : index
    %c0_49 = arith.constant 0 : index
    %c0_50 = arith.constant 0 : index
    %88 = vector.load %arg12[%c0_48, %c0_49, %c0_50] : memref<1x64x16xf32, #tpu.memory_space<vmem>>, vector<1x64x16xf32>
    %89 = vector.shape_cast %88 : vector<1x64x16xf32> to vector<64x16xf32>
    %90 = vector.shape_cast %87 : vector<64x16xf32> to vector<1x64x16xf32>
    tpu.vector_store %arg12[%c0_48, %c0_49, %c0_50], %90 {strides = array<i32>} : memref<1x64x16xf32, #tpu.memory_space<vmem>>, vector<1x64x16xf32>,
    return
  }
  func.func @transform_0(%arg0: i32) -> (i32, i32, i32) {
    %c0_i32 = arith.constant 0 : i32
    %c0_i32_0 = arith.constant 0 : i32
    %c0_i32_1 = arith.constant 0 : i32
    return %arg0, %c0_i32, %c0_i32_0 : i32, i32, i32
  }
  func.func @transform_1(%arg0: i32) -> (i32, i32, i32) {
    %c0_i32 = arith.constant 0 : i32
    %c0_i32_0 = arith.constant 0 : i32
    %c0_i32_1 = arith.constant 0 : i32
    return %arg0, %c0_i32, %c0_i32_0 : i32, i32, i32
  }
  func.func @transform_2(%arg0: i32) -> (i32, i32) {
    %c0_i32 = arith.constant 0 : i32
    %c0_i32_0 = arith.constant 0 : i32
    %c0_i32_1 = arith.constant 0 : i32
    return %c0_i32, %c0_i32_0 : i32, i32
  }
  func.func @transform_3(%arg0: i32) -> (i32, i32) {
    %c0_i32 = arith.constant 0 : i32
    %c0_i32_0 = arith.constant 0 : i32
    %c0_i32_1 = arith.constant 0 : i32
    return %c0_i32, %c0_i32_0 : i32, i32
  }
  func.func @transform_4(%arg0: i32) -> (i32, i32) {
    %c0_i32 = arith.constant 0 : i32
    %c0_i32_0 = arith.constant 0 : i32
    %c0_i32_1 = arith.constant 0 : i32
    return %c0_i32, %c0_i32_0 : i32, i32
  }
  func.func @transform_5(%arg0: i32) -> (i32, i32) {
    %c0_i32 = arith.constant 0 : i32
    %c0_i32_0 = arith.constant 0 : i32
    %c0_i32_1 = arith.constant 0 : i32
    return %c0_i32, %c0_i32_0 : i32, i32
  }
  func.func @transform_6(%arg0: i32) -> (i32, i32) {
    %c0_i32 = arith.constant 0 : i32
    %c0_i32_0 = arith.constant 0 : i32
    %c0_i32_1 = arith.constant 0 : i32
    return %c0_i32, %c0_i32_0 : i32, i32
  }
  func.func @transform_7(%arg0: i32) -> (i32, i32) {
    %c0_i32 = arith.constant 0 : i32
    %c0_i32_0 = arith.constant 0 : i32
    %c0_i32_1 = arith.constant 0 : i32
    return %c0_i32, %c0_i32_0 : i32, i32
  }
  func.func @transform_8(%arg0: i32) -> (i32, i32) {
    %c0_i32 = arith.constant 0 : i32
    %c0_i32_0 = arith.constant 0 : i32
    %c0_i32_1 = arith.constant 0 : i32
    return %c0_i32, %c0_i32_0 : i32, i32
  }
  func.func @transform_9(%arg0: i32) -> (i32, i32) {
    %c0_i32 = arith.constant 0 : i32
    %c0_i32_0 = arith.constant 0 : i32
    %c0_i32_1 = arith.constant 0 : i32
    return %c0_i32, %c0_i32_0 : i32, i32
  }
  func.func @transform_10(%arg0: i32) -> (i32, i32) {
    %c0_i32 = arith.constant 0 : i32
    %c0_i32_0 = arith.constant 0 : i32
    %c0_i32_1 = arith.constant 0 : i32
    return %c0_i32, %c0_i32_0 : i32, i32
  }
  func.func @transform_11(%arg0: i32) -> (i32, i32, i32) {
    %c0_i32 = arith.constant 0 : i32
    %c0_i32_0 = arith.constant 0 : i32
    %c0_i32_1 = arith.constant 0 : i32
    return %arg0, %c0_i32, %c0_i32_0 : i32, i32, i32
  }
}

module attributes {stable_mosaic.version = 11 : i64} {
  func.func @_param_theta_kernel(%arg0: i32, %arg1: memref<2x16xf32, #tpu.memory_space<vmem>>, %arg2: memref<8x256xf32, #tpu.memory_space<vmem>>, %arg3: memref<256x64xf32, #tpu.memory_space<vmem>>, %arg4: memref<1x64xf32, #tpu.memory_space<vmem>>, %arg5: memref<34x8xf32, #tpu.memory_space<vmem>>, %arg6: memref<34x64xf32, #tpu.memory_space<vmem>>, %arg7: memref<64x16xf32, #tpu.memory_space<vmem>>, %arg8: memref<34x2xf32, #tpu.memory_space<vmem>>, %arg9: memref<8x2xf32, #tpu.memory_space<vmem>>, %arg10: memref<8x16xf32, #tpu.memory_space<vmem>>, %arg11: memref<2x8xf32, #tpu.memory_space<vmem>>, %arg12: memref<8x34xf32, #tpu.memory_space<vmem>>, %arg13: memref<2x2xf32, #tpu.memory_space<vmem>>, %arg14: memref<1x16xf32, #tpu.memory_space<vmem>>, %arg15: memref<1x16xf32, #tpu.memory_space<vmem>>, %arg16: memref<16x16xbf16, #tpu.memory_space<vmem>>, %arg17: memref<16x16xbf16, #tpu.memory_space<vmem>>, %arg18: memref<16x16xbf16, #tpu.memory_space<vmem>>, %arg19: memref<8x8xf32, #tpu.memory_space<vmem>>, %arg20: memref<8x8xf32, #tpu.memory_space<vmem>>, %arg21: memref<16x16xbf16, #tpu.memory_space<vmem>>, %arg22: memref<1x16xf32, #tpu.memory_space<vmem>>, %arg23: memref<1x16xf32, #tpu.memory_space<vmem>>, %arg24: memref<1x16xf32, #tpu.memory_space<vmem>>, %arg25: memref<16x32xbf16, #tpu.memory_space<vmem>>, %arg26: memref<1x32xf32, #tpu.memory_space<vmem>>, %arg27: memref<32x16xbf16, #tpu.memory_space<vmem>>, %arg28: memref<1x16xf32, #tpu.memory_space<vmem>>, %arg29: memref<1x16xf32, #tpu.memory_space<vmem>>, %arg30: memref<1x16xf32, #tpu.memory_space<vmem>>, %arg31: memref<16x24xf32, #tpu.memory_space<vmem>>, %arg32: memref<1x24xf32, #tpu.memory_space<vmem>>, %arg33: memref<1x24xf32, #tpu.memory_space<vmem>>, %arg34: memref<1x24xf32, #tpu.memory_space<vmem>>, %arg35: memref<2x24xf32, #tpu.memory_space<vmem>>) attributes {dimension_semantics = [#tpu.dimension_semantics<arbitrary>], iteration_bounds = array<i64: 1>, scalar_prefetch = 0 : i64, scratch_operands = 0 : i64, tpu.core_type = #tpu.core_type<tc>, window_params = [{pipeline_mode = #tpu.pipeline_mode<synchronous>, transform_indices = @transform_0, window_bounds = array<i64: 2, 16>}, {pipeline_mode = #tpu.pipeline_mode<synchronous>, transform_indices = @transform_1, window_bounds = array<i64: 8, 256>}, {pipeline_mode = #tpu.pipeline_mode<synchronous>, transform_indices = @transform_2, window_bounds = array<i64: 256, 64>}, {pipeline_mode = #tpu.pipeline_mode<synchronous>, transform_indices = @transform_3, window_bounds = array<i64: 1, 64>}, {pipeline_mode = #tpu.pipeline_mode<synchronous>, transform_indices = @transform_4, window_bounds = array<i64: 34, 8>}, {pipeline_mode = #tpu.pipeline_mode<synchronous>, transform_indices = @transform_5, window_bounds = array<i64: 34, 64>}, {pipeline_mode = #tpu.pipeline_mode<synchronous>, transform_indices = @transform_6, window_bounds = array<i64: 64, 16>}, {pipeline_mode = #tpu.pipeline_mode<synchronous>, transform_indices = @transform_7, window_bounds = array<i64: 34, 2>}, {pipeline_mode = #tpu.pipeline_mode<synchronous>, transform_indices = @transform_8, window_bounds = array<i64: 8, 2>}, {pipeline_mode = #tpu.pipeline_mode<synchronous>, transform_indices = @transform_9, window_bounds = array<i64: 8, 16>}, {pipeline_mode = #tpu.pipeline_mode<synchronous>, transform_indices = @transform_10, window_bounds = array<i64: 2, 8>}, {pipeline_mode = #tpu.pipeline_mode<synchronous>, transform_indices = @transform_11, window_bounds = array<i64: 8, 34>}, {pipeline_mode = #tpu.pipeline_mode<synchronous>, transform_indices = @transform_12, window_bounds = array<i64: 2, 2>}, {pipeline_mode = #tpu.pipeline_mode<synchronous>, transform_indices = @transform_13, window_bounds = array<i64: 1, 16>}, {pipeline_mode = #tpu.pipeline_mode<synchronous>, transform_indices = @transform_14, window_bounds = array<i64: 1, 16>}, {pipeline_mode = #tpu.pipeline_mode<synchronous>, transform_indices = @transform_15, window_bounds = array<i64: 16, 16>}, {pipeline_mode = #tpu.pipeline_mode<synchronous>, transform_indices = @transform_16, window_bounds = array<i64: 16, 16>}, {pipeline_mode = #tpu.pipeline_mode<synchronous>, transform_indices = @transform_17, window_bounds = array<i64: 16, 16>}, {pipeline_mode = #tpu.pipeline_mode<synchronous>, transform_indices = @transform_18, window_bounds = array<i64: 8, 8>}, {pipeline_mode = #tpu.pipeline_mode<synchronous>, transform_indices = @transform_19, window_bounds = array<i64: 8, 8>}, {pipeline_mode = #tpu.pipeline_mode<synchronous>, transform_indices = @transform_20, window_bounds = array<i64: 16, 16>}, {pipeline_mode = #tpu.pipeline_mode<synchronous>, transform_indices = @transform_21, window_bounds = array<i64: 1, 16>}, {pipeline_mode = #tpu.pipeline_mode<synchronous>, transform_indices = @transform_22, window_bounds = array<i64: 1, 16>}, {pipeline_mode = #tpu.pipeline_mode<synchronous>, transform_indices = @transform_23, window_bounds = array<i64: 1, 16>}, {pipeline_mode = #tpu.pipeline_mode<synchronous>, transform_indices = @transform_24, window_bounds = array<i64: 16, 32>}, {pipeline_mode = #tpu.pipeline_mode<synchronous>, transform_indices = @transform_25, window_bounds = array<i64: 1, 32>}, {pipeline_mode = #tpu.pipeline_mode<synchronous>, transform_indices = @transform_26, window_bounds = array<i64: 32, 16>}, {pipeline_mode = #tpu.pipeline_mode<synchronous>, transform_indices = @transform_27, window_bounds = array<i64: 1, 16>}, {pipeline_mode = #tpu.pipeline_mode<synchronous>, transform_indices = @transform_28, window_bounds = array<i64: 1, 16>}, {pipeline_mode = #tpu.pipeline_mode<synchronous>, transform_indices = @transform_29, window_bounds = array<i64: 1, 16>}, {pipeline_mode = #tpu.pipeline_mode<synchronous>, transform_indices = @transform_30, window_bounds = array<i64: 16, 24>}, {pipeline_mode = #tpu.pipeline_mode<synchronous>, transform_indices = @transform_31, window_bounds = array<i64: 1, 24>}, {pipeline_mode = #tpu.pipeline_mode<synchronous>, transform_indices = @transform_32, window_bounds = array<i64: 1, 24>}, {pipeline_mode = #tpu.pipeline_mode<synchronous>, transform_indices = @transform_33, window_bounds = array<i64: 1, 24>}, {pipeline_mode = #tpu.pipeline_mode<synchronous>, transform_indices = @transform_34, window_bounds = array<i64: 2, 24>}]} {
    %c0 = arith.constant 0 : index
    %c0_0 = arith.constant 0 : index
    %0 = vector.load %arg1[%c0, %c0_0] : memref<2x16xf32, #tpu.memory_space<vmem>>, vector<2x16xf32>
    %c0_1 = arith.constant 0 : index
    %c0_2 = arith.constant 0 : index
    %1 = vector.load %arg8[%c0_1, %c0_2] : memref<34x2xf32, #tpu.memory_space<vmem>>, vector<34x2xf32>
    %c0_3 = arith.constant 0 : index
    %c0_4 = arith.constant 0 : index
    %2 = vector.load %arg9[%c0_3, %c0_4] : memref<8x2xf32, #tpu.memory_space<vmem>>, vector<8x2xf32>
    %c0_5 = arith.constant 0 : index
    %c0_6 = arith.constant 0 : index
    %3 = vector.load %arg10[%c0_5, %c0_6] : memref<8x16xf32, #tpu.memory_space<vmem>>, vector<8x16xf32>
    %c0_7 = arith.constant 0 : index
    %c0_8 = arith.constant 0 : index
    %4 = vector.load %arg11[%c0_7, %c0_8] : memref<2x8xf32, #tpu.memory_space<vmem>>, vector<2x8xf32>
    %c0_9 = arith.constant 0 : index
    %c0_10 = arith.constant 0 : index
    %5 = vector.load %arg12[%c0_9, %c0_10] : memref<8x34xf32, #tpu.memory_space<vmem>>, vector<8x34xf32>
    %c0_11 = arith.constant 0 : index
    %c0_12 = arith.constant 0 : index
    %6 = vector.load %arg2[%c0_11, %c0_12] : memref<8x256xf32, #tpu.memory_space<vmem>>, vector<8x256xf32>
    %c0_13 = arith.constant 0 : index
    %c0_14 = arith.constant 0 : index
    %7 = vector.load %arg3[%c0_13, %c0_14] : memref<256x64xf32, #tpu.memory_space<vmem>>, vector<256x64xf32>
    %cst = arith.constant dense<0.000000e+00> : vector<8x64xf32>
    %8 = tpu.matmul %6, %7, %cst {dimension_numbers = #tpu.dot_dimension_numbers<[1], [0], [0], [1], [0, 0, 1, 1], [], []>} : vector<8x256xf32>, vector<256x64xf32>, vector<8x64xf32> -> vector<8x64xf32>
    %c0_15 = arith.constant 0 : index
    %c0_16 = arith.constant 0 : index
    %9 = vector.load %arg4[%c0_15, %c0_16] : memref<1x64xf32, #tpu.memory_space<vmem>>, vector<1x64xf32>
    %10 = vector.broadcast %9 : vector<1x64xf32> to vector<8x64xf32>
    %11 = arith.addf %8, %10 : vector<8x64xf32>
    %c0_17 = arith.constant 0 : index
    %c0_18 = arith.constant 0 : index
    %12 = vector.load %arg5[%c0_17, %c0_18] : memref<34x8xf32, #tpu.memory_space<vmem>>, vector<34x8xf32>
    %cst_19 = arith.constant dense<0.000000e+00> : vector<34x64xf32>
    %13 = tpu.matmul %12, %11, %cst_19 {dimension_numbers = #tpu.dot_dimension_numbers<[1], [0], [0], [1], [0, 0, 1, 1], [], []>} : vector<34x8xf32>, vector<8x64xf32>, vector<34x64xf32> -> vector<34x64xf32>
    %c0_20 = arith.constant 0 : index
    %c0_21 = arith.constant 0 : index
    %14 = vector.load %arg6[%c0_20, %c0_21] : memref<34x64xf32, #tpu.memory_space<vmem>>, vector<34x64xf32>
    %15 = arith.mulf %13, %14 : vector<34x64xf32>
    %c0_22 = arith.constant 0 : index
    %c0_23 = arith.constant 0 : index
    %16 = vector.load %arg7[%c0_22, %c0_23] : memref<64x16xf32, #tpu.memory_space<vmem>>, vector<64x16xf32>
    %cst_24 = arith.constant dense<0.000000e+00> : vector<34x16xf32>
    %17 = tpu.matmul %15, %16, %cst_24 {dimension_numbers = #tpu.dot_dimension_numbers<[1], [0], [0], [1], [0, 0, 1, 1], [], []>} : vector<34x64xf32>, vector<64x16xf32>, vector<34x16xf32> -> vector<34x16xf32>
    %c0_25 = arith.constant 0 : index
    %c0_26 = arith.constant 0 : index
    %18 = vector.load %arg14[%c0_25, %c0_26] : memref<1x16xf32, #tpu.memory_space<vmem>>, vector<1x16xf32>
    %c0_27 = arith.constant 0 : index
    %c0_28 = arith.constant 0 : index
    %19 = vector.load %arg15[%c0_27, %c0_28] : memref<1x16xf32, #tpu.memory_space<vmem>>, vector<1x16xf32>
    %cst_29 = arith.constant dense<0.000000e+00> : vector<2xf32>
    %20 = vector.multi_reduction <add>, %0, %cst_29 [1] : vector<2x16xf32> to vector<2xf32>
    %21 = vector.shape_cast %20 : vector<2xf32> to vector<2x1xf32>
    %cst_30 = arith.constant 1.600000e+01 : f32
    %22 = vector.broadcast %cst_30 : f32 to vector<2x1xf32>
    %23 = arith.divf %21, %22 : vector<2x1xf32>
    %24 = vector.broadcast %23 : vector<2x1xf32> to vector<2x16xf32>
    %25 = arith.subf %0, %24 : vector<2x16xf32>
    %26 = arith.mulf %25, %25 : vector<2x16xf32>
    %cst_31 = arith.constant dense<0.000000e+00> : vector<2xf32>
    %27 = vector.multi_reduction <add>, %26, %cst_31 [1] : vector<2x16xf32> to vector<2xf32>
    %28 = vector.shape_cast %27 : vector<2xf32> to vector<2x1xf32>
    %cst_32 = arith.constant 1.600000e+01 : f32
    %29 = vector.broadcast %cst_32 : f32 to vector<2x1xf32>
    %30 = arith.divf %28, %29 : vector<2x1xf32>
    %cst_33 = arith.constant 9.99999974E-6 : f32
    %31 = vector.broadcast %cst_33 : f32 to vector<2x1xf32>
    %32 = arith.addf %30, %31 : vector<2x1xf32>
    %33 = math.rsqrt %32 : vector<2x1xf32>
    %34 = vector.broadcast %33 : vector<2x1xf32> to vector<2x16xf32>
    %35 = arith.mulf %25, %34 : vector<2x16xf32>
    %36 = vector.broadcast %18 : vector<1x16xf32> to vector<2x16xf32>
    %37 = arith.mulf %35, %36 : vector<2x16xf32>
    %38 = vector.broadcast %19 : vector<1x16xf32> to vector<2x16xf32>
    %39 = arith.addf %37, %38 : vector<2x16xf32>
    %cst_34 = arith.constant dense<0.000000e+00> : vector<34x16xf32>
    %40 = tpu.matmul %1, %39, %cst_34 {dimension_numbers = #tpu.dot_dimension_numbers<[1], [0], [0], [1], [0, 0, 1, 1], [], []>} : vector<34x2xf32>, vector<2x16xf32>, vector<34x16xf32> -> vector<34x16xf32>
    %41 = arith.addf %40, %17 : vector<34x16xf32>
    %42 = arith.truncf %41 : vector<34x16xf32> to vector<34x16xbf16>
    %43 = arith.truncf %39 : vector<2x16xf32> to vector<2x16xbf16>
    %c0_35 = arith.constant 0 : index
    %c0_36 = arith.constant 0 : index
    %44 = vector.load %arg16[%c0_35, %c0_36] : memref<16x16xbf16, #tpu.memory_space<vmem>>, vector<16x16xbf16>
    %cst_37 = arith.constant dense<0.000000e+00> : vector<2x16xf32>
    %45 = tpu.matmul %43, %44, %cst_37 {dimension_numbers = #tpu.dot_dimension_numbers<[1], [0], [0], [1], [0, 0, 1, 1], [], []>} : vector<2x16xbf16>, vector<16x16xbf16>, vector<2x16xf32> -> vector<2x16xf32>
    %c0_38 = arith.constant 0 : index
    %c0_39 = arith.constant 0 : index
    %46 = vector.load %arg17[%c0_38, %c0_39] : memref<16x16xbf16, #tpu.memory_space<vmem>>, vector<16x16xbf16>
    %cst_40 = arith.constant dense<0.000000e+00> : vector<34x16xf32>
    %47 = tpu.matmul %42, %46, %cst_40 {dimension_numbers = #tpu.dot_dimension_numbers<[1], [0], [0], [1], [0, 0, 1, 1], [], []>} : vector<34x16xbf16>, vector<16x16xbf16>, vector<34x16xf32> -> vector<34x16xf32>
    %c0_41 = arith.constant 0 : index
    %c0_42 = arith.constant 0 : index
    %48 = vector.load %arg18[%c0_41, %c0_42] : memref<16x16xbf16, #tpu.memory_space<vmem>>, vector<16x16xbf16>
    %cst_43 = arith.constant dense<0.000000e+00> : vector<34x16xf32>
    %49 = tpu.matmul %42, %48, %cst_43 {dimension_numbers = #tpu.dot_dimension_numbers<[1], [0], [0], [1], [0, 0, 1, 1], [], []>} : vector<34x16xbf16>, vector<16x16xbf16>, vector<34x16xf32> -> vector<34x16xf32>
    %cst_44 = arith.constant dense<0.000000e+00> : vector<8x16xf32>
    %50 = tpu.matmul %2, %45, %cst_44 {dimension_numbers = #tpu.dot_dimension_numbers<[1], [0], [0], [1], [0, 0, 1, 1], [], []>} : vector<8x2xf32>, vector<2x16xf32>, vector<8x16xf32> -> vector<8x16xf32>
    %51 = arith.mulf %50, %3 : vector<8x16xf32>
    %cst_45 = arith.constant dense<0.000000e+00> : vector<8x34xf32>
    %52 = tpu.matmul %51, %47, %cst_45 {dimension_numbers = #tpu.dot_dimension_numbers<[1], [1], [0], [0], [0, 0, 1, 0], [], []>} : vector<8x16xf32>, vector<34x16xf32>, vector<8x34xf32> -> vector<8x34xf32>
    %cst_46 = arith.constant 5.000000e-01 : f32
    %53 = vector.broadcast %cst_46 : f32 to vector<8x34xf32>
    %54 = arith.mulf %52, %53 : vector<8x34xf32>
    %c0_47 = arith.constant 0 : index
    %c0_48 = arith.constant 0 : index
    %55 = vector.load %arg19[%c0_47, %c0_48] : memref<8x8xf32, #tpu.memory_space<vmem>>, vector<8x8xf32>
    %cst_49 = arith.constant dense<0.000000e+00> : vector<8x34xf32>
    %56 = tpu.matmul %55, %54, %cst_49 {dimension_numbers = #tpu.dot_dimension_numbers<[1], [0], [0], [1], [0, 0, 1, 1], [], []>} : vector<8x8xf32>, vector<8x34xf32>, vector<8x34xf32> -> vector<8x34xf32>
    %57 = arith.addf %56, %5 : vector<8x34xf32>
    %cst_50 = arith.constant dense<0xFF800000> : vector<8xf32>
    %58 = vector.multi_reduction <maximumf>, %57, %cst_50 [1] : vector<8x34xf32> to vector<8xf32>
    %59 = vector.shape_cast %58 : vector<8xf32> to vector<8x1xf32>
    %60 = vector.broadcast %59 : vector<8x1xf32> to vector<8x34xf32>
    %61 = arith.subf %57, %60 : vector<8x34xf32>
    %62 = math.exp %61 : vector<8x34xf32>
    %cst_51 = arith.constant dense<0.000000e+00> : vector<8xf32>
    %63 = vector.multi_reduction <add>, %62, %cst_51 [1] : vector<8x34xf32> to vector<8xf32>
    %64 = vector.shape_cast %63 : vector<8xf32> to vector<8x1xf32>
    %65 = tpu.reciprocal %64 {approx = true} : vector<8x1xf32> -> vector<8x1xf32>
    %66 = vector.broadcast %65 : vector<8x1xf32> to vector<8x34xf32>
    %67 = arith.mulf %62, %66 : vector<8x34xf32>
    %c0_52 = arith.constant 0 : index
    %c0_53 = arith.constant 0 : index
    %68 = vector.load %arg20[%c0_52, %c0_53] : memref<8x8xf32, #tpu.memory_space<vmem>>, vector<8x8xf32>
    %cst_54 = arith.constant dense<0.000000e+00> : vector<8x34xf32>
    %69 = tpu.matmul %68, %67, %cst_54 {dimension_numbers = #tpu.dot_dimension_numbers<[1], [0], [0], [1], [0, 0, 1, 1], [], []>} : vector<8x8xf32>, vector<8x34xf32>, vector<8x34xf32> -> vector<8x34xf32>
    %cst_55 = arith.constant dense<0.000000e+00> : vector<8x16xf32>
    %70 = tpu.matmul %69, %49, %cst_55 {dimension_numbers = #tpu.dot_dimension_numbers<[1], [0], [0], [1], [0, 0, 1, 1], [], []>} : vector<8x34xf32>, vector<34x16xf32>, vector<8x16xf32> -> vector<8x16xf32>
    %71 = arith.mulf %70, %3 : vector<8x16xf32>
    %cst_56 = arith.constant dense<0.000000e+00> : vector<2x16xf32>
    %72 = tpu.matmul %4, %71, %cst_56 {dimension_numbers = #tpu.dot_dimension_numbers<[1], [0], [0], [1], [0, 0, 1, 1], [], []>} : vector<2x8xf32>, vector<8x16xf32>, vector<2x16xf32> -> vector<2x16xf32>
    %73 = arith.truncf %72 : vector<2x16xf32> to vector<2x16xbf16>
    %c0_57 = arith.constant 0 : index
    %c0_58 = arith.constant 0 : index
    %74 = vector.load %arg21[%c0_57, %c0_58] : memref<16x16xbf16, #tpu.memory_space<vmem>>, vector<16x16xbf16>
    %cst_59 = arith.constant dense<0.000000e+00> : vector<2x16xf32>
    %75 = tpu.matmul %73, %74, %cst_59 {dimension_numbers = #tpu.dot_dimension_numbers<[1], [0], [0], [1], [0, 0, 1, 1], [], []>} : vector<2x16xbf16>, vector<16x16xbf16>, vector<2x16xf32> -> vector<2x16xf32>
    %76 = arith.addf %0, %75 : vector<2x16xf32>
    %c0_60 = arith.constant 0 : index
    %c0_61 = arith.constant 0 : index
    %77 = vector.load %arg22[%c0_60, %c0_61] : memref<1x16xf32, #tpu.memory_space<vmem>>, vector<1x16xf32>
    %78 = vector.broadcast %77 : vector<1x16xf32> to vector<2x16xf32>
    %79 = arith.addf %76, %78 : vector<2x16xf32>
    %c0_62 = arith.constant 0 : index
    %c0_63 = arith.constant 0 : index
    %80 = vector.load %arg23[%c0_62, %c0_63] : memref<1x16xf32, #tpu.memory_space<vmem>>, vector<1x16xf32>
    %c0_64 = arith.constant 0 : index
    %c0_65 = arith.constant 0 : index
    %81 = vector.load %arg24[%c0_64, %c0_65] : memref<1x16xf32, #tpu.memory_space<vmem>>, vector<1x16xf32>
    %cst_66 = arith.constant dense<0.000000e+00> : vector<2xf32>
    %82 = vector.multi_reduction <add>, %79, %cst_66 [1] : vector<2x16xf32> to vector<2xf32>
    %83 = vector.shape_cast %82 : vector<2xf32> to vector<2x1xf32>
    %cst_67 = arith.constant 1.600000e+01 : f32
    %84 = vector.broadcast %cst_67 : f32 to vector<2x1xf32>
    %85 = arith.divf %83, %84 : vector<2x1xf32>
    %86 = vector.broadcast %85 : vector<2x1xf32> to vector<2x16xf32>
    %87 = arith.subf %79, %86 : vector<2x16xf32>
    %88 = arith.mulf %87, %87 : vector<2x16xf32>
    %cst_68 = arith.constant dense<0.000000e+00> : vector<2xf32>
    %89 = vector.multi_reduction <add>, %88, %cst_68 [1] : vector<2x16xf32> to vector<2xf32>
    %90 = vector.shape_cast %89 : vector<2xf32> to vector<2x1xf32>
    %cst_69 = arith.constant 1.600000e+01 : f32
    %91 = vector.broadcast %cst_69 : f32 to vector<2x1xf32>
    %92 = arith.divf %90, %91 : vector<2x1xf32>
    %cst_70 = arith.constant 9.99999974E-6 : f32
    %93 = vector.broadcast %cst_70 : f32 to vector<2x1xf32>
    %94 = arith.addf %92, %93 : vector<2x1xf32>
    %95 = math.rsqrt %94 : vector<2x1xf32>
    %96 = vector.broadcast %95 : vector<2x1xf32> to vector<2x16xf32>
    %97 = arith.mulf %87, %96 : vector<2x16xf32>
    %98 = vector.broadcast %80 : vector<1x16xf32> to vector<2x16xf32>
    %99 = arith.mulf %97, %98 : vector<2x16xf32>
    %100 = vector.broadcast %81 : vector<1x16xf32> to vector<2x16xf32>
    %101 = arith.addf %99, %100 : vector<2x16xf32>
    %102 = arith.truncf %101 : vector<2x16xf32> to vector<2x16xbf16>
    %c0_71 = arith.constant 0 : index
    %c0_72 = arith.constant 0 : index
    %103 = vector.load %arg25[%c0_71, %c0_72] : memref<16x32xbf16, #tpu.memory_space<vmem>>, vector<16x32xbf16>
    %cst_73 = arith.constant dense<0.000000e+00> : vector<2x32xf32>
    %104 = tpu.matmul %102, %103, %cst_73 {dimension_numbers = #tpu.dot_dimension_numbers<[1], [0], [0], [1], [0, 0, 1, 1], [], []>} : vector<2x16xbf16>, vector<16x32xbf16>, vector<2x32xf32> -> vector<2x32xf32>
    %c0_74 = arith.constant 0 : index
    %c0_75 = arith.constant 0 : index
    %105 = vector.load %arg26[%c0_74, %c0_75] : memref<1x32xf32, #tpu.memory_space<vmem>>, vector<1x32xf32>
    %106 = vector.broadcast %105 : vector<1x32xf32> to vector<2x32xf32>
    %107 = arith.addf %104, %106 : vector<2x32xf32>
    %cst_76 = arith.constant 5.000000e-01 : f32
    %108 = vector.broadcast %cst_76 : f32 to vector<2x32xf32>
    %109 = arith.mulf %108, %107 : vector<2x32xf32>
    %cst_77 = arith.constant 0.707106769 : f32
    %110 = vector.broadcast %cst_77 : f32 to vector<2x32xf32>
    %111 = arith.mulf %107, %110 : vector<2x32xf32>
    %112 = math.erf %111 : vector<2x32xf32>
    %cst_78 = arith.constant 1.000000e+00 : f32
    %113 = vector.broadcast %cst_78 : f32 to vector<2x32xf32>
    %114 = arith.addf %113, %112 : vector<2x32xf32>
    %115 = arith.mulf %109, %114 : vector<2x32xf32>
    %116 = arith.truncf %115 : vector<2x32xf32> to vector<2x32xbf16>
    %c0_79 = arith.constant 0 : index
    %c0_80 = arith.constant 0 : index
    %117 = vector.load %arg27[%c0_79, %c0_80] : memref<32x16xbf16, #tpu.memory_space<vmem>>, vector<32x16xbf16>
    %cst_81 = arith.constant dense<0.000000e+00> : vector<2x16xf32>
    %118 = tpu.matmul %116, %117, %cst_81 {dimension_numbers = #tpu.dot_dimension_numbers<[1], [0], [0], [1], [0, 0, 1, 1], [], []>} : vector<2x32xbf16>, vector<32x16xbf16>, vector<2x16xf32> -> vector<2x16xf32>
    %119 = arith.addf %79, %118 : vector<2x16xf32>
    %c0_82 = arith.constant 0 : index
    %c0_83 = arith.constant 0 : index
    %120 = vector.load %arg28[%c0_82, %c0_83] : memref<1x16xf32, #tpu.memory_space<vmem>>, vector<1x16xf32>
    %121 = vector.broadcast %120 : vector<1x16xf32> to vector<2x16xf32>
    %122 = arith.addf %119, %121 : vector<2x16xf32>
    %c0_84 = arith.constant 0 : index
    %c0_85 = arith.constant 0 : index
    %123 = vector.load %arg13[%c0_84, %c0_85] : memref<2x2xf32, #tpu.memory_space<vmem>>, vector<2x2xf32>
    %cst_86 = arith.constant dense<0.000000e+00> : vector<2x16xf32>
    %124 = tpu.matmul %123, %122, %cst_86 {dimension_numbers = #tpu.dot_dimension_numbers<[1], [0], [0], [1], [0, 0, 1, 1], [], []>} : vector<2x2xf32>, vector<2x16xf32>, vector<2x16xf32> -> vector<2x16xf32>
    %c0_87 = arith.constant 0 : index
    %c0_88 = arith.constant 0 : index
    %125 = vector.load %arg29[%c0_87, %c0_88] : memref<1x16xf32, #tpu.memory_space<vmem>>, vector<1x16xf32>
    %c0_89 = arith.constant 0 : index
    %c0_90 = arith.constant 0 : index
    %126 = vector.load %arg30[%c0_89, %c0_90] : memref<1x16xf32, #tpu.memory_space<vmem>>, vector<1x16xf32>
    %cst_91 = arith.constant dense<0.000000e+00> : vector<2xf32>
    %127 = vector.multi_reduction <add>, %124, %cst_91 [1] : vector<2x16xf32> to vector<2xf32>
    %128 = vector.shape_cast %127 : vector<2xf32> to vector<2x1xf32>
    %cst_92 = arith.constant 1.600000e+01 : f32
    %129 = vector.broadcast %cst_92 : f32 to vector<2x1xf32>
    %130 = arith.divf %128, %129 : vector<2x1xf32>
    %131 = vector.broadcast %130 : vector<2x1xf32> to vector<2x16xf32>
    %132 = arith.subf %124, %131 : vector<2x16xf32>
    %133 = arith.mulf %132, %132 : vector<2x16xf32>
    %cst_93 = arith.constant dense<0.000000e+00> : vector<2xf32>
    %134 = vector.multi_reduction <add>, %133, %cst_93 [1] : vector<2x16xf32> to vector<2xf32>
    %135 = vector.shape_cast %134 : vector<2xf32> to vector<2x1xf32>
    %cst_94 = arith.constant 1.600000e+01 : f32
    %136 = vector.broadcast %cst_94 : f32 to vector<2x1xf32>
    %137 = arith.divf %135, %136 : vector<2x1xf32>
    %cst_95 = arith.constant 9.99999974E-6 : f32
    %138 = vector.broadcast %cst_95 : f32 to vector<2x1xf32>
    %139 = arith.addf %137, %138 : vector<2x1xf32>
    %140 = math.rsqrt %139 : vector<2x1xf32>
    %141 = vector.broadcast %140 : vector<2x1xf32> to vector<2x16xf32>
    %142 = arith.mulf %132, %141 : vector<2x16xf32>
    %143 = vector.broadcast %125 : vector<1x16xf32> to vector<2x16xf32>
    %144 = arith.mulf %142, %143 : vector<2x16xf32>
    %145 = vector.broadcast %126 : vector<1x16xf32> to vector<2x16xf32>
    %146 = arith.addf %144, %145 : vector<2x16xf32>
    %c0_96 = arith.constant 0 : index
    %c0_97 = arith.constant 0 : index
    %147 = vector.load %arg31[%c0_96, %c0_97] : memref<16x24xf32, #tpu.memory_space<vmem>>, vector<16x24xf32>
    %cst_98 = arith.constant dense<0.000000e+00> : vector<2x24xf32>
    %148 = tpu.matmul %146, %147, %cst_98 {dimension_numbers = #tpu.dot_dimension_numbers<[1], [0], [0], [1], [0, 0, 1, 1], [], []>} : vector<2x16xf32>, vector<16x24xf32>, vector<2x24xf32> -> vector<2x24xf32>
    %c0_99 = arith.constant 0 : index
    %c0_100 = arith.constant 0 : index
    %149 = vector.load %arg32[%c0_99, %c0_100] : memref<1x24xf32, #tpu.memory_space<vmem>>, vector<1x24xf32>
    %150 = vector.broadcast %149 : vector<1x24xf32> to vector<2x24xf32>
    %151 = arith.addf %148, %150 : vector<2x24xf32>
    %cst_101 = arith.constant 0.000000e+00 : f32
    %152 = vector.broadcast %cst_101 : f32 to vector<2x24xf32>
    %153 = arith.subf %152, %151 : vector<2x24xf32>
    %154 = math.exp %153 : vector<2x24xf32>
    %cst_102 = arith.constant 1.000000e+00 : f32
    %155 = vector.broadcast %cst_102 : f32 to vector<2x24xf32>
    %156 = arith.addf %155, %154 : vector<2x24xf32>
    %cst_103 = arith.constant 1.000000e+00 : f32
    %157 = vector.broadcast %cst_103 : f32 to vector<2x24xf32>
    %158 = arith.divf %157, %156 : vector<2x24xf32>
    %cst_104 = arith.constant 5.000000e-01 : f32
    %159 = vector.broadcast %cst_104 : f32 to vector<2x24xf32>
    %160 = arith.subf %158, %159 : vector<2x24xf32>
    %c0_105 = arith.constant 0 : index
    %c0_106 = arith.constant 0 : index
    %161 = vector.load %arg33[%c0_105, %c0_106] : memref<1x24xf32, #tpu.memory_space<vmem>>, vector<1x24xf32>
    %162 = vector.broadcast %161 : vector<1x24xf32> to vector<2x24xf32>
    %163 = arith.mulf %160, %162 : vector<2x24xf32>
    %c0_107 = arith.constant 0 : index
    %c0_108 = arith.constant 0 : index
    %164 = vector.load %arg34[%c0_107, %c0_108] : memref<1x24xf32, #tpu.memory_space<vmem>>, vector<1x24xf32>
    %165 = vector.broadcast %164 : vector<1x24xf32> to vector<2x24xf32>
    %166 = arith.addf %163, %165 : vector<2x24xf32>
    %c0_109 = arith.constant 0 : index
    %c0_110 = arith.constant 0 : index
    %167 = vector.load %arg35[%c0_109, %c0_110] : memref<2x24xf32, #tpu.memory_space<vmem>>, vector<2x24xf32>
    tpu.vector_store %arg35[%c0_109, %c0_110], %166 {strides = array<i32>} : memref<2x24xf32, #tpu.memory_space<vmem>>, vector<2x24xf32>,
    return
  }
  func.func @transform_0(%arg0: i32) -> (i32, i32) {
    %c0_i32 = arith.constant 0 : i32
    %c0_i32_0 = arith.constant 0 : i32
    %c0_i32_1 = arith.constant 0 : i32
    return %c0_i32, %c0_i32_0 : i32, i32
  }
  func.func @transform_1(%arg0: i32) -> (i32, i32) {
    %c0_i32 = arith.constant 0 : i32
    %c0_i32_0 = arith.constant 0 : i32
    %c0_i32_1 = arith.constant 0 : i32
    return %c0_i32, %c0_i32_0 : i32, i32
  }
  func.func @transform_2(%arg0: i32) -> (i32, i32) {
    %c0_i32 = arith.constant 0 : i32
    %c0_i32_0 = arith.constant 0 : i32
    %c0_i32_1 = arith.constant 0 : i32
    return %c0_i32, %c0_i32_0 : i32, i32
  }
  func.func @transform_3(%arg0: i32) -> (i32, i32) {
    %c0_i32 = arith.constant 0 : i32
    %c0_i32_0 = arith.constant 0 : i32
    %c0_i32_1 = arith.constant 0 : i32
    return %c0_i32, %c0_i32_0 : i32, i32
  }
  func.func @transform_4(%arg0: i32) -> (i32, i32) {
    %c0_i32 = arith.constant 0 : i32
    %c0_i32_0 = arith.constant 0 : i32
    %c0_i32_1 = arith.constant 0 : i32
    return %c0_i32, %c0_i32_0 : i32, i32
  }
  func.func @transform_5(%arg0: i32) -> (i32, i32) {
    %c0_i32 = arith.constant 0 : i32
    %c0_i32_0 = arith.constant 0 : i32
    %c0_i32_1 = arith.constant 0 : i32
    return %c0_i32, %c0_i32_0 : i32, i32
  }
  func.func @transform_6(%arg0: i32) -> (i32, i32) {
    %c0_i32 = arith.constant 0 : i32
    %c0_i32_0 = arith.constant 0 : i32
    %c0_i32_1 = arith.constant 0 : i32
    return %c0_i32, %c0_i32_0 : i32, i32
  }
  func.func @transform_7(%arg0: i32) -> (i32, i32) {
    %c0_i32 = arith.constant 0 : i32
    %c0_i32_0 = arith.constant 0 : i32
    %c0_i32_1 = arith.constant 0 : i32
    return %c0_i32, %c0_i32_0 : i32, i32
  }
  func.func @transform_8(%arg0: i32) -> (i32, i32) {
    %c0_i32 = arith.constant 0 : i32
    %c0_i32_0 = arith.constant 0 : i32
    %c0_i32_1 = arith.constant 0 : i32
    return %c0_i32, %c0_i32_0 : i32, i32
  }
  func.func @transform_9(%arg0: i32) -> (i32, i32) {
    %c0_i32 = arith.constant 0 : i32
    %c0_i32_0 = arith.constant 0 : i32
    %c0_i32_1 = arith.constant 0 : i32
    return %c0_i32, %c0_i32_0 : i32, i32
  }
  func.func @transform_10(%arg0: i32) -> (i32, i32) {
    %c0_i32 = arith.constant 0 : i32
    %c0_i32_0 = arith.constant 0 : i32
    %c0_i32_1 = arith.constant 0 : i32
    return %c0_i32, %c0_i32_0 : i32, i32
  }
  func.func @transform_11(%arg0: i32) -> (i32, i32) {
    %c0_i32 = arith.constant 0 : i32
    %c0_i32_0 = arith.constant 0 : i32
    %c0_i32_1 = arith.constant 0 : i32
    return %c0_i32, %c0_i32_0 : i32, i32
  }
  func.func @transform_12(%arg0: i32) -> (i32, i32) {
    %c0_i32 = arith.constant 0 : i32
    %c0_i32_0 = arith.constant 0 : i32
    %c0_i32_1 = arith.constant 0 : i32
    return %c0_i32, %c0_i32_0 : i32, i32
  }
  func.func @transform_13(%arg0: i32) -> (i32, i32) {
    %c0_i32 = arith.constant 0 : i32
    %c0_i32_0 = arith.constant 0 : i32
    %c0_i32_1 = arith.constant 0 : i32
    return %c0_i32, %c0_i32_0 : i32, i32
  }
  func.func @transform_14(%arg0: i32) -> (i32, i32) {
    %c0_i32 = arith.constant 0 : i32
    %c0_i32_0 = arith.constant 0 : i32
    %c0_i32_1 = arith.constant 0 : i32
    return %c0_i32, %c0_i32_0 : i32, i32
  }
  func.func @transform_15(%arg0: i32) -> (i32, i32) {
    %c0_i32 = arith.constant 0 : i32
    %c0_i32_0 = arith.constant 0 : i32
    %c0_i32_1 = arith.constant 0 : i32
    return %c0_i32, %c0_i32_0 : i32, i32
  }
  func.func @transform_16(%arg0: i32) -> (i32, i32) {
    %c0_i32 = arith.constant 0 : i32
    %c0_i32_0 = arith.constant 0 : i32
    %c0_i32_1 = arith.constant 0 : i32
    return %c0_i32, %c0_i32_0 : i32, i32
  }
  func.func @transform_17(%arg0: i32) -> (i32, i32) {
    %c0_i32 = arith.constant 0 : i32
    %c0_i32_0 = arith.constant 0 : i32
    %c0_i32_1 = arith.constant 0 : i32
    return %c0_i32, %c0_i32_0 : i32, i32
  }
  func.func @transform_18(%arg0: i32) -> (i32, i32) {
    %c0_i32 = arith.constant 0 : i32
    %c0_i32_0 = arith.constant 0 : i32
    %c0_i32_1 = arith.constant 0 : i32
    return %c0_i32, %c0_i32_0 : i32, i32
  }
  func.func @transform_19(%arg0: i32) -> (i32, i32) {
    %c0_i32 = arith.constant 0 : i32
    %c0_i32_0 = arith.constant 0 : i32
    %c0_i32_1 = arith.constant 0 : i32
    return %c0_i32, %c0_i32_0 : i32, i32
  }
  func.func @transform_20(%arg0: i32) -> (i32, i32) {
    %c0_i32 = arith.constant 0 : i32
    %c0_i32_0 = arith.constant 0 : i32
    %c0_i32_1 = arith.constant 0 : i32
    return %c0_i32, %c0_i32_0 : i32, i32
  }
  func.func @transform_21(%arg0: i32) -> (i32, i32) {
    %c0_i32 = arith.constant 0 : i32
    %c0_i32_0 = arith.constant 0 : i32
    %c0_i32_1 = arith.constant 0 : i32
    return %c0_i32, %c0_i32_0 : i32, i32
  }
  func.func @transform_22(%arg0: i32) -> (i32, i32) {
    %c0_i32 = arith.constant 0 : i32
    %c0_i32_0 = arith.constant 0 : i32
    %c0_i32_1 = arith.constant 0 : i32
    return %c0_i32, %c0_i32_0 : i32, i32
  }
  func.func @transform_23(%arg0: i32) -> (i32, i32) {
    %c0_i32 = arith.constant 0 : i32
    %c0_i32_0 = arith.constant 0 : i32
    %c0_i32_1 = arith.constant 0 : i32
    return %c0_i32, %c0_i32_0 : i32, i32
  }
  func.func @transform_24(%arg0: i32) -> (i32, i32) {
    %c0_i32 = arith.constant 0 : i32
    %c0_i32_0 = arith.constant 0 : i32
    %c0_i32_1 = arith.constant 0 : i32
    return %c0_i32, %c0_i32_0 : i32, i32
  }
  func.func @transform_25(%arg0: i32) -> (i32, i32) {
    %c0_i32 = arith.constant 0 : i32
    %c0_i32_0 = arith.constant 0 : i32
    %c0_i32_1 = arith.constant 0 : i32
    return %c0_i32, %c0_i32_0 : i32, i32
  }
  func.func @transform_26(%arg0: i32) -> (i32, i32) {
    %c0_i32 = arith.constant 0 : i32
    %c0_i32_0 = arith.constant 0 : i32
    %c0_i32_1 = arith.constant 0 : i32
    return %c0_i32, %c0_i32_0 : i32, i32
  }
  func.func @transform_27(%arg0: i32) -> (i32, i32) {
    %c0_i32 = arith.constant 0 : i32
    %c0_i32_0 = arith.constant 0 : i32
    %c0_i32_1 = arith.constant 0 : i32
    return %c0_i32, %c0_i32_0 : i32, i32
  }
  func.func @transform_28(%arg0: i32) -> (i32, i32) {
    %c0_i32 = arith.constant 0 : i32
    %c0_i32_0 = arith.constant 0 : i32
    %c0_i32_1 = arith.constant 0 : i32
    return %c0_i32, %c0_i32_0 : i32, i32
  }
  func.func @transform_29(%arg0: i32) -> (i32, i32) {
    %c0_i32 = arith.constant 0 : i32
    %c0_i32_0 = arith.constant 0 : i32
    %c0_i32_1 = arith.constant 0 : i32
    return %c0_i32, %c0_i32_0 : i32, i32
  }
  func.func @transform_30(%arg0: i32) -> (i32, i32) {
    %c0_i32 = arith.constant 0 : i32
    %c0_i32_0 = arith.constant 0 : i32
    %c0_i32_1 = arith.constant 0 : i32
    return %c0_i32, %c0_i32_0 : i32, i32
  }
  func.func @transform_31(%arg0: i32) -> (i32, i32) {
    %c0_i32 = arith.constant 0 : i32
    %c0_i32_0 = arith.constant 0 : i32
    %c0_i32_1 = arith.constant 0 : i32
    return %c0_i32, %c0_i32_0 : i32, i32
  }
  func.func @transform_32(%arg0: i32) -> (i32, i32) {
    %c0_i32 = arith.constant 0 : i32
    %c0_i32_0 = arith.constant 0 : i32
    %c0_i32_1 = arith.constant 0 : i32
    return %c0_i32, %c0_i32_0 : i32, i32
  }
  func.func @transform_33(%arg0: i32) -> (i32, i32) {
    %c0_i32 = arith.constant 0 : i32
    %c0_i32_0 = arith.constant 0 : i32
    %c0_i32_1 = arith.constant 0 : i32
    return %c0_i32, %c0_i32_0 : i32, i32
  }
  func.func @transform_34(%arg0: i32) -> (i32, i32) {
    %c0_i32 = arith.constant 0 : i32
    %c0_i32_0 = arith.constant 0 : i32
    %c0_i32_1 = arith.constant 0 : i32
    return %c0_i32, %c0_i32_0 : i32, i32
  }
}

</mosaic_0001>

<llo_original>
// kernel: tile.8
$region0: #{tile.8}
  #allocation2 [shape = 's32[1]{0}', space=sflag, size = 0x4, scoped, tag = 'scoped memory for tile.8']
  %s0 = inlined_call_operand.hbm [shape: f32[6], index: 0, kind: input, shape index: {}]
  %s1 = inlined_call_operand.vmem [shape: f32[4,6], index: 1, kind: output, shape index: {}]
  $region1: #{tile.8} parent=0
    #allocation0 [shape = 'u8[512]{0}', space=vmem, size = 0x400, scoped, tag = 'operand span for operand 0']
    #allocation1 [shape = 's32[1]{0}', space=sflag, size = 0x4, scoped, tag = 'scoped memory for tile.8']
    %2 = vsyncpa [#allocation1], 0
    // Predicated region
    $region2: #{tile.8} parent=1 // pred_check
      _
    $region3: #{tile.8} parent=1 // pred_check_branch
      %4 = sbr.rel (0) target = $region5
    $region4: #{tile.8} parent=1 // pred_region
      %s6 = ssub.s32 16, 16
      %7 = vsyncadd [#allocation1], %s6
      %s9 = sshll.u32 [#allocation0], 4
      %s10 = int_to_ptr.vmem [resolvable:$true] %s9
      %12 = dma.hbm_to_vmem [thread:$0]  %s0, 16, %s10, [#allocation1]
    $region5: #{tile.8} parent=1 // pred_fallthru
      _
    // Predicated region
    $region6: #{tile.8} parent=1 // pred_check
      _
    $region7: #{tile.8} parent=1 // pred_check_branch
      %14 = sbr.rel (0) target = $region9
    $region8: #{tile.8} parent=1 // pred_region
      %15 = dma.done [#allocation1], 16
    $region9: #{tile.8} parent=1 // pred_fallthru
      _
    %v16 = vld [vmem:[#allocation0] ss:$0 sm:$0xff]
    %17 = vst [vmem:[%s1] sm:$0xf] %v16
    %18 = vsyncpa [#allocation1], 1

// kernel: affine_net_forward.3
$region0: #{affine_net_forward.3}
  #allocation0 [shape = 'u32[]', space=smem, size = 0x4, offset = 0x4, fixed_abs, tag = 'smem constant byte address 0x4 - core index']
  #allocation1 [shape = 'u32[144,128]{1,0:T(1,128)}', space=vmem, size = 0x12000, scoped, tag = 'internal scratch']
  %s0 = inlined_call_operand.vmem [shape: f32[2,1,24], index: 0, kind: input, shape index: {}]
  %s1 = inlined_call_operand.vmem [shape: f32[2,8,128], index: 1, kind: input, shape index: {}]
  %s2 = inlined_call_operand.vmem [shape: f32[256,24], index: 2, kind: input, shape index: {}]
  %s3 = inlined_call_operand.vmem [shape: f32[256,24], index: 3, kind: input, shape index: {}]
  %s4 = inlined_call_operand.vmem [shape: f32[256,8], index: 4, kind: input, shape index: {}]
  %s5 = inlined_call_operand.hbm [shape: f32[256,128], index: 5, kind: input, shape index: {}]
  %s6 = inlined_call_operand.hbm [shape: bf16[128,128], index: 6, kind: input, shape index: {}]
  %s7 = inlined_call_operand.vmem [shape: f32[1,128], index: 7, kind: input, shape index: {}]
  %s8 = inlined_call_operand.hbm [shape: bf16[128,16], index: 8, kind: input, shape index: {}]
  %s9 = inlined_call_operand.hbm [shape: f32[1,16], index: 9, kind: input, shape index: {}]
  %s10 = inlined_call_operand.hbm [shape: f32[64,256], index: 10, kind: input, shape index: {}]
  %s11 = inlined_call_operand.vmem [shape: f32[2,64,16], index: 11, kind: output, shape index: {}]
  %s12 = sld [smem:[#allocation0]]
  $region97: #{affine_net_forward.3} parent=0
    _
  %s14 = ssub.s32 1, %s12
  %s15 = scalar_select 0, %s14, %s12
  $region1: #{affine_net_forward.3} parent=0
    #allocation2 [shape = 'u8[131072]{0}', space=vmem, size = 0x20000, scoped, tag = 'input window, operand 5, single buffered']
    #allocation3 [shape = 's32[2]{0}', space=sflag, size = 0x8, scoped, tag = 'scoped memory for affine_net_forward.3']
    #allocation4 [shape = 'u8[32768]{0}', space=vmem, size = 0x8000, scoped, tag = 'input window, operand 6, single buffered']
    #allocation5 [shape = 's32[1]{0}', space=sflag, size = 0x4, scoped, tag = 'scoped memory for affine_net_forward.3']
    #allocation6 [shape = 'u8[32768]{0}', space=vmem, size = 0x8000, scoped, tag = 'input window, operand 8, single buffered']
    #allocation7 [shape = 'u8[512]{0}', space=vmem, size = 0x400, scoped, tag = 'input window, operand 9, single buffered']
    #allocation8 [shape = 's32[1]{0}', space=sflag, size = 0x4, scoped, tag = 'scoped memory for affine_net_forward.3']
    #allocation9 [shape = 'u8[65536]{0}', space=vmem, size = 0x10000, scoped, tag = 'input window, operand 10, single buffered']
    %16 = vsyncpa [#allocation3], 0
    %17 = vsyncpa [#allocation5], 0
    %18 = vsyncpa [#allocation8], 0
    loop: start=0, step=1, limit=4
    $region2: #{affine_net_forward.3} parent=1 // loop_pre_header
      _
    $region3: #{affine_net_forward.3} parent=1 // loop_header
      %s20 = sphi 0, %s24
      %p21 = scmp.ge.s32.totalorder %s20, 4
      %s30 = sphi 0, %s32
      %s33 = sphi 0, %s30
      %s34 = sphi 0, %s33
      %s50 = sphi 0, %s34
      %s56 = sphi 0, %s58
      %s59 = sphi 0, %s56
      %s60 = sphi 0, %s59
      %s76 = sphi 0, %s60
      %s80 = sphi 0, %s80
      %s82 = sphi 0, %s80
      %s83 = sphi 0, %s82
      %s97 = sphi 0, %s83
      %s101 = sphi 0, %s101
      %s103 = sphi 0, %s101
      %s104 = sphi 0, %s103
      %s118 = sphi 0, %s104
      %s122 = sphi 0, %s122
      %s124 = sphi 0, %s122
      %s125 = sphi 0, %s124
      %s139 = sphi 0, %s125
      %s143 = sphi 0, %s143
      %s145 = sphi 0, %s143
      %s146 = sphi 0, %s145
      %s160 = sphi 0, %s146
      %s164 = sphi 0, %s164
      %s166 = sphi 0, %s164
      %s167 = sphi 0, %s166
      %s181 = sphi 0, %s167
      %s185 = sphi 0, %s185
      %s187 = sphi 0, %s185
      %s188 = sphi 0, %s187
      %s202 = sphi 0, %s188
      %s206 = sphi 0, %s206
      %s208 = sphi 0, %s206
      %s209 = sphi 0, %s208
      %s223 = sphi 0, %s209
      %s227 = sphi 0, %s227
      %s229 = sphi 0, %s227
      %s230 = sphi 0, %s229
      %s244 = sphi 0, %s230
      %s248 = sphi 0, %s248
      %s250 = sphi 0, %s248
      %s251 = sphi 0, %s250
      %s265 = sphi 0, %s251
      %s271 = sphi 0, %s273
      %s274 = sphi 0, %s271
      %s275 = sphi 0, %s274
      %s291 = sphi 0, %s275
    $region4: #{affine_net_forward.3} parent=1 // loop_header_branch
      %23 = sbr.rel (%p21) target = $region8
    $region5: #{affine_net_forward.3} parent=1 // loop_body
      %s25 = ssub.s32 %s20, 1
      %s26 = ssub.s32 %s20, 2
      %s27 = sadd.s32 %s20, 1
      %s28 = ssub.s32 %s20, %s27
      %p29 = scmp.eq.s32.totalorder %s28, 0
      %s31 = sadd.s32 %s30, 1
      %s32 = scalar_select %p29, %s30, %s31
      %p35 = pneg %p29
      %p36 = scmp.eq.s32.totalorder %s20, 1
      %p37 = por %p35, %p36
      %p38 = scmp.ne.s32.totalorder %s30, %s33
      %p39 = scmp.eq.s32.totalorder %s20, 0
      %p40 = por %p38, %p39
      %p41 = scmp.ne.s32.totalorder %s30, %s33
      %p42 = scmp.eq.s32.totalorder %s25, 1
      %p43 = por %p41, %p42
      %p44 = scmp.ne.s32.totalorder %s33, %s34
      %p45 = scmp.eq.s32.totalorder %s25, 0
      %p46 = por %p44, %p45
      %p47 = scmp.ne.s32.totalorder %s33, %s34
      %p48 = scmp.eq.s32.totalorder %s26, 1
      %p49 = por %p47, %p48
      %p51 = scmp.ne.s32.totalorder %s34, %s50
      %p52 = scmp.eq.s32.totalorder %s26, 0
      %p53 = por %p51, %p52
      %s54 = ssub.s32 %s20, %s27
      %p55 = scmp.eq.s32.totalorder %s54, 0
      %s57 = sadd.s32 %s56, 1
      %s58 = scalar_select %p55, %s56, %s57
      %p61 = pneg %p55
      %p62 = scmp.eq.s32.totalorder %s20, 1
      %p63 = por %p61, %p62
      %p64 = scmp.ne.s32.totalorder %s56, %s59
      %p65 = scmp.eq.s32.totalorder %s20, 0
      %p66 = por %p64, %p65
      %p67 = scmp.ne.s32.totalorder %s56, %s59
      %p68 = scmp.eq.s32.totalorder %s25, 1
      %p69 = por %p67, %p68
      %p70 = scmp.ne.s32.totalorder %s59, %s60
      %p71 = scmp.eq.s32.totalorder %s25, 0
      %p72 = por %p70, %p71
      %p73 = scmp.ne.s32.totalorder %s59, %s60
      %p74 = scmp.eq.s32.totalorder %s26, 1
      %p75 = por %p73, %p74
      %p77 = scmp.ne.s32.totalorder %s60, %s76
      %p78 = scmp.eq.s32.totalorder %s26, 0
      %p79 = por %p77, %p78
      %s81 = sadd.s32 %s80, 1
      %p84 = scmp.eq.s32.totalorder %s20, 1
      %p85 = scmp.ne.s32.totalorder %s80, %s82
      %p86 = scmp.eq.s32.totalorder %s20, 0
      %p87 = por %p85, %p86
      %p88 = scmp.ne.s32.totalorder %s80, %s82
      %p89 = scmp.eq.s32.totalorder %s25, 1
      %p90 = por %p88, %p89
      %p91 = scmp.ne.s32.totalorder %s82, %s83
      %p92 = scmp.eq.s32.totalorder %s25, 0
      %p93 = por %p91, %p92
      %p94 = scmp.ne.s32.totalorder %s82, %s83
      %p95 = scmp.eq.s32.totalorder %s26, 1
      %p96 = por %p94, %p95
      %p98 = scmp.ne.s32.totalorder %s83, %s97
      %p99 = scmp.eq.s32.totalorder %s26, 0
      %p100 = por %p98, %p99
      %s102 = sadd.s32 %s101, 1
      %p105 = scmp.eq.s32.totalorder %s20, 1
      %p106 = scmp.ne.s32.totalorder %s101, %s103
      %p107 = scmp.eq.s32.totalorder %s20, 0
      %p108 = por %p106, %p107
      %p109 = scmp.ne.s32.totalorder %s101, %s103
      %p110 = scmp.eq.s32.totalorder %s25, 1
      %p111 = por %p109, %p110
      %p112 = scmp.ne.s32.totalorder %s103, %s104
      %p113 = scmp.eq.s32.totalorder %s25, 0
      %p114 = por %p112, %p113
      %p115 = scmp.ne.s32.totalorder %s103, %s104
      %p116 = scmp.eq.s32.totalorder %s26, 1
      %p117 = por %p115, %p116
      %p119 = scmp.ne.s32.totalorder %s104, %s118
      %p120 = scmp.eq.s32.totalorder %s26, 0
      %p121 = por %p119, %p120
      %s123 = sadd.s32 %s122, 1
      %p126 = scmp.eq.s32.totalorder %s20, 1
      %p127 = scmp.ne.s32.totalorder %s122, %s124
      %p128 = scmp.eq.s32.totalorder %s20, 0
      %p129 = por %p127, %p128
      %p130 = scmp.ne.s32.totalorder %s122, %s124
      %p131 = scmp.eq.s32.totalorder %s25, 1
      %p132 = por %p130, %p131
      %p133 = scmp.ne.s32.totalorder %s124, %s125
      %p134 = scmp.eq.s32.totalorder %s25, 0
      %p135 = por %p133, %p134
      %p136 = scmp.ne.s32.totalorder %s124, %s125
      %p137 = scmp.eq.s32.totalorder %s26, 1
      %p138 = por %p136, %p137
      %p140 = scmp.ne.s32.totalorder %s125, %s139
      %p141 = scmp.eq.s32.totalorder %s26, 0
      %p142 = por %p140, %p141
      %s144 = sadd.s32 %s143, 1
      %p147 = scmp.eq.s32.totalorder %s20, 1
      %p148 = scmp.ne.s32.totalorder %s143, %s145
      %p149 = scmp.eq.s32.totalorder %s20, 0
      %p150 = por %p148, %p149
      %p151 = scmp.ne.s32.totalorder %s143, %s145
      %p152 = scmp.eq.s32.totalorder %s25, 1
      %p153 = por %p151, %p152
      %p154 = scmp.ne.s32.totalorder %s145, %s146
      %p155 = scmp.eq.s32.totalorder %s25, 0
      %p156 = por %p154, %p155
      %p157 = scmp.ne.s32.totalorder %s145, %s146
      %p158 = scmp.eq.s32.totalorder %s26, 1
      %p159 = por %p157, %p158
      %p161 = scmp.ne.s32.totalorder %s146, %s160
      %p162 = scmp.eq.s32.totalorder %s26, 0
      %p163 = por %p161, %p162
      %s165 = sadd.s32 %s164, 1
      %p168 = scmp.eq.s32.totalorder %s20, 1
      %p169 = scmp.ne.s32.totalorder %s164, %s166
      %p170 = scmp.eq.s32.totalorder %s20, 0
      %p171 = por %p169, %p170
      %p172 = scmp.ne.s32.totalorder %s164, %s166
      %p173 = scmp.eq.s32.totalorder %s25, 1
      %p174 = por %p172, %p173
      %p175 = scmp.ne.s32.totalorder %s166, %s167
      %p176 = scmp.eq.s32.totalorder %s25, 0
      %p177 = por %p175, %p176
      %p178 = scmp.ne.s32.totalorder %s166, %s167
      %p179 = scmp.eq.s32.totalorder %s26, 1
      %p180 = por %p178, %p179
      %p182 = scmp.ne.s32.totalorder %s167, %s181
      %p183 = scmp.eq.s32.totalorder %s26, 0
      %p184 = por %p182, %p183
      %s186 = sadd.s32 %s185, 1
      %p189 = scmp.eq.s32.totalorder %s20, 1
      %p190 = scmp.ne.s32.totalorder %s185, %s187
      %p191 = scmp.eq.s32.totalorder %s20, 0
      %p192 = por %p190, %p191
      %p193 = scmp.ne.s32.totalorder %s185, %s187
      %p194 = scmp.eq.s32.totalorder %s25, 1
      %p195 = por %p193, %p194
      %p196 = scmp.ne.s32.totalorder %s187, %s188
      %p197 = scmp.eq.s32.totalorder %s25, 0
      %p198 = por %p196, %p197
      %p199 = scmp.ne.s32.totalorder %s187, %s188
      %p200 = scmp.eq.s32.totalorder %s26, 1
      %p201 = por %p199, %p200
      %p203 = scmp.ne.s32.totalorder %s188, %s202
      %p204 = scmp.eq.s32.totalorder %s26, 0
      %p205 = por %p203, %p204
      %s207 = sadd.s32 %s206, 1
      %p210 = scmp.eq.s32.totalorder %s20, 1
      %p211 = scmp.ne.s32.totalorder %s206, %s208
      %p212 = scmp.eq.s32.totalorder %s20, 0
      %p213 = por %p211, %p212
      %p214 = scmp.ne.s32.totalorder %s206, %s208
      %p215 = scmp.eq.s32.totalorder %s25, 1
      %p216 = por %p214, %p215
      %p217 = scmp.ne.s32.totalorder %s208, %s209
      %p218 = scmp.eq.s32.totalorder %s25, 0
      %p219 = por %p217, %p218
      %p220 = scmp.ne.s32.totalorder %s208, %s209
      %p221 = scmp.eq.s32.totalorder %s26, 1
      %p222 = por %p220, %p221
      %p224 = scmp.ne.s32.totalorder %s209, %s223
      %p225 = scmp.eq.s32.totalorder %s26, 0
      %p226 = por %p224, %p225
      %s228 = sadd.s32 %s227, 1
      %p231 = scmp.eq.s32.totalorder %s20, 1
      %p232 = scmp.ne.s32.totalorder %s227, %s229
      %p233 = scmp.eq.s32.totalorder %s20, 0
      %p234 = por %p232, %p233
      %p235 = scmp.ne.s32.totalorder %s227, %s229
      %p236 = scmp.eq.s32.totalorder %s25, 1
      %p237 = por %p235, %p236
      %p238 = scmp.ne.s32.totalorder %s229, %s230
      %p239 = scmp.eq.s32.totalorder %s25, 0
      %p240 = por %p238, %p239
      %p241 = scmp.ne.s32.totalorder %s229, %s230
      %p242 = scmp.eq.s32.totalorder %s26, 1
      %p243 = por %p241, %p242
      %p245 = scmp.ne.s32.totalorder %s230, %s244
      %p246 = scmp.eq.s32.totalorder %s26, 0
      %p247 = por %p245, %p246
      %s249 = sadd.s32 %s248, 1
      %p252 = scmp.eq.s32.totalorder %s20, 1
      %p253 = scmp.ne.s32.totalorder %s248, %s250
      %p254 = scmp.eq.s32.totalorder %s20, 0
      %p255 = por %p253, %p254
      %p256 = scmp.ne.s32.totalorder %s248, %s250
      %p257 = scmp.eq.s32.totalorder %s25, 1
      %p258 = por %p256, %p257
      %p259 = scmp.ne.s32.totalorder %s250, %s251
      %p260 = scmp.eq.s32.totalorder %s25, 0
      %p261 = por %p259, %p260
      %p262 = scmp.ne.s32.totalorder %s250, %s251
      %p263 = scmp.eq.s32.totalorder %s26, 1
      %p264 = por %p262, %p263
      %p266 = scmp.ne.s32.totalorder %s251, %s265
      %p267 = scmp.eq.s32.totalorder %s26, 0
      %p268 = por %p266, %p267
      %s269 = ssub.s32 %s20, %s27
      %p270 = scmp.eq.s32.totalorder %s269, 0
      %s272 = sadd.s32 %s271, 1
      %s273 = scalar_select %p270, %s271, %s272
      %p276 = pneg %p270
      %p277 = scmp.eq.s32.totalorder %s20, 1
      %p278 = por %p276, %p277
      %p279 = scmp.ne.s32.totalorder %s271, %s274
      %p280 = scmp.eq.s32.totalorder %s20, 0
      %p281 = por %p279, %p280
      %p282 = scmp.ne.s32.totalorder %s271, %s274
      %p283 = scmp.eq.s32.totalorder %s25, 1
      %p284 = por %p282, %p283
      %p285 = scmp.ne.s32.totalorder %s274, %s275
      %p286 = scmp.eq.s32.totalorder %s25, 0
      %p287 = por %p285, %p286
      %p288 = scmp.ne.s32.totalorder %s274, %s275
      %p289 = scmp.eq.s32.totalorder %s26, 1
      %p290 = por %p288, %p289
      %p292 = scmp.ne.s32.totalorder %s275, %s291
      %p293 = scmp.eq.s32.totalorder %s26, 0
      %p294 = por %p292, %p293
      %p295 = scmp.le.s32.totalorder 1, %s20
      %p296 = scmp.lt.s32.totalorder %s20, 3
      %p297 = pnand %p295, %p296
      %p298 = pneg %p297
      // Predicated region
      $region9: #{affine_net_forward.3} parent=5 // pred_check
        _
      $region10: #{affine_net_forward.3} parent=5 // pred_check_branch
        %300 = sbr.rel (%p297) target = $region12
      $region11: #{affine_net_forward.3} parent=5 // pred_region
        %s301 = ssub.s32 %s20, 1
        // Predicated region
        $region13: #{affine_net_forward.3} parent=11 // pred_check
          %p302 = pneg %p93
        $region14: #{affine_net_forward.3} parent=11 // pred_check_branch
          %304 = sbr.rel (%p302) target = $region16
        $region15: #{affine_net_forward.3} parent=11 // pred_region
          _
        $region16: #{affine_net_forward.3} parent=11 // pred_fallthru
          _
        // Predicated region
        $region17: #{affine_net_forward.3} parent=11 // pred_check
          %p305 = pneg %p114
        $region18: #{affine_net_forward.3} parent=11 // pred_check_branch
          %307 = sbr.rel (%p305) target = $region20
        $region19: #{affine_net_forward.3} parent=11 // pred_region
          _
        $region20: #{affine_net_forward.3} parent=11 // pred_fallthru
          _
        // Predicated region
        $region21: #{affine_net_forward.3} parent=11 // pred_check
          %p308 = pneg %p135
        $region22: #{affine_net_forward.3} parent=11 // pred_check_branch
          %310 = sbr.rel (%p308) target = $region24
        $region23: #{affine_net_forward.3} parent=11 // pred_region
          _
        $region24: #{affine_net_forward.3} parent=11 // pred_fallthru
          _
        // Predicated region
        $region25: #{affine_net_forward.3} parent=11 // pred_check
          %p311 = pneg %p156
        $region26: #{affine_net_forward.3} parent=11 // pred_check_branch
          %313 = sbr.rel (%p311) target = $region28
        $region27: #{affine_net_forward.3} parent=11 // pred_region
          %s315 = ssub.s32 4096, 4096
          %316 = vsyncadd [#allocation3], %s315
          %s317 = sshll.u32 [#allocation2], 4
          %s318 = int_to_ptr.vmem [resolvable:$true] %s317
          %323 = dma.hbm_to_vmem [thread:$0]  %s5, 4096, %s318, [#allocation3], 128, 128, 8
        $region28: #{affine_net_forward.3} parent=11 // pred_fallthru
          _
        // Predicated region
        $region29: #{affine_net_forward.3} parent=11 // pred_check
          %p324 = pneg %p177
        $region30: #{affine_net_forward.3} parent=11 // pred_check_branch
          %326 = sbr.rel (%p324) target = $region32
        $region31: #{affine_net_forward.3} parent=11 // pred_region
          %s328 = ssub.s32 1024, 1024
          %329 = vsyncadd [#allocation5], %s328
          %s330 = sshll.u32 [#allocation4], 4
          %s331 = int_to_ptr.vmem [resolvable:$true] %s330
          %336 = dma.hbm_to_vmem [thread:$0]  %s6, 1024, %s331, [#allocation5], 64, 64, 4
        $region32: #{affine_net_forward.3} parent=11 // pred_fallthru
          _
        // Predicated region
        $region33: #{affine_net_forward.3} parent=11 // pred_check
          %p337 = pneg %p198
        $region34: #{affine_net_forward.3} parent=11 // pred_check_branch
          %339 = sbr.rel (%p337) target = $region36
        $region35: #{affine_net_forward.3} parent=11 // pred_region
          _
        $region36: #{affine_net_forward.3} parent=11 // pred_fallthru
          _
        // Predicated region
        $region37: #{affine_net_forward.3} parent=11 // pred_check
          %p340 = pneg %p219
        $region38: #{affine_net_forward.3} parent=11 // pred_check_branch
          %342 = sbr.rel (%p340) target = $region40
        $region39: #{affine_net_forward.3} parent=11 // pred_region
          %s344 = ssub.s32 1024, 1024
          %345 = vsyncadd [#allocation5], %s344
          %s346 = sshll.u32 [#allocation6], 4
          %s347 = int_to_ptr.vmem [resolvable:$true] %s346
          %352 = dma.hbm_to_vmem [thread:$0]  %s8, 1024, %s347, [#allocation5], 64, 64, 4
        $region40: #{affine_net_forward.3} parent=11 // pred_fallthru
          _
        // Predicated region
        $region41: #{affine_net_forward.3} parent=11 // pred_check
          %p353 = pneg %p240
        $region42: #{affine_net_forward.3} parent=11 // pred_check_branch
          %355 = sbr.rel (%p353) target = $region44
        $region43: #{affine_net_forward.3} parent=11 // pred_region
          %s357 = ssub.s32 16, 16
          %358 = vsyncadd [#allocation8], %s357
          %s360 = sshll.u32 [#allocation7], 4
          %s361 = int_to_ptr.vmem [resolvable:$true] %s360
          %363 = dma.hbm_to_vmem [thread:$0]  %s9, 16, %s361, [#allocation8]
        $region44: #{affine_net_forward.3} parent=11 // pred_fallthru
          _
        // Predicated region
        $region45: #{affine_net_forward.3} parent=11 // pred_check
          %p364 = pneg %p261
        $region46: #{affine_net_forward.3} parent=11 // pred_check_branch
          %366 = sbr.rel (%p364) target = $region48
        $region47: #{affine_net_forward.3} parent=11 // pred_region
          %s368 = ssub.s32 2048, 2048
          %369 = vsyncadd [#allocation8], %s368
          %s370 = sshll.u32 [#allocation9], 4
          %s371 = int_to_ptr.vmem [resolvable:$true] %s370
          %376 = dma.hbm_to_vmem [thread:$0]  %s10, 2048, %s371, [#allocation8], 256, 256, 16
        $region48: #{affine_net_forward.3} parent=11 // pred_fallthru
          _
      $region12: #{affine_net_forward.3} parent=5 // pred_fallthru
        _
      %p377 = scmp.lt.s32.totalorder %s20, 2
      // Predicated region
      $region49: #{affine_net_forward.3} parent=5 // pred_check
        %p378 = pneg %p377
      $region50: #{affine_net_forward.3} parent=5 // pred_check_branch
        %380 = sbr.rel (%p378) target = $region52
      $region51: #{affine_net_forward.3} parent=5 // pred_region
        // Predicated region
        $region53: #{affine_net_forward.3} parent=51 // pred_check
          %p381 = pneg %p40
        $region54: #{affine_net_forward.3} parent=51 // pred_check_branch
          %383 = sbr.rel (%p381) target = $region56
        $region55: #{affine_net_forward.3} parent=51 // pred_region
          %p384 = scmp.lt.s32.totalorder %s20, 1
          %s385 = scalar_select %p384, %s20, 1
          %s386 = scalar_lea.vmem %s0, %s385
        $region56: #{affine_net_forward.3} parent=51 // pred_fallthru
          _
        // Predicated region
        $region57: #{affine_net_forward.3} parent=51 // pred_check
          %p387 = pneg %p66
        $region58: #{affine_net_forward.3} parent=51 // pred_check_branch
          %389 = sbr.rel (%p387) target = $region60
        $region59: #{affine_net_forward.3} parent=51 // pred_region
          %p390 = scmp.lt.s32.totalorder %s20, 1
          %s391 = scalar_select %p390, %s20, 1
          %s392 = smul.addr %s391, 8
          %s393 = scalar_lea.vmem %s1, %s392
        $region60: #{affine_net_forward.3} parent=51 // pred_fallthru
          _
      $region52: #{affine_net_forward.3} parent=5 // pred_fallthru
        _
      %p394 = scmp.le.s32.totalorder 1, %s20
      %p395 = scmp.lt.s32.totalorder %s20, 3
      %p396 = pnand %p394, %p395
      %p397 = pneg %p396
      // Predicated region
      $region61: #{affine_net_forward.3} parent=5 // pred_check
        _
      $region62: #{affine_net_forward.3} parent=5 // pred_check_branch
        %399 = sbr.rel (%p396) target = $region64
      $region63: #{affine_net_forward.3} parent=5 // pred_region
        %s400 = ssub.s32 %s20, 1
        // Predicated region
        $region65: #{affine_net_forward.3} parent=63 // pred_check
          %p401 = pneg %p156
        $region66: #{affine_net_forward.3} parent=63 // pred_check_branch
          %403 = sbr.rel (%p401) target = $region68
        $region67: #{affine_net_forward.3} parent=63 // pred_region
          %404 = dma.done [#allocation3], 4096
        $region68: #{affine_net_forward.3} parent=63 // pred_fallthru
          _
        // Predicated region
        $region69: #{affine_net_forward.3} parent=63 // pred_check
          %p405 = pneg %p177
        $region70: #{affine_net_forward.3} parent=63 // pred_check_branch
          %407 = sbr.rel (%p405) target = $region72
        $region71: #{affine_net_forward.3} parent=63 // pred_region
          %408 = dma.done [#allocation5], 1024
        $region72: #{affine_net_forward.3} parent=63 // pred_fallthru
          _
        // Predicated region
        $region73: #{affine_net_forward.3} parent=63 // pred_check
          %p409 = pneg %p219
        $region74: #{affine_net_forward.3} parent=63 // pred_check_branch
          %411 = sbr.rel (%p409) target = $region76
        $region75: #{affine_net_forward.3} parent=63 // pred_region
          %412 = dma.done [#allocation5], 1024
        $region76: #{affine_net_forward.3} parent=63 // pred_fallthru
          _
        // Predicated region
        $region77: #{affine_net_forward.3} parent=63 // pred_check
          %p413 = pneg %p240
        $region78: #{affine_net_forward.3} parent=63 // pred_check_branch
          %415 = sbr.rel (%p413) target = $region80
        $region79: #{affine_net_forward.3} parent=63 // pred_region
          %416 = dma.done [#allocation8], 16
        $region80: #{affine_net_forward.3} parent=63 // pred_fallthru
          _
        // Predicated region
        $region81: #{affine_net_forward.3} parent=63 // pred_check
          %p417 = pneg %p261
        $region82: #{affine_net_forward.3} parent=63 // pred_check_branch
          %419 = sbr.rel (%p417) target = $region84
        $region83: #{affine_net_forward.3} parent=63 // pred_region
          %420 = dma.done [#allocation8], 2048
        $region84: #{affine_net_forward.3} parent=63 // pred_fallthru
          _
        %p421 = scmp.lt.s32.totalorder %s25, 1
        %s422 = scalar_select %p421, %s25, 1
        %s423 = scalar_lea.vmem %s0, %s422
        %p424 = pneg %p46
        %p425 = pneg %p43
        %p426 = scmp.lt.s32.totalorder %s25, 1
        %s427 = scalar_select %p426, %s25, 1
        %s428 = smul.addr %s427, 8
        %s429 = scalar_lea.vmem %s1, %s428
        %p430 = pneg %p72
        %p431 = pneg %p69
        %p432 = pneg %p93
        %p433 = pneg %p90
        %p434 = pneg %p114
        %p435 = pneg %p111
        %p436 = pneg %p135
        %p437 = pneg %p132
        %p438 = pneg %p156
        %p439 = pneg %p153
        %p440 = pneg %p177
        %p441 = pneg %p174
        %p442 = pneg %p198
        %p443 = pneg %p195
        %p444 = pneg %p219
        %p445 = pneg %p216
        %p446 = pneg %p240
        %p447 = pneg %p237
        %p448 = pneg %p261
        %p449 = pneg %p258
        %p450 = pneg %p287
        %p451 = pneg %p284
        %p452 = scmp.lt.s32.totalorder %s25, 1
        %s453 = scalar_select %p452, %s25, 1
        %s454 = smul.addr %s453, 8
        %s455 = smul.addr %s454, 8
        %s456 = scalar_lea.vmem %s11, %s455
        %p457 = scmp.lt.s32.totalorder %s25, 1
        %s458 = scalar_select %p457, %s25, 1
        %s459 = scalar_lea.vmem %s0, %s458
        %p460 = scmp.lt.s32.totalorder %s25, 1
        %s461 = scalar_select %p460, %s25, 1
        %s462 = smul.addr %s461, 8
        %s463 = scalar_lea.vmem %s1, %s462
        %p464 = scmp.lt.s32.totalorder %s25, 1
        %s465 = scalar_select %p464, %s25, 1
        %s466 = smul.addr %s465, 8
        %s467 = smul.addr %s466, 8
        %s468 = scalar_lea.vmem %s11, %s467
        %v470 = vld [vmem:[%s459] sm:$0x1]
        %v471 = vld [vmem:[%s463] sm:$0xff]
        %v472 = vpack.c.bf16 %v471, %v471
        %v473 = vld [vmem:[#allocation4] sm:$0xf]
        %v474 = vld [vmem:[#allocation4 + $0x4] sm:$0xf]
        %v475 = vld [vmem:[#allocation4 + $0x8] sm:$0xf]
        %v476 = vld [vmem:[#allocation4 + $0xc] sm:$0xf]
        %v477 = vld [vmem:[#allocation4 + $0x10] sm:$0xf]
        %v478 = vld [vmem:[#allocation4 + $0x14] sm:$0xf]
        %v479 = vld [vmem:[#allocation4 + $0x18] sm:$0xf]
        %v480 = vld [vmem:[#allocation4 + $0x1c] sm:$0xf]
        %v481 = vld [vmem:[#allocation4 + $0x20] sm:$0xf]
        %v482 = vld [vmem:[#allocation4 + $0x24] sm:$0xf]
        %v483 = vld [vmem:[#allocation4 + $0x28] sm:$0xf]
        %v484 = vld [vmem:[#allocation4 + $0x2c] sm:$0xf]
        %v485 = vld [vmem:[#allocation4 + $0x30] sm:$0xf]
        %v486 = vld [vmem:[#allocation4 + $0x34] sm:$0xf]
        %v487 = vld [vmem:[#allocation4 + $0x38] sm:$0xf]
        %v488 = vld [vmem:[#allocation4 + $0x3c] sm:$0xf]
        %v489 = vld [vmem:[%s7] sm:$0x1]
        %v491 = vlaneseq
        %v492 = vshrl.u32 %v491, 7
        %v493 = vsub.s32 0, %v492
        %v494 = vrot.slane %v489, %v493
        %v512 = vunpack.c.l.b16 %v473
        %v513 = vunpack.c.l.b16 %v474
        %v514 = vunpack.c.l.b16 %v475
        %v515 = vunpack.c.l.b16 %v476
        %v516 = vunpack.c.l.b16 %v477
        %v517 = vunpack.c.l.b16 %v478
        %v518 = vunpack.c.l.b16 %v479
        %v519 = vunpack.c.l.b16 %v480
        %v520 = vunpack.c.l.b16 %v481
        %v521 = vunpack.c.l.b16 %v482
        %v522 = vunpack.c.l.b16 %v483
        %v523 = vunpack.c.l.b16 %v484
        %v524 = vunpack.c.l.b16 %v485
        %v525 = vunpack.c.l.b16 %v486
        %v526 = vunpack.c.l.b16 %v487
        %v527 = vunpack.c.l.b16 %v488
        %v528 = vpack.c.b16 %v513, %v512
        %v529 = vpack.c.b16 %v515, %v514
        %v530 = vpack.c.b16 %v517, %v516
        %v531 = vpack.c.b16 %v519, %v518
        %v532 = vpack.c.b16 %v521, %v520
        %v533 = vpack.c.b16 %v523, %v522
        %v534 = vpack.c.b16 %v525, %v524
        %v535 = vpack.c.b16 %v527, %v526
        %544 = vmatprep.subr.bf16.mxu0 0
        %545 = vmatpush1.bf16.msra.mxu0 %v535
        %546 = vmatprep.subr.bf16.mxu0 0
        %547 = vmatpush1.bf16.msra.mxu0 %v534
        %548 = vmatprep.subr.bf16.mxu0 0
        %549 = vmatpush1.bf16.msra.mxu0 %v533
        %550 = vmatprep.subr.bf16.mxu0 0
        %551 = vmatpush1.bf16.msra.mxu0 %v532
        %552 = vmatprep.subr.bf16.mxu0 0
        %553 = vmatpush1.bf16.msra.mxu0 %v531
        %554 = vmatprep.subr.bf16.mxu0 0
        %555 = vmatpush1.bf16.msra.mxu0 %v530
        %556 = vmatprep.subr.bf16.mxu0 0
        %557 = vmatpush1.bf16.msra.mxu0 %v529
        %558 = vmatprep.subr.bf16.mxu0 0
        %559 = vmatpush1.bf16.msra.mxu0 %v528
        %560 = vmatprep.subr.bf16.mxu0 0
        %561 = vmatpush2.bf16.msra.mxu0 0
        %562 = vmatprep.subr.bf16.mxu0 0
        %563 = vmatpush2.bf16.msra.mxu0 0
        %564 = vmatprep.subr.bf16.mxu0 0
        %565 = vmatpush2.bf16.msra.mxu0 0
        %566 = vmatprep.subr.bf16.mxu0 0
        %567 = vmatpush2.bf16.msra.mxu0 0
        %568 = vmatprep.subr.bf16.mxu0 0
        %569 = vmatpush2.bf16.msra.mxu0 0
        %570 = vmatprep.subr.bf16.mxu0 0
        %571 = vmatpush2.bf16.msra.mxu0 0
        %572 = vmatprep.subr.bf16.mxu0 0
        %573 = vmatpush2.bf16.msra.mxu0 0
        %574 = vmatprep.subr.bf16.mxu0 0
        %575 = vmatpush2.bf16.msra.mxu0 0
        %576 = vmatprep.mubr.bf16.mxu0 0
        %577 = vmatmul.mubr.bf16.gmra.mxu0 %v472
        %v578 = vpop.f32.mrf.mxu0
        %v579 = vadd.f32 %v494, %v578
        %v580 = vpop.f32.mrf.mxu0
        %v581 = vpop.f32.mrf.mxu0
        %v582 = vpop.f32.mrf.mxu0
        %583 = vdwg.mxu0
        %v584 = vld [vmem:[%s2] sm:$0xff]
        %v585 = vld [vmem:[%s2 + $0x8] sm:$0xff]
        %v586 = vld [vmem:[%s2 + $0x10] sm:$0xff]
        %v587 = vld [vmem:[%s2 + $0x18] sm:$0xff]
        %v588 = vld [vmem:[%s2 + $0x20] sm:$0xff]
        %v589 = vld [vmem:[%s2 + $0x28] sm:$0xff]
        %v590 = vld [vmem:[%s2 + $0x30] sm:$0xff]
        %v591 = vld [vmem:[%s2 + $0x38] sm:$0xff]
        %v592 = vld [vmem:[%s2 + $0x40] sm:$0xff]
        %v593 = vld [vmem:[%s2 + $0x48] sm:$0xff]
        %v594 = vld [vmem:[%s2 + $0x50] sm:$0xff]
        %v595 = vld [vmem:[%s2 + $0x58] sm:$0xff]
        %v596 = vld [vmem:[%s2 + $0x60] sm:$0xff]
        %v597 = vld [vmem:[%s2 + $0x68] sm:$0xff]
        %v598 = vld [vmem:[%s2 + $0x70] sm:$0xff]
        %v599 = vld [vmem:[%s2 + $0x78] sm:$0xff]
        %v600 = vld [vmem:[%s2 + $0x80] sm:$0xff]
        %v601 = vld [vmem:[%s2 + $0x88] sm:$0xff]
        %v602 = vld [vmem:[%s2 + $0x90] sm:$0xff]
        %v603 = vld [vmem:[%s2 + $0x98] sm:$0xff]
        %v604 = vld [vmem:[%s2 + $0xa0] sm:$0xff]
        %v605 = vld [vmem:[%s2 + $0xa8] sm:$0xff]
        %v606 = vld [vmem:[%s2 + $0xb0] sm:$0xff]
        %v607 = vld [vmem:[%s2 + $0xb8] sm:$0xff]
        %v608 = vld [vmem:[%s2 + $0xc0] sm:$0xff]
        %v609 = vld [vmem:[%s2 + $0xc8] sm:$0xff]
        %v610 = vld [vmem:[%s2 + $0xd0] sm:$0xff]
        %v611 = vld [vmem:[%s2 + $0xd8] sm:$0xff]
        %v612 = vld [vmem:[%s2 + $0xe0] sm:$0xff]
        %v613 = vld [vmem:[%s2 + $0xe8] sm:$0xff]
        %v614 = vld [vmem:[%s2 + $0xf0] sm:$0xff]
        %v615 = vld [vmem:[%s2 + $0xf8] sm:$0xff]
        %v617 = vlaneseq
        %v618 = vshrl.u32 %v617, 7
        %v619 = vsub.s32 0, %v618
        %v620 = vrot.slane %v470, %v619
        %v622 = vmul.f32 %v584, %v620
        %v623 = vmul.f32 %v585, %v620
        %v624 = vmul.f32 %v586, %v620
        %v625 = vmul.f32 %v587, %v620
        %v626 = vmul.f32 %v588, %v620
        %v627 = vmul.f32 %v589, %v620
        %v628 = vmul.f32 %v590, %v620
        %v629 = vmul.f32 %v591, %v620
        %v630 = vmul.f32 %v592, %v620
        %v631 = vmul.f32 %v593, %v620
        %v632 = vmul.f32 %v594, %v620
        %v633 = vmul.f32 %v595, %v620
        %v634 = vmul.f32 %v596, %v620
        %v635 = vmul.f32 %v597, %v620
        %v636 = vmul.f32 %v598, %v620
        %v637 = vmul.f32 %v599, %v620
        %v638 = vmul.f32 %v600, %v620
        %v639 = vmul.f32 %v601, %v620
        %v640 = vmul.f32 %v602, %v620
        %v641 = vmul.f32 %v603, %v620
        %v642 = vmul.f32 %v604, %v620
        %v643 = vmul.f32 %v605, %v620
        %v644 = vmul.f32 %v606, %v620
        %v645 = vmul.f32 %v607, %v620
        %v646 = vmul.f32 %v608, %v620
        %v647 = vmul.f32 %v609, %v620
        %v648 = vmul.f32 %v610, %v620
        %v649 = vmul.f32 %v611, %v620
        %v650 = vmul.f32 %v612, %v620
        %v651 = vmul.f32 %v613, %v620
        %v652 = vmul.f32 %v614, %v620
        %v653 = vmul.f32 %v615, %v620
        %vm654 = vcmask 195584
        %v655 = vsel %vm654, %v622, 0.0
        %656 = vadd.xlane.f32.xlu0 %v655
        %v657 = vpop.xlane.xlu0 %656
        %v658 = vsel %vm654, %v623, 0.0
        %659 = vadd.xlane.f32.xlu0 %v658
        %v660 = vpop.xlane.xlu0 %659
        %v661 = vsel %vm654, %v624, 0.0
        %662 = vadd.xlane.f32.xlu0 %v661
        %v663 = vpop.xlane.xlu0 %662
        %v664 = vsel %vm654, %v625, 0.0
        %665 = vadd.xlane.f32.xlu0 %v664
        %v666 = vpop.xlane.xlu0 %665
        %v667 = vsel %vm654, %v626, 0.0
        %668 = vadd.xlane.f32.xlu0 %v667
        %v669 = vpop.xlane.xlu0 %668
        %v670 = vsel %vm654, %v627, 0.0
        %671 = vadd.xlane.f32.xlu0 %v670
        %v672 = vpop.xlane.xlu0 %671
        %v673 = vsel %vm654, %v628, 0.0
        %674 = vadd.xlane.f32.xlu0 %v673
        %v675 = vpop.xlane.xlu0 %674
        %v676 = vsel %vm654, %v629, 0.0
        %677 = vadd.xlane.f32.xlu0 %v676
        %v678 = vpop.xlane.xlu0 %677
        %v679 = vsel %vm654, %v630, 0.0
        %680 = vadd.xlane.f32.xlu0 %v679
        %v681 = vpop.xlane.xlu0 %680
        %v682 = vsel %vm654, %v631, 0.0
        %683 = vadd.xlane.f32.xlu0 %v682
        %v684 = vpop.xlane.xlu0 %683
        %v685 = vsel %vm654, %v632, 0.0
        %686 = vadd.xlane.f32.xlu0 %v685
        %v687 = vpop.xlane.xlu0 %686
        %v688 = vsel %vm654, %v633, 0.0
        %689 = vadd.xlane.f32.xlu0 %v688
        %v690 = vpop.xlane.xlu0 %689
        %v691 = vsel %vm654, %v634, 0.0
        %692 = vadd.xlane.f32.xlu0 %v691
        %v693 = vpop.xlane.xlu0 %692
        %v694 = vsel %vm654, %v635, 0.0
        %695 = vadd.xlane.f32.xlu0 %v694
        %v696 = vpop.xlane.xlu0 %695
        %v697 = vsel %vm654, %v636, 0.0
        %698 = vadd.xlane.f32.xlu0 %v697
        %v699 = vpop.xlane.xlu0 %698
        %v700 = vsel %vm654, %v637, 0.0
        %701 = vadd.xlane.f32.xlu0 %v700
        %v702 = vpop.xlane.xlu0 %701
        %v703 = vsel %vm654, %v638, 0.0
        %704 = vadd.xlane.f32.xlu0 %v703
        %v705 = vpop.xlane.xlu0 %704
        %v706 = vsel %vm654, %v639, 0.0
        %707 = vadd.xlane.f32.xlu0 %v706
        %v708 = vpop.xlane.xlu0 %707
        %v709 = vsel %vm654, %v640, 0.0
        %710 = vadd.xlane.f32.xlu0 %v709
        %v711 = vpop.xlane.xlu0 %710
        %v712 = vsel %vm654, %v641, 0.0
        %713 = vadd.xlane.f32.xlu0 %v712
        %v714 = vpop.xlane.xlu0 %713
        %v715 = vsel %vm654, %v642, 0.0
        %716 = vadd.xlane.f32.xlu0 %v715
        %v717 = vpop.xlane.xlu0 %716
        %v718 = vsel %vm654, %v643, 0.0
        %719 = vadd.xlane.f32.xlu0 %v718
        %v720 = vpop.xlane.xlu0 %719
        %v721 = vsel %vm654, %v644, 0.0
        %722 = vadd.xlane.f32.xlu0 %v721
        %v723 = vpop.xlane.xlu0 %722
        %v724 = vsel %vm654, %v645, 0.0
        %725 = vadd.xlane.f32.xlu0 %v724
        %v726 = vpop.xlane.xlu0 %725
        %v727 = vsel %vm654, %v646, 0.0
        %728 = vadd.xlane.f32.xlu0 %v727
        %v729 = vpop.xlane.xlu0 %728
        %v730 = vsel %vm654, %v647, 0.0
        %731 = vadd.xlane.f32.xlu0 %v730
        %v732 = vpop.xlane.xlu0 %731
        %v733 = vsel %vm654, %v648, 0.0
        %734 = vadd.xlane.f32.xlu0 %v733
        %v735 = vpop.xlane.xlu0 %734
        %v736 = vsel %vm654, %v649, 0.0
        %737 = vadd.xlane.f32.xlu0 %v736
        %v738 = vpop.xlane.xlu0 %737
        %v739 = vsel %vm654, %v650, 0.0
        %740 = vadd.xlane.f32.xlu0 %v739
        %v741 = vpop.xlane.xlu0 %740
        %v742 = vsel %vm654, %v651, 0.0
        %743 = vadd.xlane.f32.xlu0 %v742
        %v744 = vpop.xlane.xlu0 %743
        %v745 = vsel %vm654, %v652, 0.0
        %746 = vadd.xlane.f32.xlu0 %v745
        %v747 = vpop.xlane.xlu0 %746
        %v748 = vsel %vm654, %v653, 0.0
        %749 = vadd.xlane.f32.xlu0 %v748
        %v750 = vpop.xlane.xlu0 %749
        %v751 = vld [vmem:[%s3] sm:$0xff]
        %v752 = vld [vmem:[%s3 + $0x8] sm:$0xff]
        %v753 = vld [vmem:[%s3 + $0x10] sm:$0xff]
        %v754 = vld [vmem:[%s3 + $0x18] sm:$0xff]
        %v755 = vld [vmem:[%s3 + $0x20] sm:$0xff]
        %v756 = vld [vmem:[%s3 + $0x28] sm:$0xff]
        %v757 = vld [vmem:[%s3 + $0x30] sm:$0xff]
        %v758 = vld [vmem:[%s3 + $0x38] sm:$0xff]
        %v759 = vld [vmem:[%s3 + $0x40] sm:$0xff]
        %v760 = vld [vmem:[%s3 + $0x48] sm:$0xff]
        %v761 = vld [vmem:[%s3 + $0x50] sm:$0xff]
        %v762 = vld [vmem:[%s3 + $0x58] sm:$0xff]
        %v763 = vld [vmem:[%s3 + $0x60] sm:$0xff]
        %v764 = vld [vmem:[%s3 + $0x68] sm:$0xff]
        %v765 = vld [vmem:[%s3 + $0x70] sm:$0xff]
        %v766 = vld [vmem:[%s3 + $0x78] sm:$0xff]
        %v767 = vld [vmem:[%s3 + $0x80] sm:$0xff]
        %v768 = vld [vmem:[%s3 + $0x88] sm:$0xff]
        %v769 = vld [vmem:[%s3 + $0x90] sm:$0xff]
        %v770 = vld [vmem:[%s3 + $0x98] sm:$0xff]
        %v771 = vld [vmem:[%s3 + $0xa0] sm:$0xff]
        %v772 = vld [vmem:[%s3 + $0xa8] sm:$0xff]
        %v773 = vld [vmem:[%s3 + $0xb0] sm:$0xff]
        %v774 = vld [vmem:[%s3 + $0xb8] sm:$0xff]
        %v775 = vld [vmem:[%s3 + $0xc0] sm:$0xff]
        %v776 = vld [vmem:[%s3 + $0xc8] sm:$0xff]
        %v777 = vld [vmem:[%s3 + $0xd0] sm:$0xff]
        %v778 = vld [vmem:[%s3 + $0xd8] sm:$0xff]
        %v779 = vld [vmem:[%s3 + $0xe0] sm:$0xff]
        %v780 = vld [vmem:[%s3 + $0xe8] sm:$0xff]
        %v781 = vld [vmem:[%s3 + $0xf0] sm:$0xff]
        %v782 = vld [vmem:[%s3 + $0xf8] sm:$0xff]
        %v783 = vmul.f32 %v751, %v620
        %v784 = vmul.f32 %v752, %v620
        %v785 = vmul.f32 %v753, %v620
        %v786 = vmul.f32 %v754, %v620
        %v787 = vmul.f32 %v755, %v620
        %v788 = vmul.f32 %v756, %v620
        %v789 = vmul.f32 %v757, %v620
        %v790 = vmul.f32 %v758, %v620
        %v791 = vmul.f32 %v759, %v620
        %v792 = vmul.f32 %v760, %v620
        %v793 = vmul.f32 %v761, %v620
        %v794 = vmul.f32 %v762, %v620
        %v795 = vmul.f32 %v763, %v620
        %v796 = vmul.f32 %v764, %v620
        %v797 = vmul.f32 %v765, %v620
        %v798 = vmul.f32 %v766, %v620
        %v799 = vmul.f32 %v767, %v620
        %v800 = vmul.f32 %v768, %v620
        %v801 = vmul.f32 %v769, %v620
        %v802 = vmul.f32 %v770, %v620
        %v803 = vmul.f32 %v771, %v620
        %v804 = vmul.f32 %v772, %v620
        %v805 = vmul.f32 %v773, %v620
        %v806 = vmul.f32 %v774, %v620
        %v807 = vmul.f32 %v775, %v620
        %v808 = vmul.f32 %v776, %v620
        %v809 = vmul.f32 %v777, %v620
        %v810 = vmul.f32 %v778, %v620
        %v811 = vmul.f32 %v779, %v620
        %v812 = vmul.f32 %v780, %v620
        %v813 = vmul.f32 %v781, %v620
        %v814 = vmul.f32 %v782, %v620
        %v815 = vsel %vm654, %v783, 0.0
        %816 = vadd.xlane.f32.xlu0 %v815
        %v817 = vpop.xlane.xlu0 %816
        %v818 = vsel %vm654, %v784, 0.0
        %819 = vadd.xlane.f32.xlu0 %v818
        %v820 = vpop.xlane.xlu0 %819
        %v821 = vsel %vm654, %v785, 0.0
        %822 = vadd.xlane.f32.xlu0 %v821
        %v823 = vpop.xlane.xlu0 %822
        %v824 = vsel %vm654, %v786, 0.0
        %825 = vadd.xlane.f32.xlu0 %v824
        %v826 = vpop.xlane.xlu0 %825
        %v827 = vsel %vm654, %v787, 0.0
        %828 = vadd.xlane.f32.xlu0 %v827
        %v829 = vpop.xlane.xlu0 %828
        %v830 = vsel %vm654, %v788, 0.0
        %831 = vadd.xlane.f32.xlu0 %v830
        %v832 = vpop.xlane.xlu0 %831
        %v833 = vsel %vm654, %v789, 0.0
        %834 = vadd.xlane.f32.xlu0 %v833
        %v835 = vpop.xlane.xlu0 %834
        %v836 = vsel %vm654, %v790, 0.0
        %837 = vadd.xlane.f32.xlu0 %v836
        %v838 = vpop.xlane.xlu0 %837
        %v839 = vsel %vm654, %v791, 0.0
        %840 = vadd.xlane.f32.xlu0 %v839
        %v841 = vpop.xlane.xlu0 %840
        %v842 = vsel %vm654, %v792, 0.0
        %843 = vadd.xlane.f32.xlu0 %v842
        %v844 = vpop.xlane.xlu0 %843
        %v845 = vsel %vm654, %v793, 0.0
        %846 = vadd.xlane.f32.xlu0 %v845
        %v847 = vpop.xlane.xlu0 %846
        %v848 = vsel %vm654, %v794, 0.0
        %849 = vadd.xlane.f32.xlu0 %v848
        %v850 = vpop.xlane.xlu0 %849
        %v851 = vsel %vm654, %v795, 0.0
        %852 = vadd.xlane.f32.xlu0 %v851
        %v853 = vpop.xlane.xlu0 %852
        %v854 = vsel %vm654, %v796, 0.0
        %855 = vadd.xlane.f32.xlu0 %v854
        %v856 = vpop.xlane.xlu0 %855
        %v857 = vsel %vm654, %v797, 0.0
        %858 = vadd.xlane.f32.xlu0 %v857
        %v859 = vpop.xlane.xlu0 %858
        %v860 = vsel %vm654, %v798, 0.0
        %861 = vadd.xlane.f32.xlu0 %v860
        %v862 = vpop.xlane.xlu0 %861
        %v863 = vsel %vm654, %v799, 0.0
        %864 = vadd.xlane.f32.xlu0 %v863
        %v865 = vpop.xlane.xlu0 %864
        %v866 = vsel %vm654, %v800, 0.0
        %867 = vadd.xlane.f32.xlu0 %v866
        %v868 = vpop.xlane.xlu0 %867
        %v869 = vsel %vm654, %v801, 0.0
        %870 = vadd.xlane.f32.xlu0 %v869
        %v871 = vpop.xlane.xlu0 %870
        %v872 = vsel %vm654, %v802, 0.0
        %873 = vadd.xlane.f32.xlu0 %v872
        %v874 = vpop.xlane.xlu0 %873
        %v875 = vsel %vm654, %v803, 0.0
        %876 = vadd.xlane.f32.xlu0 %v875
        %v877 = vpop.xlane.xlu0 %876
        %v878 = vsel %vm654, %v804, 0.0
        %879 = vadd.xlane.f32.xlu0 %v878
        %v880 = vpop.xlane.xlu0 %879
        %v881 = vsel %vm654, %v805, 0.0
        %882 = vadd.xlane.f32.xlu0 %v881
        %v883 = vpop.xlane.xlu0 %882
        %v884 = vsel %vm654, %v806, 0.0
        %885 = vadd.xlane.f32.xlu0 %v884
        %v886 = vpop.xlane.xlu0 %885
        %v887 = vsel %vm654, %v807, 0.0
        %888 = vadd.xlane.f32.xlu0 %v887
        %v889 = vpop.xlane.xlu0 %888
        %v890 = vsel %vm654, %v808, 0.0
        %891 = vadd.xlane.f32.xlu0 %v890
        %v892 = vpop.xlane.xlu0 %891
        %v893 = vsel %vm654, %v809, 0.0
        %894 = vadd.xlane.f32.xlu0 %v893
        %v895 = vpop.xlane.xlu0 %894
        %v896 = vsel %vm654, %v810, 0.0
        %897 = vadd.xlane.f32.xlu0 %v896
        %v898 = vpop.xlane.xlu0 %897
        %v899 = vsel %vm654, %v811, 0.0
        %900 = vadd.xlane.f32.xlu0 %v899
        %v901 = vpop.xlane.xlu0 %900
        %v902 = vsel %vm654, %v812, 0.0
        %903 = vadd.xlane.f32.xlu0 %v902
        %v904 = vpop.xlane.xlu0 %903
        %v905 = vsel %vm654, %v813, 0.0
        %906 = vadd.xlane.f32.xlu0 %v905
        %v907 = vpop.xlane.xlu0 %906
        %v908 = vsel %vm654, %v814, 0.0
        %909 = vadd.xlane.f32.xlu0 %v908
        %v910 = vpop.xlane.xlu0 %909
        %v911 = vadd.f32 %v657, 1.0
        %v912 = vadd.f32 %v660, 1.0
        %v913 = vadd.f32 %v663, 1.0
        %v914 = vadd.f32 %v666, 1.0
        %v915 = vadd.f32 %v669, 1.0
        %v916 = vadd.f32 %v672, 1.0
        %v917 = vadd.f32 %v675, 1.0
        %v918 = vadd.f32 %v678, 1.0
        %v919 = vadd.f32 %v681, 1.0
        %v920 = vadd.f32 %v684, 1.0
        %v921 = vadd.f32 %v687, 1.0
        %v922 = vadd.f32 %v690, 1.0
        %v923 = vadd.f32 %v693, 1.0
        %v924 = vadd.f32 %v696, 1.0
        %v925 = vadd.f32 %v699, 1.0
        %v926 = vadd.f32 %v702, 1.0
        %v927 = vadd.f32 %v705, 1.0
        %v928 = vadd.f32 %v708, 1.0
        %v929 = vadd.f32 %v711, 1.0
        %v930 = vadd.f32 %v714, 1.0
        %v931 = vadd.f32 %v717, 1.0
        %v932 = vadd.f32 %v720, 1.0
        %v933 = vadd.f32 %v723, 1.0
        %v934 = vadd.f32 %v726, 1.0
        %v935 = vadd.f32 %v729, 1.0
        %v936 = vadd.f32 %v732, 1.0
        %v937 = vadd.f32 %v735, 1.0
        %v938 = vadd.f32 %v738, 1.0
        %v939 = vadd.f32 %v741, 1.0
        %v940 = vadd.f32 %v744, 1.0
        %v941 = vadd.f32 %v747, 1.0
        %v942 = vadd.f32 %v750, 1.0
        %v943 = vmul.f32 %v911, 8.0
        %v944 = vmul.f32 %v912, 8.0
        %v945 = vmul.f32 %v913, 8.0
        %v946 = vmul.f32 %v914, 8.0
        %v947 = vmul.f32 %v915, 8.0
        %v948 = vmul.f32 %v916, 8.0
        %v949 = vmul.f32 %v917, 8.0
        %v950 = vmul.f32 %v918, 8.0
        %v951 = vmul.f32 %v919, 8.0
        %v952 = vmul.f32 %v920, 8.0
        %v953 = vmul.f32 %v921, 8.0
        %v954 = vmul.f32 %v922, 8.0
        %v955 = vmul.f32 %v923, 8.0
        %v956 = vmul.f32 %v924, 8.0
        %v957 = vmul.f32 %v925, 8.0
        %v958 = vmul.f32 %v926, 8.0
        %v959 = vmul.f32 %v927, 8.0
        %v960 = vmul.f32 %v928, 8.0
        %v961 = vmul.f32 %v929, 8.0
        %v962 = vmul.f32 %v930, 8.0
        %v963 = vmul.f32 %v931, 8.0
        %v964 = vmul.f32 %v932, 8.0
        %v965 = vmul.f32 %v933, 8.0
        %v966 = vmul.f32 %v934, 8.0
        %v967 = vmul.f32 %v935, 8.0
        %v968 = vmul.f32 %v936, 8.0
        %v969 = vmul.f32 %v937, 8.0
        %v970 = vmul.f32 %v938, 8.0
        %v971 = vmul.f32 %v939, 8.0
        %v972 = vmul.f32 %v940, 8.0
        %v973 = vmul.f32 %v941, 8.0
        %v974 = vmul.f32 %v942, 8.0
        %v975 = vsub.f32 %v943, 1.0
        %v976 = vsub.f32 %v944, 1.0
        %v977 = vsub.f32 %v945, 1.0
        %v978 = vsub.f32 %v946, 1.0
        %v979 = vsub.f32 %v947, 1.0
        %v980 = vsub.f32 %v948, 1.0
        %v981 = vsub.f32 %v949, 1.0
        %v982 = vsub.f32 %v950, 1.0
        %v983 = vsub.f32 %v951, 1.0
        %v984 = vsub.f32 %v952, 1.0
        %v985 = vsub.f32 %v953, 1.0
        %v986 = vsub.f32 %v954, 1.0
        %v987 = vsub.f32 %v955, 1.0
        %v988 = vsub.f32 %v956, 1.0
        %v989 = vsub.f32 %v957, 1.0
        %v990 = vsub.f32 %v958, 1.0
        %v991 = vsub.f32 %v959, 1.0
        %v992 = vsub.f32 %v960, 1.0
        %v993 = vsub.f32 %v961, 1.0
        %v994 = vsub.f32 %v962, 1.0
        %v995 = vsub.f32 %v963, 1.0
        %v996 = vsub.f32 %v964, 1.0
        %v997 = vsub.f32 %v965, 1.0
        %v998 = vsub.f32 %v966, 1.0
        %v999 = vsub.f32 %v967, 1.0
        %v1000 = vsub.f32 %v968, 1.0
        %v1001 = vsub.f32 %v969, 1.0
        %v1002 = vsub.f32 %v970, 1.0
        %v1003 = vsub.f32 %v971, 1.0
        %v1004 = vsub.f32 %v972, 1.0
        %v1005 = vsub.f32 %v973, 1.0
        %v1006 = vsub.f32 %v974, 1.0
        %v1007 = vmul.f32 %v975, 0.5
        %v1008 = vmul.f32 %v976, 0.5
        %v1009 = vmul.f32 %v977, 0.5
        %v1010 = vmul.f32 %v978, 0.5
        %v1011 = vmul.f32 %v979, 0.5
        %v1012 = vmul.f32 %v980, 0.5
        %v1013 = vmul.f32 %v981, 0.5
        %v1014 = vmul.f32 %v982, 0.5
        %v1015 = vmul.f32 %v983, 0.5
        %v1016 = vmul.f32 %v984, 0.5
        %v1017 = vmul.f32 %v985, 0.5
        %v1018 = vmul.f32 %v986, 0.5
        %v1019 = vmul.f32 %v987, 0.5
        %v1020 = vmul.f32 %v988, 0.5
        %v1021 = vmul.f32 %v989, 0.5
        %v1022 = vmul.f32 %v990, 0.5
        %v1023 = vmul.f32 %v991, 0.5
        %v1024 = vmul.f32 %v992, 0.5
        %v1025 = vmul.f32 %v993, 0.5
        %v1026 = vmul.f32 %v994, 0.5
        %v1027 = vmul.f32 %v995, 0.5
        %v1028 = vmul.f32 %v996, 0.5
        %v1029 = vmul.f32 %v997, 0.5
        %v1030 = vmul.f32 %v998, 0.5
        %v1031 = vmul.f32 %v999, 0.5
        %v1032 = vmul.f32 %v1000, 0.5
        %v1033 = vmul.f32 %v1001, 0.5
        %v1034 = vmul.f32 %v1002, 0.5
        %v1035 = vmul.f32 %v1003, 0.5
        %v1036 = vmul.f32 %v1004, 0.5
        %v1037 = vmul.f32 %v1005, 0.5
        %v1038 = vmul.f32 %v1006, 0.5
        %v1039 = vadd.f32 %v817, 1.0
        %v1040 = vadd.f32 %v820, 1.0
        %v1041 = vadd.f32 %v823, 1.0
        %v1042 = vadd.f32 %v826, 1.0
        %v1043 = vadd.f32 %v829, 1.0
        %v1044 = vadd.f32 %v832, 1.0
        %v1045 = vadd.f32 %v835, 1.0
        %v1046 = vadd.f32 %v838, 1.0
        %v1047 = vadd.f32 %v841, 1.0
        %v1048 = vadd.f32 %v844, 1.0
        %v1049 = vadd.f32 %v847, 1.0
        %v1050 = vadd.f32 %v850, 1.0
        %v1051 = vadd.f32 %v853, 1.0
        %v1052 = vadd.f32 %v856, 1.0
        %v1053 = vadd.f32 %v859, 1.0
        %v1054 = vadd.f32 %v862, 1.0
        %v1055 = vadd.f32 %v865, 1.0
        %v1056 = vadd.f32 %v868, 1.0
        %v1057 = vadd.f32 %v871, 1.0
        %v1058 = vadd.f32 %v874, 1.0
        %v1059 = vadd.f32 %v877, 1.0
        %v1060 = vadd.f32 %v880, 1.0
        %v1061 = vadd.f32 %v883, 1.0
        %v1062 = vadd.f32 %v886, 1.0
        %v1063 = vadd.f32 %v889, 1.0
        %v1064 = vadd.f32 %v892, 1.0
        %v1065 = vadd.f32 %v895, 1.0
        %v1066 = vadd.f32 %v898, 1.0
        %v1067 = vadd.f32 %v901, 1.0
        %v1068 = vadd.f32 %v904, 1.0
        %v1069 = vadd.f32 %v907, 1.0
        %v1070 = vadd.f32 %v910, 1.0
        %v1071 = vmul.f32 %v1039, 8.0
        %v1072 = vmul.f32 %v1040, 8.0
        %v1073 = vmul.f32 %v1041, 8.0
        %v1074 = vmul.f32 %v1042, 8.0
        %v1075 = vmul.f32 %v1043, 8.0
        %v1076 = vmul.f32 %v1044, 8.0
        %v1077 = vmul.f32 %v1045, 8.0
        %v1078 = vmul.f32 %v1046, 8.0
        %v1079 = vmul.f32 %v1047, 8.0
        %v1080 = vmul.f32 %v1048, 8.0
        %v1081 = vmul.f32 %v1049, 8.0
        %v1082 = vmul.f32 %v1050, 8.0
        %v1083 = vmul.f32 %v1051, 8.0
        %v1084 = vmul.f32 %v1052, 8.0
        %v1085 = vmul.f32 %v1053, 8.0
        %v1086 = vmul.f32 %v1054, 8.0
        %v1087 = vmul.f32 %v1055, 8.0
        %v1088 = vmul.f32 %v1056, 8.0
        %v1089 = vmul.f32 %v1057, 8.0
        %v1090 = vmul.f32 %v1058, 8.0
        %v1091 = vmul.f32 %v1059, 8.0
        %v1092 = vmul.f32 %v1060, 8.0
        %v1093 = vmul.f32 %v1061, 8.0
        %v1094 = vmul.f32 %v1062, 8.0
        %v1095 = vmul.f32 %v1063, 8.0
        %v1096 = vmul.f32 %v1064, 8.0
        %v1097 = vmul.f32 %v1065, 8.0
        %v1098 = vmul.f32 %v1066, 8.0
        %v1099 = vmul.f32 %v1067, 8.0
        %v1100 = vmul.f32 %v1068, 8.0
        %v1101 = vmul.f32 %v1069, 8.0
        %v1102 = vmul.f32 %v1070, 8.0
        %v1103 = vsub.f32 %v1071, 1.0
        %v1104 = vsub.f32 %v1072, 1.0
        %v1105 = vsub.f32 %v1073, 1.0
        %v1106 = vsub.f32 %v1074, 1.0
        %v1107 = vsub.f32 %v1075, 1.0
        %v1108 = vsub.f32 %v1076, 1.0
        %v1109 = vsub.f32 %v1077, 1.0
        %v1110 = vsub.f32 %v1078, 1.0
        %v1111 = vsub.f32 %v1079, 1.0
        %v1112 = vsub.f32 %v1080, 1.0
        %v1113 = vsub.f32 %v1081, 1.0
        %v1114 = vsub.f32 %v1082, 1.0
        %v1115 = vsub.f32 %v1083, 1.0
        %v1116 = vsub.f32 %v1084, 1.0
        %v1117 = vsub.f32 %v1085, 1.0
        %v1118 = vsub.f32 %v1086, 1.0
        %v1119 = vsub.f32 %v1087, 1.0
        %v1120 = vsub.f32 %v1088, 1.0
        %v1121 = vsub.f32 %v1089, 1.0
        %v1122 = vsub.f32 %v1090, 1.0
        %v1123 = vsub.f32 %v1091, 1.0
        %v1124 = vsub.f32 %v1092, 1.0
        %v1125 = vsub.f32 %v1093, 1.0
        %v1126 = vsub.f32 %v1094, 1.0
        %v1127 = vsub.f32 %v1095, 1.0
        %v1128 = vsub.f32 %v1096, 1.0
        %v1129 = vsub.f32 %v1097, 1.0
        %v1130 = vsub.f32 %v1098, 1.0
        %v1131 = vsub.f32 %v1099, 1.0
        %v1132 = vsub.f32 %v1100, 1.0
        %v1133 = vsub.f32 %v1101, 1.0
        %v1134 = vsub.f32 %v1102, 1.0
        %v1135 = vmul.f32 %v1103, 0.5
        %v1136 = vmul.f32 %v1104, 0.5
        %v1137 = vmul.f32 %v1105, 0.5
        %v1138 = vmul.f32 %v1106, 0.5
        %v1139 = vmul.f32 %v1107, 0.5
        %v1140 = vmul.f32 %v1108, 0.5
        %v1141 = vmul.f32 %v1109, 0.5
        %v1142 = vmul.f32 %v1110, 0.5
        %v1143 = vmul.f32 %v1111, 0.5
        %v1144 = vmul.f32 %v1112, 0.5
        %v1145 = vmul.f32 %v1113, 0.5
        %v1146 = vmul.f32 %v1114, 0.5
        %v1147 = vmul.f32 %v1115, 0.5
        %v1148 = vmul.f32 %v1116, 0.5
        %v1149 = vmul.f32 %v1117, 0.5
        %v1150 = vmul.f32 %v1118, 0.5
        %v1151 = vmul.f32 %v1119, 0.5
        %v1152 = vmul.f32 %v1120, 0.5
        %v1153 = vmul.f32 %v1121, 0.5
        %v1154 = vmul.f32 %v1122, 0.5
        %v1155 = vmul.f32 %v1123, 0.5
        %v1156 = vmul.f32 %v1124, 0.5
        %v1157 = vmul.f32 %v1125, 0.5
        %v1158 = vmul.f32 %v1126, 0.5
        %v1159 = vmul.f32 %v1127, 0.5
        %v1160 = vmul.f32 %v1128, 0.5
        %v1161 = vmul.f32 %v1129, 0.5
        %v1162 = vmul.f32 %v1130, 0.5
        %v1163 = vmul.f32 %v1131, 0.5
        %v1164 = vmul.f32 %v1132, 0.5
        %v1165 = vmul.f32 %v1133, 0.5
        %v1166 = vmul.f32 %v1134, 0.5
        %v1167 = vfloor.f32 %v1007
        %v1168 = vfloor.f32 %v1008
        %v1169 = vfloor.f32 %v1009
        %v1170 = vfloor.f32 %v1010
        %v1171 = vfloor.f32 %v1011
        %v1172 = vfloor.f32 %v1012
        %v1173 = vfloor.f32 %v1013
        %v1174 = vfloor.f32 %v1014
        %v1175 = vfloor.f32 %v1015
        %v1176 = vfloor.f32 %v1016
        %v1177 = vfloor.f32 %v1017
        %v1178 = vfloor.f32 %v1018
        %v1179 = vfloor.f32 %v1019
        %v1180 = vfloor.f32 %v1020
        %v1181 = vfloor.f32 %v1021
        %v1182 = vfloor.f32 %v1022
        %v1183 = vfloor.f32 %v1023
        %v1184 = vfloor.f32 %v1024
        %v1185 = vfloor.f32 %v1025
        %v1186 = vfloor.f32 %v1026
        %v1187 = vfloor.f32 %v1027
        %v1188 = vfloor.f32 %v1028
        %v1189 = vfloor.f32 %v1029
        %v1190 = vfloor.f32 %v1030
        %v1191 = vfloor.f32 %v1031
        %v1192 = vfloor.f32 %v1032
        %v1193 = vfloor.f32 %v1033
        %v1194 = vfloor.f32 %v1034
        %v1195 = vfloor.f32 %v1035
        %v1196 = vfloor.f32 %v1036
        %v1197 = vfloor.f32 %v1037
        %v1198 = vfloor.f32 %v1038
        %v1199 = vfloor.f32 %v1135
        %v1200 = vfloor.f32 %v1136
        %v1201 = vfloor.f32 %v1137
        %v1202 = vfloor.f32 %v1138
        %v1203 = vfloor.f32 %v1139
        %v1204 = vfloor.f32 %v1140
        %v1205 = vfloor.f32 %v1141
        %v1206 = vfloor.f32 %v1142
        %v1207 = vfloor.f32 %v1143
        %v1208 = vfloor.f32 %v1144
        %v1209 = vfloor.f32 %v1145
        %v1210 = vfloor.f32 %v1146
        %v1211 = vfloor.f32 %v1147
        %v1212 = vfloor.f32 %v1148
        %v1213 = vfloor.f32 %v1149
        %v1214 = vfloor.f32 %v1150
        %v1215 = vfloor.f32 %v1151
        %v1216 = vfloor.f32 %v1152
        %v1217 = vfloor.f32 %v1153
        %v1218 = vfloor.f32 %v1154
        %v1219 = vfloor.f32 %v1155
        %v1220 = vfloor.f32 %v1156
        %v1221 = vfloor.f32 %v1157
        %v1222 = vfloor.f32 %v1158
        %v1223 = vfloor.f32 %v1159
        %v1224 = vfloor.f32 %v1160
        %v1225 = vfloor.f32 %v1161
        %v1226 = vfloor.f32 %v1162
        %v1227 = vfloor.f32 %v1163
        %v1228 = vfloor.f32 %v1164
        %v1229 = vfloor.f32 %v1165
        %v1230 = vfloor.f32 %v1166
        %v1231 = vsub.f32 %v1007, %v1167
        %v1232 = vsub.f32 %v1008, %v1168
        %v1233 = vsub.f32 %v1009, %v1169
        %v1234 = vsub.f32 %v1010, %v1170
        %v1235 = vsub.f32 %v1011, %v1171
        %v1236 = vsub.f32 %v1012, %v1172
        %v1237 = vsub.f32 %v1013, %v1173
        %v1238 = vsub.f32 %v1014, %v1174
        %v1239 = vsub.f32 %v1015, %v1175
        %v1240 = vsub.f32 %v1016, %v1176
        %v1241 = vsub.f32 %v1017, %v1177
        %v1242 = vsub.f32 %v1018, %v1178
        %v1243 = vsub.f32 %v1019, %v1179
        %v1244 = vsub.f32 %v1020, %v1180
        %v1245 = vsub.f32 %v1021, %v1181
        %v1246 = vsub.f32 %v1022, %v1182
        %v1247 = vsub.f32 %v1023, %v1183
        %v1248 = vsub.f32 %v1024, %v1184
        %v1249 = vsub.f32 %v1025, %v1185
        %v1250 = vsub.f32 %v1026, %v1186
        %v1251 = vsub.f32 %v1027, %v1187
        %v1252 = vsub.f32 %v1028, %v1188
        %v1253 = vsub.f32 %v1029, %v1189
        %v1254 = vsub.f32 %v1030, %v1190
        %v1255 = vsub.f32 %v1031, %v1191
        %v1256 = vsub.f32 %v1032, %v1192
        %v1257 = vsub.f32 %v1033, %v1193
        %v1258 = vsub.f32 %v1034, %v1194
        %v1259 = vsub.f32 %v1035, %v1195
        %v1260 = vsub.f32 %v1036, %v1196
        %v1261 = vsub.f32 %v1037, %v1197
        %v1262 = vsub.f32 %v1038, %v1198
        %v1263 = vsub.f32 %v1135, %v1199
        %v1264 = vsub.f32 %v1136, %v1200
        %v1265 = vsub.f32 %v1137, %v1201
        %v1266 = vsub.f32 %v1138, %v1202
        %v1267 = vsub.f32 %v1139, %v1203
        %v1268 = vsub.f32 %v1140, %v1204
        %v1269 = vsub.f32 %v1141, %v1205
        %v1270 = vsub.f32 %v1142, %v1206
        %v1271 = vsub.f32 %v1143, %v1207
        %v1272 = vsub.f32 %v1144, %v1208
        %v1273 = vsub.f32 %v1145, %v1209
        %v1274 = vsub.f32 %v1146, %v1210
        %v1275 = vsub.f32 %v1147, %v1211
        %v1276 = vsub.f32 %v1148, %v1212
        %v1277 = vsub.f32 %v1149, %v1213
        %v1278 = vsub.f32 %v1150, %v1214
        %v1279 = vsub.f32 %v1151, %v1215
        %v1280 = vsub.f32 %v1152, %v1216
        %v1281 = vsub.f32 %v1153, %v1217
        %v1282 = vsub.f32 %v1154, %v1218
        %v1283 = vsub.f32 %v1155, %v1219
        %v1284 = vsub.f32 %v1156, %v1220
        %v1285 = vsub.f32 %v1157, %v1221
        %v1286 = vsub.f32 %v1158, %v1222
        %v1287 = vsub.f32 %v1159, %v1223
        %v1288 = vsub.f32 %v1160, %v1224
        %v1289 = vsub.f32 %v1161, %v1225
        %v1290 = vsub.f32 %v1162, %v1226
        %v1291 = vsub.f32 %v1163, %v1227
        %v1292 = vsub.f32 %v1164, %v1228
        %v1293 = vsub.f32 %v1165, %v1229
        %v1294 = vsub.f32 %v1166, %v1230
        %v1295 = vld [vmem:[%s4] sm:$0xff]
        %v1296 = vld [vmem:[%s4 + $0x8] sm:$0xff]
        %v1297 = vld [vmem:[%s4 + $0x10] sm:$0xff]
        %v1298 = vld [vmem:[%s4 + $0x18] sm:$0xff]
        %v1299 = vld [vmem:[%s4 + $0x20] sm:$0xff]
        %v1300 = vld [vmem:[%s4 + $0x28] sm:$0xff]
        %v1301 = vld [vmem:[%s4 + $0x30] sm:$0xff]
        %v1302 = vld [vmem:[%s4 + $0x38] sm:$0xff]
        %v1303 = vld [vmem:[%s4 + $0x40] sm:$0xff]
        %v1304 = vld [vmem:[%s4 + $0x48] sm:$0xff]
        %v1305 = vld [vmem:[%s4 + $0x50] sm:$0xff]
        %v1306 = vld [vmem:[%s4 + $0x58] sm:$0xff]
        %v1307 = vld [vmem:[%s4 + $0x60] sm:$0xff]
        %v1308 = vld [vmem:[%s4 + $0x68] sm:$0xff]
        %v1309 = vld [vmem:[%s4 + $0x70] sm:$0xff]
        %v1310 = vld [vmem:[%s4 + $0x78] sm:$0xff]
        %v1311 = vld [vmem:[%s4 + $0x80] sm:$0xff]
        %v1312 = vld [vmem:[%s4 + $0x88] sm:$0xff]
        %v1313 = vld [vmem:[%s4 + $0x90] sm:$0xff]
        %v1314 = vld [vmem:[%s4 + $0x98] sm:$0xff]
        %v1315 = vld [vmem:[%s4 + $0xa0] sm:$0xff]
        %v1316 = vld [vmem:[%s4 + $0xa8] sm:$0xff]
        %v1317 = vld [vmem:[%s4 + $0xb0] sm:$0xff]
        %v1318 = vld [vmem:[%s4 + $0xb8] sm:$0xff]
        %v1319 = vld [vmem:[%s4 + $0xc0] sm:$0xff]
        %v1320 = vld [vmem:[%s4 + $0xc8] sm:$0xff]
        %v1321 = vld [vmem:[%s4 + $0xd0] sm:$0xff]
        %v1322 = vld [vmem:[%s4 + $0xd8] sm:$0xff]
        %v1323 = vld [vmem:[%s4 + $0xe0] sm:$0xff]
        %v1324 = vld [vmem:[%s4 + $0xe8] sm:$0xff]
        %v1325 = vld [vmem:[%s4 + $0xf0] sm:$0xff]
        %v1326 = vld [vmem:[%s4 + $0xf8] sm:$0xff]
        %vm1327 = vcmp.eq.f32.partialorder %v1295, %v1199
        %vm1328 = vcmp.eq.f32.partialorder %v1296, %v1200
        %vm1329 = vcmp.eq.f32.partialorder %v1297, %v1201
        %vm1330 = vcmp.eq.f32.partialorder %v1298, %v1202
        %vm1331 = vcmp.eq.f32.partialorder %v1299, %v1203
        %vm1332 = vcmp.eq.f32.partialorder %v1300, %v1204
        %vm1333 = vcmp.eq.f32.partialorder %v1301, %v1205
        %vm1334 = vcmp.eq.f32.partialorder %v1302, %v1206
        %vm1335 = vcmp.eq.f32.partialorder %v1303, %v1207
        %vm1336 = vcmp.eq.f32.partialorder %v1304, %v1208
        %vm1337 = vcmp.eq.f32.partialorder %v1305, %v1209
        %vm1338 = vcmp.eq.f32.partialorder %v1306, %v1210
        %vm1339 = vcmp.eq.f32.partialorder %v1307, %v1211
        %vm1340 = vcmp.eq.f32.partialorder %v1308, %v1212
        %vm1341 = vcmp.eq.f32.partialorder %v1309, %v1213
        %vm1342 = vcmp.eq.f32.partialorder %v1310, %v1214
        %vm1343 = vcmp.eq.f32.partialorder %v1311, %v1215
        %vm1344 = vcmp.eq.f32.partialorder %v1312, %v1216
        %vm1345 = vcmp.eq.f32.partialorder %v1313, %v1217
        %vm1346 = vcmp.eq.f32.partialorder %v1314, %v1218
        %vm1347 = vcmp.eq.f32.partialorder %v1315, %v1219
        %vm1348 = vcmp.eq.f32.partialorder %v1316, %v1220
        %vm1349 = vcmp.eq.f32.partialorder %v1317, %v1221
        %vm1350 = vcmp.eq.f32.partialorder %v1318, %v1222
        %vm1351 = vcmp.eq.f32.partialorder %v1319, %v1223
        %vm1352 = vcmp.eq.f32.partialorder %v1320, %v1224
        %vm1353 = vcmp.eq.f32.partialorder %v1321, %v1225
        %vm1354 = vcmp.eq.f32.partialorder %v1322, %v1226
        %vm1355 = vcmp.eq.f32.partialorder %v1323, %v1227
        %vm1356 = vcmp.eq.f32.partialorder %v1324, %v1228
        %vm1357 = vcmp.eq.f32.partialorder %v1325, %v1229
        %vm1358 = vcmp.eq.f32.partialorder %v1326, %v1230
        %v1359 = vsub.f32 1.0, %v1263
        %v1360 = vsub.f32 1.0, %v1264
        %v1361 = vsub.f32 1.0, %v1265
        %v1362 = vsub.f32 1.0, %v1266
        %v1363 = vsub.f32 1.0, %v1267
        %v1364 = vsub.f32 1.0, %v1268
        %v1365 = vsub.f32 1.0, %v1269
        %v1366 = vsub.f32 1.0, %v1270
        %v1367 = vsub.f32 1.0, %v1271
        %v1368 = vsub.f32 1.0, %v1272
        %v1369 = vsub.f32 1.0, %v1273
        %v1370 = vsub.f32 1.0, %v1274
        %v1371 = vsub.f32 1.0, %v1275
        %v1372 = vsub.f32 1.0, %v1276
        %v1373 = vsub.f32 1.0, %v1277
        %v1374 = vsub.f32 1.0, %v1278
        %v1375 = vsub.f32 1.0, %v1279
        %v1376 = vsub.f32 1.0, %v1280
        %v1377 = vsub.f32 1.0, %v1281
        %v1378 = vsub.f32 1.0, %v1282
        %v1379 = vsub.f32 1.0, %v1283
        %v1380 = vsub.f32 1.0, %v1284
        %v1381 = vsub.f32 1.0, %v1285
        %v1382 = vsub.f32 1.0, %v1286
        %v1383 = vsub.f32 1.0, %v1287
        %v1384 = vsub.f32 1.0, %v1288
        %v1385 = vsub.f32 1.0, %v1289
        %v1386 = vsub.f32 1.0, %v1290
        %v1387 = vsub.f32 1.0, %v1291
        %v1388 = vsub.f32 1.0, %v1292
        %v1389 = vsub.f32 1.0, %v1293
        %v1390 = vsub.f32 1.0, %v1294
        %v1391 = vsel %vm1327, %v1359, 0.0
        %v1392 = vsel %vm1328, %v1360, 0.0
        %v1393 = vsel %vm1329, %v1361, 0.0
        %v1394 = vsel %vm1330, %v1362, 0.0
        %v1395 = vsel %vm1331, %v1363, 0.0
        %v1396 = vsel %vm1332, %v1364, 0.0
        %v1397 = vsel %vm1333, %v1365, 0.0
        %v1398 = vsel %vm1334, %v1366, 0.0
        %v1399 = vsel %vm1335, %v1367, 0.0
        %v1400 = vsel %vm1336, %v1368, 0.0
        %v1401 = vsel %vm1337, %v1369, 0.0
        %v1402 = vsel %vm1338, %v1370, 0.0
        %v1403 = vsel %vm1339, %v1371, 0.0
        %v1404 = vsel %vm1340, %v1372, 0.0
        %v1405 = vsel %vm1341, %v1373, 0.0
        %v1406 = vsel %vm1342, %v1374, 0.0
        %v1407 = vsel %vm1343, %v1375, 0.0
        %v1408 = vsel %vm1344, %v1376, 0.0
        %v1409 = vsel %vm1345, %v1377, 0.0
        %v1410 = vsel %vm1346, %v1378, 0.0
        %v1411 = vsel %vm1347, %v1379, 0.0
        %v1412 = vsel %vm1348, %v1380, 0.0
        %v1413 = vsel %vm1349, %v1381, 0.0
        %v1414 = vsel %vm1350, %v1382, 0.0
        %v1415 = vsel %vm1351, %v1383, 0.0
        %v1416 = vsel %vm1352, %v1384, 0.0
        %v1417 = vsel %vm1353, %v1385, 0.0
        %v1418 = vsel %vm1354, %v1386, 0.0
        %v1419 = vsel %vm1355, %v1387, 0.0
        %v1420 = vsel %vm1356, %v1388, 0.0
        %v1421 = vsel %vm1357, %v1389, 0.0
        %v1422 = vsel %vm1358, %v1390, 0.0
        %v1423 = vadd.f32 %v1199, 1.0
        %v1424 = vadd.f32 %v1200, 1.0
        %v1425 = vadd.f32 %v1201, 1.0
        %v1426 = vadd.f32 %v1202, 1.0
        %v1427 = vadd.f32 %v1203, 1.0
        %v1428 = vadd.f32 %v1204, 1.0
        %v1429 = vadd.f32 %v1205, 1.0
        %v1430 = vadd.f32 %v1206, 1.0
        %v1431 = vadd.f32 %v1207, 1.0
        %v1432 = vadd.f32 %v1208, 1.0
        %v1433 = vadd.f32 %v1209, 1.0
        %v1434 = vadd.f32 %v1210, 1.0
        %v1435 = vadd.f32 %v1211, 1.0
        %v1436 = vadd.f32 %v1212, 1.0
        %v1437 = vadd.f32 %v1213, 1.0
        %v1438 = vadd.f32 %v1214, 1.0
        %v1439 = vadd.f32 %v1215, 1.0
        %v1440 = vadd.f32 %v1216, 1.0
        %v1441 = vadd.f32 %v1217, 1.0
        %v1442 = vadd.f32 %v1218, 1.0
        %v1443 = vadd.f32 %v1219, 1.0
        %v1444 = vadd.f32 %v1220, 1.0
        %v1445 = vadd.f32 %v1221, 1.0
        %v1446 = vadd.f32 %v1222, 1.0
        %v1447 = vadd.f32 %v1223, 1.0
        %v1448 = vadd.f32 %v1224, 1.0
        %v1449 = vadd.f32 %v1225, 1.0
        %v1450 = vadd.f32 %v1226, 1.0
        %v1451 = vadd.f32 %v1227, 1.0
        %v1452 = vadd.f32 %v1228, 1.0
        %v1453 = vadd.f32 %v1229, 1.0
        %v1454 = vadd.f32 %v1230, 1.0
        %vm1455 = vcmp.eq.f32.partialorder %v1295, %v1423
        %vm1456 = vcmp.eq.f32.partialorder %v1296, %v1424
        %vm1457 = vcmp.eq.f32.partialorder %v1297, %v1425
        %vm1458 = vcmp.eq.f32.partialorder %v1298, %v1426
        %vm1459 = vcmp.eq.f32.partialorder %v1299, %v1427
        %vm1460 = vcmp.eq.f32.partialorder %v1300, %v1428
        %vm1461 = vcmp.eq.f32.partialorder %v1301, %v1429
        %vm1462 = vcmp.eq.f32.partialorder %v1302, %v1430
        %vm1463 = vcmp.eq.f32.partialorder %v1303, %v1431
        %vm1464 = vcmp.eq.f32.partialorder %v1304, %v1432
        %vm1465 = vcmp.eq.f32.partialorder %v1305, %v1433
        %vm1466 = vcmp.eq.f32.partialorder %v1306, %v1434
        %vm1467 = vcmp.eq.f32.partialorder %v1307, %v1435
        %vm1468 = vcmp.eq.f32.partialorder %v1308, %v1436
        %vm1469 = vcmp.eq.f32.partialorder %v1309, %v1437
        %vm1470 = vcmp.eq.f32.partialorder %v1310, %v1438
        %vm1471 = vcmp.eq.f32.partialorder %v1311, %v1439
        %vm1472 = vcmp.eq.f32.partialorder %v1312, %v1440
        %vm1473 = vcmp.eq.f32.partialorder %v1313, %v1441
        %vm1474 = vcmp.eq.f32.partialorder %v1314, %v1442
        %vm1475 = vcmp.eq.f32.partialorder %v1315, %v1443
        %vm1476 = vcmp.eq.f32.partialorder %v1316, %v1444
        %vm1477 = vcmp.eq.f32.partialorder %v1317, %v1445
        %vm1478 = vcmp.eq.f32.partialorder %v1318, %v1446
        %vm1479 = vcmp.eq.f32.partialorder %v1319, %v1447
        %vm1480 = vcmp.eq.f32.partialorder %v1320, %v1448
        %vm1481 = vcmp.eq.f32.partialorder %v1321, %v1449
        %vm1482 = vcmp.eq.f32.partialorder %v1322, %v1450
        %vm1483 = vcmp.eq.f32.partialorder %v1323, %v1451
        %vm1484 = vcmp.eq.f32.partialorder %v1324, %v1452
        %vm1485 = vcmp.eq.f32.partialorder %v1325, %v1453
        %vm1486 = vcmp.eq.f32.partialorder %v1326, %v1454
        %v1487 = vsel %vm1455, %v1263, 0.0
        %v1488 = vsel %vm1456, %v1264, 0.0
        %v1489 = vsel %vm1457, %v1265, 0.0
        %v1490 = vsel %vm1458, %v1266, 0.0
        %v1491 = vsel %vm1459, %v1267, 0.0
        %v1492 = vsel %vm1460, %v1268, 0.0
        %v1493 = vsel %vm1461, %v1269, 0.0
        %v1494 = vsel %vm1462, %v1270, 0.0
        %v1495 = vsel %vm1463, %v1271, 0.0
        %v1496 = vsel %vm1464, %v1272, 0.0
        %v1497 = vsel %vm1465, %v1273, 0.0
        %v1498 = vsel %vm1466, %v1274, 0.0
        %v1499 = vsel %vm1467, %v1275, 0.0
        %v1500 = vsel %vm1468, %v1276, 0.0
        %v1501 = vsel %vm1469, %v1277, 0.0
        %v1502 = vsel %vm1470, %v1278, 0.0
        %v1503 = vsel %vm1471, %v1279, 0.0
        %v1504 = vsel %vm1472, %v1280, 0.0
        %v1505 = vsel %vm1473, %v1281, 0.0
        %v1506 = vsel %vm1474, %v1282, 0.0
        %v1507 = vsel %vm1475, %v1283, 0.0
        %v1508 = vsel %vm1476, %v1284, 0.0
        %v1509 = vsel %vm1477, %v1285, 0.0
        %v1510 = vsel %vm1478, %v1286, 0.0
        %v1511 = vsel %vm1479, %v1287, 0.0
        %v1512 = vsel %vm1480, %v1288, 0.0
        %v1513 = vsel %vm1481, %v1289, 0.0
        %v1514 = vsel %vm1482, %v1290, 0.0
        %v1515 = vsel %vm1483, %v1291, 0.0
        %v1516 = vsel %vm1484, %v1292, 0.0
        %v1517 = vsel %vm1485, %v1293, 0.0
        %v1518 = vsel %vm1486, %v1294, 0.0
        %v1519 = vadd.f32 %v1391, %v1487
        %v1520 = vadd.f32 %v1392, %v1488
        %v1521 = vadd.f32 %v1393, %v1489
        %v1522 = vadd.f32 %v1394, %v1490
        %v1523 = vadd.f32 %v1395, %v1491
        %v1524 = vadd.f32 %v1396, %v1492
        %v1525 = vadd.f32 %v1397, %v1493
        %v1526 = vadd.f32 %v1398, %v1494
        %v1527 = vadd.f32 %v1399, %v1495
        %v1528 = vadd.f32 %v1400, %v1496
        %v1529 = vadd.f32 %v1401, %v1497
        %v1530 = vadd.f32 %v1402, %v1498
        %v1531 = vadd.f32 %v1403, %v1499
        %v1532 = vadd.f32 %v1404, %v1500
        %v1533 = vadd.f32 %v1405, %v1501
        %v1534 = vadd.f32 %v1406, %v1502
        %v1535 = vadd.f32 %v1407, %v1503
        %v1536 = vadd.f32 %v1408, %v1504
        %v1537 = vadd.f32 %v1409, %v1505
        %v1538 = vadd.f32 %v1410, %v1506
        %v1539 = vadd.f32 %v1411, %v1507
        %v1540 = vadd.f32 %v1412, %v1508
        %v1541 = vadd.f32 %v1413, %v1509
        %v1542 = vadd.f32 %v1414, %v1510
        %v1543 = vadd.f32 %v1415, %v1511
        %v1544 = vadd.f32 %v1416, %v1512
        %v1545 = vadd.f32 %v1417, %v1513
        %v1546 = vadd.f32 %v1418, %v1514
        %v1547 = vadd.f32 %v1419, %v1515
        %v1548 = vadd.f32 %v1420, %v1516
        %v1549 = vadd.f32 %v1421, %v1517
        %v1550 = vadd.f32 %v1422, %v1518
        %v1551 = vld [vmem:[#allocation2] sm:$0xff]
        %v1552 = vld [vmem:[#allocation2 + $0x8] sm:$0xff]
        %v1553 = vld [vmem:[#allocation2 + $0x10] sm:$0xff]
        %v1554 = vld [vmem:[#allocation2 + $0x18] sm:$0xff]
        %v1555 = vld [vmem:[#allocation2 + $0x20] sm:$0xff]
        %v1556 = vld [vmem:[#allocation2 + $0x28] sm:$0xff]
        %v1557 = vld [vmem:[#allocation2 + $0x30] sm:$0xff]
        %v1558 = vld [vmem:[#allocation2 + $0x38] sm:$0xff]
        %v1559 = vld [vmem:[#allocation2 + $0x40] sm:$0xff]
        %v1560 = vld [vmem:[#allocation2 + $0x48] sm:$0xff]
        %v1561 = vld [vmem:[#allocation2 + $0x50] sm:$0xff]
        %v1562 = vld [vmem:[#allocation2 + $0x58] sm:$0xff]
        %v1563 = vld [vmem:[#allocation2 + $0x60] sm:$0xff]
        %v1564 = vld [vmem:[#allocation2 + $0x68] sm:$0xff]
        %v1565 = vld [vmem:[#allocation2 + $0x70] sm:$0xff]
        %v1566 = vld [vmem:[#allocation2 + $0x78] sm:$0xff]
        %v1567 = vld [vmem:[#allocation2 + $0x80] sm:$0xff]
        %v1568 = vld [vmem:[#allocation2 + $0x88] sm:$0xff]
        %v1569 = vld [vmem:[#allocation2 + $0x90] sm:$0xff]
        %v1570 = vld [vmem:[#allocation2 + $0x98] sm:$0xff]
        %v1571 = vld [vmem:[#allocation2 + $0xa0] sm:$0xff]
        %v1572 = vld [vmem:[#allocation2 + $0xa8] sm:$0xff]
        %v1573 = vld [vmem:[#allocation2 + $0xb0] sm:$0xff]
        %v1574 = vld [vmem:[#allocation2 + $0xb8] sm:$0xff]
        %v1575 = vld [vmem:[#allocation2 + $0xc0] sm:$0xff]
        %v1576 = vld [vmem:[#allocation2 + $0xc8] sm:$0xff]
        %v1577 = vld [vmem:[#allocation2 + $0xd0] sm:$0xff]
        %v1578 = vld [vmem:[#allocation2 + $0xd8] sm:$0xff]
        %v1579 = vld [vmem:[#allocation2 + $0xe0] sm:$0xff]
        %v1580 = vld [vmem:[#allocation2 + $0xe8] sm:$0xff]
        %v1581 = vld [vmem:[#allocation2 + $0xf0] sm:$0xff]
        %v1582 = vld [vmem:[#allocation2 + $0xf8] sm:$0xff]
        %vm1583 = vcmp.eq.f32.partialorder %v1551, %v1167
        %vm1584 = vcmp.eq.f32.partialorder %v1552, %v1168
        %vm1585 = vcmp.eq.f32.partialorder %v1553, %v1169
        %vm1586 = vcmp.eq.f32.partialorder %v1554, %v1170
        %vm1587 = vcmp.eq.f32.partialorder %v1555, %v1171
        %vm1588 = vcmp.eq.f32.partialorder %v1556, %v1172
        %vm1589 = vcmp.eq.f32.partialorder %v1557, %v1173
        %vm1590 = vcmp.eq.f32.partialorder %v1558, %v1174
        %vm1591 = vcmp.eq.f32.partialorder %v1559, %v1175
        %vm1592 = vcmp.eq.f32.partialorder %v1560, %v1176
        %vm1593 = vcmp.eq.f32.partialorder %v1561, %v1177
        %vm1594 = vcmp.eq.f32.partialorder %v1562, %v1178
        %vm1595 = vcmp.eq.f32.partialorder %v1563, %v1179
        %vm1596 = vcmp.eq.f32.partialorder %v1564, %v1180
        %vm1597 = vcmp.eq.f32.partialorder %v1565, %v1181
        %vm1598 = vcmp.eq.f32.partialorder %v1566, %v1182
        %vm1599 = vcmp.eq.f32.partialorder %v1567, %v1183
        %vm1600 = vcmp.eq.f32.partialorder %v1568, %v1184
        %vm1601 = vcmp.eq.f32.partialorder %v1569, %v1185
        %vm1602 = vcmp.eq.f32.partialorder %v1570, %v1186
        %vm1603 = vcmp.eq.f32.partialorder %v1571, %v1187
        %vm1604 = vcmp.eq.f32.partialorder %v1572, %v1188
        %vm1605 = vcmp.eq.f32.partialorder %v1573, %v1189
        %vm1606 = vcmp.eq.f32.partialorder %v1574, %v1190
        %vm1607 = vcmp.eq.f32.partialorder %v1575, %v1191
        %vm1608 = vcmp.eq.f32.partialorder %v1576, %v1192
        %vm1609 = vcmp.eq.f32.partialorder %v1577, %v1193
        %vm1610 = vcmp.eq.f32.partialorder %v1578, %v1194
        %vm1611 = vcmp.eq.f32.partialorder %v1579, %v1195
        %vm1612 = vcmp.eq.f32.partialorder %v1580, %v1196
        %vm1613 = vcmp.eq.f32.partialorder %v1581, %v1197
        %vm1614 = vcmp.eq.f32.partialorder %v1582, %v1198
        %v1615 = vsub.f32 1.0, %v1231
        %v1616 = vsub.f32 1.0, %v1232
        %v1617 = vsub.f32 1.0, %v1233
        %v1618 = vsub.f32 1.0, %v1234
        %v1619 = vsub.f32 1.0, %v1235
        %v1620 = vsub.f32 1.0, %v1236
        %v1621 = vsub.f32 1.0, %v1237
        %v1622 = vsub.f32 1.0, %v1238
        %v1623 = vsub.f32 1.0, %v1239
        %v1624 = vsub.f32 1.0, %v1240
        %v1625 = vsub.f32 1.0, %v1241
        %v1626 = vsub.f32 1.0, %v1242
        %v1627 = vsub.f32 1.0, %v1243
        %v1628 = vsub.f32 1.0, %v1244
        %v1629 = vsub.f32 1.0, %v1245
        %v1630 = vsub.f32 1.0, %v1246
        %v1631 = vsub.f32 1.0, %v1247
        %v1632 = vsub.f32 1.0, %v1248
        %v1633 = vsub.f32 1.0, %v1249
        %v1634 = vsub.f32 1.0, %v1250
        %v1635 = vsub.f32 1.0, %v1251
        %v1636 = vsub.f32 1.0, %v1252
        %v1637 = vsub.f32 1.0, %v1253
        %v1638 = vsub.f32 1.0, %v1254
        %v1639 = vsub.f32 1.0, %v1255
        %v1640 = vsub.f32 1.0, %v1256
        %v1641 = vsub.f32 1.0, %v1257
        %v1642 = vsub.f32 1.0, %v1258
        %v1643 = vsub.f32 1.0, %v1259
        %v1644 = vsub.f32 1.0, %v1260
        %v1645 = vsub.f32 1.0, %v1261
        %v1646 = vsub.f32 1.0, %v1262
        %v1647 = vsel %vm1583, %v1615, 0.0
        %v1648 = vsel %vm1584, %v1616, 0.0
        %v1649 = vsel %vm1585, %v1617, 0.0
        %v1650 = vsel %vm1586, %v1618, 0.0
        %v1651 = vsel %vm1587, %v1619, 0.0
        %v1652 = vsel %vm1588, %v1620, 0.0
        %v1653 = vsel %vm1589, %v1621, 0.0
        %v1654 = vsel %vm1590, %v1622, 0.0
        %v1655 = vsel %vm1591, %v1623, 0.0
        %v1656 = vsel %vm1592, %v1624, 0.0
        %v1657 = vsel %vm1593, %v1625, 0.0
        %v1658 = vsel %vm1594, %v1626, 0.0
        %v1659 = vsel %vm1595, %v1627, 0.0
        %v1660 = vsel %vm1596, %v1628, 0.0
        %v1661 = vsel %vm1597, %v1629, 0.0
        %v1662 = vsel %vm1598, %v1630, 0.0
        %v1663 = vsel %vm1599, %v1631, 0.0
        %v1664 = vsel %vm1600, %v1632, 0.0
        %v1665 = vsel %vm1601, %v1633, 0.0
        %v1666 = vsel %vm1602, %v1634, 0.0
        %v1667 = vsel %vm1603, %v1635, 0.0
        %v1668 = vsel %vm1604, %v1636, 0.0
        %v1669 = vsel %vm1605, %v1637, 0.0
        %v1670 = vsel %vm1606, %v1638, 0.0
        %v1671 = vsel %vm1607, %v1639, 0.0
        %v1672 = vsel %vm1608, %v1640, 0.0
        %v1673 = vsel %vm1609, %v1641, 0.0
        %v1674 = vsel %vm1610, %v1642, 0.0
        %v1675 = vsel %vm1611, %v1643, 0.0
        %v1676 = vsel %vm1612, %v1644, 0.0
        %v1677 = vsel %vm1613, %v1645, 0.0
        %v1678 = vsel %vm1614, %v1646, 0.0
        %v1679 = vadd.f32 %v1167, 1.0
        %v1680 = vadd.f32 %v1168, 1.0
        %v1681 = vadd.f32 %v1169, 1.0
        %v1682 = vadd.f32 %v1170, 1.0
        %v1683 = vadd.f32 %v1171, 1.0
        %v1684 = vadd.f32 %v1172, 1.0
        %v1685 = vadd.f32 %v1173, 1.0
        %v1686 = vadd.f32 %v1174, 1.0
        %v1687 = vadd.f32 %v1175, 1.0
        %v1688 = vadd.f32 %v1176, 1.0
        %v1689 = vadd.f32 %v1177, 1.0
        %v1690 = vadd.f32 %v1178, 1.0
        %v1691 = vadd.f32 %v1179, 1.0
        %v1692 = vadd.f32 %v1180, 1.0
        %v1693 = vadd.f32 %v1181, 1.0
        %v1694 = vadd.f32 %v1182, 1.0
        %v1695 = vadd.f32 %v1183, 1.0
        %v1696 = vadd.f32 %v1184, 1.0
        %v1697 = vadd.f32 %v1185, 1.0
        %v1698 = vadd.f32 %v1186, 1.0
        %v1699 = vadd.f32 %v1187, 1.0
        %v1700 = vadd.f32 %v1188, 1.0
        %v1701 = vadd.f32 %v1189, 1.0
        %v1702 = vadd.f32 %v1190, 1.0
        %v1703 = vadd.f32 %v1191, 1.0
        %v1704 = vadd.f32 %v1192, 1.0
        %v1705 = vadd.f32 %v1193, 1.0
        %v1706 = vadd.f32 %v1194, 1.0
        %v1707 = vadd.f32 %v1195, 1.0
        %v1708 = vadd.f32 %v1196, 1.0
        %v1709 = vadd.f32 %v1197, 1.0
        %v1710 = vadd.f32 %v1198, 1.0
        %vm1711 = vcmp.eq.f32.partialorder %v1551, %v1679
        %vm1712 = vcmp.eq.f32.partialorder %v1552, %v1680
        %vm1713 = vcmp.eq.f32.partialorder %v1553, %v1681
        %vm1714 = vcmp.eq.f32.partialorder %v1554, %v1682
        %vm1715 = vcmp.eq.f32.partialorder %v1555, %v1683
        %vm1716 = vcmp.eq.f32.partialorder %v1556, %v1684
        %vm1717 = vcmp.eq.f32.partialorder %v1557, %v1685
        %vm1718 = vcmp.eq.f32.partialorder %v1558, %v1686
        %vm1719 = vcmp.eq.f32.partialorder %v1559, %v1687
        %vm1720 = vcmp.eq.f32.partialorder %v1560, %v1688
        %vm1721 = vcmp.eq.f32.partialorder %v1561, %v1689
        %vm1722 = vcmp.eq.f32.partialorder %v1562, %v1690
        %vm1723 = vcmp.eq.f32.partialorder %v1563, %v1691
        %vm1724 = vcmp.eq.f32.partialorder %v1564, %v1692
        %vm1725 = vcmp.eq.f32.partialorder %v1565, %v1693
        %vm1726 = vcmp.eq.f32.partialorder %v1566, %v1694
        %vm1727 = vcmp.eq.f32.partialorder %v1567, %v1695
        %vm1728 = vcmp.eq.f32.partialorder %v1568, %v1696
        %vm1729 = vcmp.eq.f32.partialorder %v1569, %v1697
        %vm1730 = vcmp.eq.f32.partialorder %v1570, %v1698
        %vm1731 = vcmp.eq.f32.partialorder %v1571, %v1699
        %vm1732 = vcmp.eq.f32.partialorder %v1572, %v1700
        %vm1733 = vcmp.eq.f32.partialorder %v1573, %v1701
        %vm1734 = vcmp.eq.f32.partialorder %v1574, %v1702
        %vm1735 = vcmp.eq.f32.partialorder %v1575, %v1703
        %vm1736 = vcmp.eq.f32.partialorder %v1576, %v1704
        %vm1737 = vcmp.eq.f32.partialorder %v1577, %v1705
        %vm1738 = vcmp.eq.f32.partialorder %v1578, %v1706
        %vm1739 = vcmp.eq.f32.partialorder %v1579, %v1707
        %vm1740 = vcmp.eq.f32.partialorder %v1580, %v1708
        %vm1741 = vcmp.eq.f32.partialorder %v1581, %v1709
        %vm1742 = vcmp.eq.f32.partialorder %v1582, %v1710
        %v1743 = vsel %vm1711, %v1231, 0.0
        %v1744 = vsel %vm1712, %v1232, 0.0
        %v1745 = vsel %vm1713, %v1233, 0.0
        %v1746 = vsel %vm1714, %v1234, 0.0
        %v1747 = vsel %vm1715, %v1235, 0.0
        %v1748 = vsel %vm1716, %v1236, 0.0
        %v1749 = vsel %vm1717, %v1237, 0.0
        %v1750 = vsel %vm1718, %v1238, 0.0
        %v1751 = vsel %vm1719, %v1239, 0.0
        %v1752 = vsel %vm1720, %v1240, 0.0
        %v1753 = vsel %vm1721, %v1241, 0.0
        %v1754 = vsel %vm1722, %v1242, 0.0
        %v1755 = vsel %vm1723, %v1243, 0.0
        %v1756 = vsel %vm1724, %v1244, 0.0
        %v1757 = vsel %vm1725, %v1245, 0.0
        %v1758 = vsel %vm1726, %v1246, 0.0
        %v1759 = vsel %vm1727, %v1247, 0.0
        %v1760 = vsel %vm1728, %v1248, 0.0
        %v1761 = vsel %vm1729, %v1249, 0.0
        %v1762 = vsel %vm1730, %v1250, 0.0
        %v1763 = vsel %vm1731, %v1251, 0.0
        %v1764 = vsel %vm1732, %v1252, 0.0
        %v1765 = vsel %vm1733, %v1253, 0.0
        %v1766 = vsel %vm1734, %v1254, 0.0
        %v1767 = vsel %vm1735, %v1255, 0.0
        %v1768 = vsel %vm1736, %v1256, 0.0
        %v1769 = vsel %vm1737, %v1257, 0.0
        %v1770 = vsel %vm1738, %v1258, 0.0
        %v1771 = vsel %vm1739, %v1259, 0.0
        %v1772 = vsel %vm1740, %v1260, 0.0
        %v1773 = vsel %vm1741, %v1261, 0.0
        %v1774 = vsel %vm1742, %v1262, 0.0
        %v1775 = vadd.f32 %v1647, %v1743
        %v1776 = vadd.f32 %v1648, %v1744
        %v1777 = vadd.f32 %v1649, %v1745
        %v1778 = vadd.f32 %v1650, %v1746
        %v1779 = vadd.f32 %v1651, %v1747
        %v1780 = vadd.f32 %v1652, %v1748
        %v1781 = vadd.f32 %v1653, %v1749
        %v1782 = vadd.f32 %v1654, %v1750
        %v1783 = vadd.f32 %v1655, %v1751
        %v1784 = vadd.f32 %v1656, %v1752
        %v1785 = vadd.f32 %v1657, %v1753
        %v1786 = vadd.f32 %v1658, %v1754
        %v1787 = vadd.f32 %v1659, %v1755
        %v1788 = vadd.f32 %v1660, %v1756
        %v1789 = vadd.f32 %v1661, %v1757
        %v1790 = vadd.f32 %v1662, %v1758
        %v1791 = vadd.f32 %v1663, %v1759
        %v1792 = vadd.f32 %v1664, %v1760
        %v1793 = vadd.f32 %v1665, %v1761
        %v1794 = vadd.f32 %v1666, %v1762
        %v1795 = vadd.f32 %v1667, %v1763
        %v1796 = vadd.f32 %v1668, %v1764
        %v1797 = vadd.f32 %v1669, %v1765
        %v1798 = vadd.f32 %v1670, %v1766
        %v1799 = vadd.f32 %v1671, %v1767
        %v1800 = vadd.f32 %v1672, %v1768
        %v1801 = vadd.f32 %v1673, %v1769
        %v1802 = vadd.f32 %v1674, %v1770
        %v1803 = vadd.f32 %v1675, %v1771
        %v1804 = vadd.f32 %v1676, %v1772
        %v1805 = vadd.f32 %v1677, %v1773
        %v1806 = vadd.f32 %v1678, %v1774
        %vm1807 = vcmask 64512
        %v1809 = vsel %vm1807, %v1519, 0
        %v1812 = vsel %vm1807, %v1520, 0
        %v1815 = vsel %vm1807, %v1521, 0
        %v1818 = vsel %vm1807, %v1522, 0
        %v1821 = vsel %vm1807, %v1523, 0
        %v1824 = vsel %vm1807, %v1524, 0
        %v1827 = vsel %vm1807, %v1525, 0
        %v1830 = vsel %vm1807, %v1526, 0
        %v1833 = vsel %vm1807, %v1527, 0
        %v1836 = vsel %vm1807, %v1528, 0
        %v1839 = vsel %vm1807, %v1529, 0
        %v1842 = vsel %vm1807, %v1530, 0
        %v1845 = vsel %vm1807, %v1531, 0
        %v1848 = vsel %vm1807, %v1532, 0
        %v1851 = vsel %vm1807, %v1533, 0
        %v1854 = vsel %vm1807, %v1534, 0
        %v1857 = vsel %vm1807, %v1535, 0
        %v1860 = vsel %vm1807, %v1536, 0
        %v1863 = vsel %vm1807, %v1537, 0
        %v1866 = vsel %vm1807, %v1538, 0
        %v1869 = vsel %vm1807, %v1539, 0
        %v1872 = vsel %vm1807, %v1540, 0
        %v1875 = vsel %vm1807, %v1541, 0
        %v1878 = vsel %vm1807, %v1542, 0
        %v1881 = vsel %vm1807, %v1543, 0
        %v1884 = vsel %vm1807, %v1544, 0
        %v1887 = vsel %vm1807, %v1545, 0
        %v1890 = vsel %vm1807, %v1546, 0
        %v1893 = vsel %vm1807, %v1547, 0
        %v1896 = vsel %vm1807, %v1548, 0
        %v1899 = vsel %vm1807, %v1549, 0
        %v1902 = vsel %vm1807, %v1550, 0
        %1904 = vmatprep.subr.mxu0 0.0
        %1905 = vmatpush1.msra.mxu0 0.0
        %1906 = vmatprep.subr.mxu0 0.0
        %1907 = vmatpush1.msra.mxu0 0.0
        %1908 = vmatprep.subr.mxu0 0.0
        %1909 = vmatpush1.msra.mxu0 0.0
        %1910 = vmatprep.subr.mxu0 0.0
        %1911 = vmatpush1.msra.mxu0 0.0
        %1912 = vmatprep.subr.mxu0 0.0
        %1913 = vmatpush1.msra.mxu0 0.0
        %1914 = vmatprep.subr.mxu0 0.0
        %1915 = vmatpush1.msra.mxu0 0.0
        %1916 = vmatprep.subr.mxu0 0.0
        %1917 = vmatpush1.msra.mxu0 0.0
        %1918 = vmatprep.subr.mxu0 0.0
        %1919 = vmatpush1.msra.mxu0 0.0
        %1920 = vmatprep.subr.mxu0 0.0
        %1921 = vmatpush1.msra.mxu0 0.0
        %1922 = vmatprep.subr.mxu0 0.0
        %1923 = vmatpush1.msra.mxu0 0.0
        %1924 = vmatprep.subr.mxu0 0.0
        %1925 = vmatpush1.msra.mxu0 0.0
        %1926 = vmatprep.subr.mxu0 0.0
        %1927 = vmatpush1.msra.mxu0 0.0
        %1928 = vmatprep.subr.mxu0 0.0
        %1929 = vmatpush1.msra.mxu0 0.0
        %1930 = vmatprep.subr.mxu0 0.0
        %1931 = vmatpush1.msra.mxu0 0.0
        %1932 = vmatprep.subr.mxu0 0.0
        %1933 = vmatpush1.msra.mxu0 0.0
        %1934 = vmatprep.subr.mxu0 0.0
        %1935 = vmatpush1.msra.mxu0 %v579
        %1936 = vmatprep.subr.mxu0 0.0
        %1937 = vmatpush2.msra.mxu0 0.0
        %1938 = vmatprep.subr.mxu0 0.0
        %1939 = vmatpush2.msra.mxu0 0.0
        %1940 = vmatprep.subr.mxu0 0.0
        %1941 = vmatpush2.msra.mxu0 0.0
        %1942 = vmatprep.subr.mxu0 0.0
        %1943 = vmatpush2.msra.mxu0 0.0
        %1944 = vmatprep.subr.mxu0 0.0
        %1945 = vmatpush2.msra.mxu0 0.0
        %1946 = vmatprep.subr.mxu0 0.0
        %1947 = vmatpush2.msra.mxu0 0.0
        %1948 = vmatprep.subr.mxu0 0.0
        %1949 = vmatpush2.msra.mxu0 0.0
        %1950 = vmatprep.subr.mxu0 0.0
        %1951 = vmatpush2.msra.mxu0 0.0
        %1952 = vmatprep.subr.mxu0 0.0
        %1953 = vmatpush2.msra.mxu0 0.0
        %1954 = vmatprep.subr.mxu0 0.0
        %1955 = vmatpush2.msra.mxu0 0.0
        %1956 = vmatprep.subr.mxu0 0.0
        %1957 = vmatpush2.msra.mxu0 0.0
        %1958 = vmatprep.subr.mxu0 0.0
        %1959 = vmatpush2.msra.mxu0 0.0
        %1960 = vmatprep.subr.mxu0 0.0
        %1961 = vmatpush2.msra.mxu0 0.0
        %1962 = vmatprep.subr.mxu0 0.0
        %1963 = vmatpush2.msra.mxu0 0.0
        %1964 = vmatprep.subr.mxu0 0.0
        %1965 = vmatpush2.msra.mxu0 0.0
        %1966 = vmatprep.subr.mxu0 0.0
        %1967 = vmatpush2.msra.mxu0 0.0
        %1968 = vmatprep.mubr.f32.mxu0 0.0
        %1969 = vmatmul.mubr.f32.gmra.mxu0 %v1809
        %v1970 = vpop.f32.mrf.mxu0
        %v1971 = vadd.f32 0.0, %v1970
        %v1972 = vpop.f32.mrf.mxu0
        %1973 = vmatprep.mubr.f32.mxu0 0.0
        %1974 = vmatmul.mubr.f32.gmra.mxu0 %v1812
        %v1975 = vpop.f32.mrf.mxu0
        %v1976 = vadd.f32 0.0, %v1975
        %v1977 = vpop.f32.mrf.mxu0
        %1978 = vmatprep.mubr.f32.mxu0 0.0
        %1979 = vmatmul.mubr.f32.gmra.mxu0 %v1815
        %v1980 = vpop.f32.mrf.mxu0
        %v1981 = vadd.f32 0.0, %v1980
        %v1982 = vpop.f32.mrf.mxu0
        %1983 = vmatprep.mubr.f32.mxu0 0.0
        %1984 = vmatmul.mubr.f32.gmra.mxu0 %v1818
        %v1985 = vpop.f32.mrf.mxu0
        %v1986 = vadd.f32 0.0, %v1985
        %v1987 = vpop.f32.mrf.mxu0
        %1988 = vmatprep.mubr.f32.mxu0 0.0
        %1989 = vmatmul.mubr.f32.gmra.mxu0 %v1821
        %v1990 = vpop.f32.mrf.mxu0
        %v1991 = vadd.f32 0.0, %v1990
        %v1992 = vpop.f32.mrf.mxu0
        %1993 = vmatprep.mubr.f32.mxu0 0.0
        %1994 = vmatmul.mubr.f32.gmra.mxu0 %v1824
        %v1995 = vpop.f32.mrf.mxu0
        %v1996 = vadd.f32 0.0, %v1995
        %v1997 = vpop.f32.mrf.mxu0
        %1998 = vmatprep.mubr.f32.mxu0 0.0
        %1999 = vmatmul.mubr.f32.gmra.mxu0 %v1827
        %v2000 = vpop.f32.mrf.mxu0
        %v2001 = vadd.f32 0.0, %v2000
        %v2002 = vpop.f32.mrf.mxu0
        %2003 = vmatprep.mubr.f32.mxu0 0.0
        %2004 = vmatmul.mubr.f32.gmra.mxu0 %v1830
        %v2005 = vpop.f32.mrf.mxu0
        %v2006 = vadd.f32 0.0, %v2005
        %v2007 = vpop.f32.mrf.mxu0
        %2008 = vmatprep.mubr.f32.mxu0 0.0
        %2009 = vmatmul.mubr.f32.gmra.mxu0 %v1833
        %v2010 = vpop.f32.mrf.mxu0
        %v2011 = vadd.f32 0.0, %v2010
        %v2012 = vpop.f32.mrf.mxu0
        %2013 = vmatprep.mubr.f32.mxu0 0.0
        %2014 = vmatmul.mubr.f32.gmra.mxu0 %v1836
        %v2015 = vpop.f32.mrf.mxu0
        %v2016 = vadd.f32 0.0, %v2015
        %v2017 = vpop.f32.mrf.mxu0
        %2018 = vmatprep.mubr.f32.mxu0 0.0
        %2019 = vmatmul.mubr.f32.gmra.mxu0 %v1839
        %v2020 = vpop.f32.mrf.mxu0
        %v2021 = vadd.f32 0.0, %v2020
        %v2022 = vpop.f32.mrf.mxu0
        %2023 = vmatprep.mubr.f32.mxu0 0.0
        %2024 = vmatmul.mubr.f32.gmra.mxu0 %v1842
        %v2025 = vpop.f32.mrf.mxu0
        %v2026 = vadd.f32 0.0, %v2025
        %v2027 = vpop.f32.mrf.mxu0
        %2028 = vmatprep.mubr.f32.mxu0 0.0
        %2029 = vmatmul.mubr.f32.gmra.mxu0 %v1845
        %v2030 = vpop.f32.mrf.mxu0
        %v2031 = vadd.f32 0.0, %v2030
        %v2032 = vpop.f32.mrf.mxu0
        %2033 = vmatprep.mubr.f32.mxu0 0.0
        %2034 = vmatmul.mubr.f32.gmra.mxu0 %v1848
        %v2035 = vpop.f32.mrf.mxu0
        %v2036 = vadd.f32 0.0, %v2035
        %v2037 = vpop.f32.mrf.mxu0
        %2038 = vmatprep.mubr.f32.mxu0 0.0
        %2039 = vmatmul.mubr.f32.gmra.mxu0 %v1851
        %v2040 = vpop.f32.mrf.mxu0
        %v2041 = vadd.f32 0.0, %v2040
        %v2042 = vpop.f32.mrf.mxu0
        %2043 = vmatprep.mubr.f32.mxu0 0.0
        %2044 = vmatmul.mubr.f32.gmra.mxu0 %v1854
        %v2045 = vpop.f32.mrf.mxu0
        %v2046 = vadd.f32 0.0, %v2045
        %v2047 = vpop.f32.mrf.mxu0
        %2048 = vmatprep.mubr.f32.mxu0 0.0
        %2049 = vmatmul.mubr.f32.gmra.mxu0 %v1857
        %v2050 = vpop.f32.mrf.mxu0
        %v2051 = vadd.f32 0.0, %v2050
        %v2052 = vpop.f32.mrf.mxu0
        %2053 = vmatprep.mubr.f32.mxu0 0.0
        %2054 = vmatmul.mubr.f32.gmra.mxu0 %v1860
        %v2055 = vpop.f32.mrf.mxu0
        %v2056 = vadd.f32 0.0, %v2055
        %v2057 = vpop.f32.mrf.mxu0
        %2058 = vmatprep.mubr.f32.mxu0 0.0
        %2059 = vmatmul.mubr.f32.gmra.mxu0 %v1863
        %v2060 = vpop.f32.mrf.mxu0
        %v2061 = vadd.f32 0.0, %v2060
        %v2062 = vpop.f32.mrf.mxu0
        %2063 = vmatprep.mubr.f32.mxu0 0.0
        %2064 = vmatmul.mubr.f32.gmra.mxu0 %v1866
        %v2065 = vpop.f32.mrf.mxu0
        %v2066 = vadd.f32 0.0, %v2065
        %v2067 = vpop.f32.mrf.mxu0
        %2068 = vmatprep.mubr.f32.mxu0 0.0
        %2069 = vmatmul.mubr.f32.gmra.mxu0 %v1869
        %v2070 = vpop.f32.mrf.mxu0
        %v2071 = vadd.f32 0.0, %v2070
        %v2072 = vpop.f32.mrf.mxu0
        %2073 = vmatprep.mubr.f32.mxu0 0.0
        %2074 = vmatmul.mubr.f32.gmra.mxu0 %v1872
        %v2075 = vpop.f32.mrf.mxu0
        %v2076 = vadd.f32 0.0, %v2075
        %v2077 = vpop.f32.mrf.mxu0
        %2078 = vmatprep.mubr.f32.mxu0 0.0
        %2079 = vmatmul.mubr.f32.gmra.mxu0 %v1875
        %v2080 = vpop.f32.mrf.mxu0
        %v2081 = vadd.f32 0.0, %v2080
        %v2082 = vpop.f32.mrf.mxu0
        %2083 = vmatprep.mubr.f32.mxu0 0.0
        %2084 = vmatmul.mubr.f32.gmra.mxu0 %v1878
        %v2085 = vpop.f32.mrf.mxu0
        %v2086 = vadd.f32 0.0, %v2085
        %v2087 = vpop.f32.mrf.mxu0
        %2088 = vmatprep.mubr.f32.mxu0 0.0
        %2089 = vmatmul.mubr.f32.gmra.mxu0 %v1881
        %v2090 = vpop.f32.mrf.mxu0
        %v2091 = vadd.f32 0.0, %v2090
        %v2092 = vpop.f32.mrf.mxu0
        %2093 = vmatprep.mubr.f32.mxu0 0.0
        %2094 = vmatmul.mubr.f32.gmra.mxu0 %v1884
        %v2095 = vpop.f32.mrf.mxu0
        %v2096 = vadd.f32 0.0, %v2095
        %v2097 = vpop.f32.mrf.mxu0
        %2098 = vmatprep.mubr.f32.mxu0 0.0
        %2099 = vmatmul.mubr.f32.gmra.mxu0 %v1887
        %v2100 = vpop.f32.mrf.mxu0
        %v2101 = vadd.f32 0.0, %v2100
        %v2102 = vpop.f32.mrf.mxu0
        %2103 = vmatprep.mubr.f32.mxu0 0.0
        %2104 = vmatmul.mubr.f32.gmra.mxu0 %v1890
        %v2105 = vpop.f32.mrf.mxu0
        %v2106 = vadd.f32 0.0, %v2105
        %v2107 = vpop.f32.mrf.mxu0
        %2108 = vmatprep.mubr.f32.mxu0 0.0
        %2109 = vmatmul.mubr.f32.gmra.mxu0 %v1893
        %v2110 = vpop.f32.mrf.mxu0
        %v2111 = vadd.f32 0.0, %v2110
        %v2112 = vpop.f32.mrf.mxu0
        %2113 = vmatprep.mubr.f32.mxu0 0.0
        %2114 = vmatmul.mubr.f32.gmra.mxu0 %v1896
        %v2115 = vpop.f32.mrf.mxu0
        %v2116 = vadd.f32 0.0, %v2115
        %v2117 = vpop.f32.mrf.mxu0
        %2118 = vmatprep.mubr.f32.mxu0 0.0
        %2119 = vmatmul.mubr.f32.gmra.mxu0 %v1899
        %v2120 = vpop.f32.mrf.mxu0
        %v2121 = vadd.f32 0.0, %v2120
        %v2122 = vpop.f32.mrf.mxu0
        %2123 = vmatprep.mubr.f32.mxu0 0.0
        %2124 = vmatmul.mubr.f32.gmra.mxu0 %v1902
        %v2125 = vpop.f32.mrf.mxu0
        %v2126 = vadd.f32 0.0, %v2125
        %v2127 = vpop.f32.mrf.mxu0
        %2128 = vdwg.mxu0
        %v2129 = vmul.f32 %v1971, %v1775
        %v2130 = vmul.f32 %v1976, %v1776
        %v2131 = vmul.f32 %v1981, %v1777
        %v2132 = vmul.f32 %v1986, %v1778
        %v2133 = vmul.f32 %v1991, %v1779
        %v2134 = vmul.f32 %v1996, %v1780
        %v2135 = vmul.f32 %v2001, %v1781
        %v2136 = vmul.f32 %v2006, %v1782
        %v2137 = vmul.f32 %v2011, %v1783
        %v2138 = vmul.f32 %v2016, %v1784
        %v2139 = vmul.f32 %v2021, %v1785
        %v2140 = vmul.f32 %v2026, %v1786
        %v2141 = vmul.f32 %v2031, %v1787
        %v2142 = vmul.f32 %v2036, %v1788
        %v2143 = vmul.f32 %v2041, %v1789
        %v2144 = vmul.f32 %v2046, %v1790
        %v2145 = vmul.f32 %v2051, %v1791
        %v2146 = vmul.f32 %v2056, %v1792
        %v2147 = vmul.f32 %v2061, %v1793
        %v2148 = vmul.f32 %v2066, %v1794
        %v2149 = vmul.f32 %v2071, %v1795
        %v2150 = vmul.f32 %v2076, %v1796
        %v2151 = vmul.f32 %v2081, %v1797
        %v2152 = vmul.f32 %v2086, %v1798
        %v2153 = vmul.f32 %v2091, %v1799
        %v2154 = vmul.f32 %v2096, %v1800
        %v2155 = vmul.f32 %v2101, %v1801
        %v2156 = vmul.f32 %v2106, %v1802
        %v2157 = vmul.f32 %v2111, %v1803
        %v2158 = vmul.f32 %v2116, %v1804
        %v2159 = vmul.f32 %v2121, %v1805
        %v2160 = vmul.f32 %v2126, %v1806
        %v2161 = vpack.c.bf16 %v2130, %v2129
        %v2162 = vpack.c.bf16 %v2132, %v2131
        %v2163 = vpack.c.bf16 %v2134, %v2133
        %v2164 = vpack.c.bf16 %v2136, %v2135
        %v2165 = vpack.c.bf16 %v2138, %v2137
        %v2166 = vpack.c.bf16 %v2140, %v2139
        %v2167 = vpack.c.bf16 %v2142, %v2141
        %v2168 = vpack.c.bf16 %v2144, %v2143
        %v2169 = vpack.c.bf16 %v2146, %v2145
        %v2170 = vpack.c.bf16 %v2148, %v2147
        %v2171 = vpack.c.bf16 %v2150, %v2149
        %v2172 = vpack.c.bf16 %v2152, %v2151
        %v2173 = vpack.c.bf16 %v2154, %v2153
        %v2174 = vpack.c.bf16 %v2156, %v2155
        %v2175 = vpack.c.bf16 %v2158, %v2157
        %v2176 = vpack.c.bf16 %v2160, %v2159
        %v2177 = vld [vmem:[#allocation6] sm:$0xf]
        %v2178 = vld [vmem:[#allocation6 + $0x4] sm:$0xf]
        %v2179 = vld [vmem:[#allocation6 + $0x8] sm:$0xf]
        %v2180 = vld [vmem:[#allocation6 + $0xc] sm:$0xf]
        %v2181 = vld [vmem:[#allocation6 + $0x10] sm:$0xf]
        %v2182 = vld [vmem:[#allocation6 + $0x14] sm:$0xf]
        %v2183 = vld [vmem:[#allocation6 + $0x18] sm:$0xf]
        %v2184 = vld [vmem:[#allocation6 + $0x1c] sm:$0xf]
        %v2185 = vld [vmem:[#allocation6 + $0x20] sm:$0xf]
        %v2186 = vld [vmem:[#allocation6 + $0x24] sm:$0xf]
        %v2187 = vld [vmem:[#allocation6 + $0x28] sm:$0xf]
        %v2188 = vld [vmem:[#allocation6 + $0x2c] sm:$0xf]
        %v2189 = vld [vmem:[#allocation6 + $0x30] sm:$0xf]
        %v2190 = vld [vmem:[#allocation6 + $0x34] sm:$0xf]
        %v2191 = vld [vmem:[#allocation6 + $0x38] sm:$0xf]
        %v2192 = vld [vmem:[#allocation6 + $0x3c] sm:$0xf]
        %v2209 = vunpack.c.l.b16 %v2177
        %v2210 = vunpack.c.l.b16 %v2178
        %v2211 = vunpack.c.l.b16 %v2179
        %v2212 = vunpack.c.l.b16 %v2180
        %v2213 = vunpack.c.l.b16 %v2181
        %v2214 = vunpack.c.l.b16 %v2182
        %v2215 = vunpack.c.l.b16 %v2183
        %v2216 = vunpack.c.l.b16 %v2184
        %v2217 = vunpack.c.l.b16 %v2185
        %v2218 = vunpack.c.l.b16 %v2186
        %v2219 = vunpack.c.l.b16 %v2187
        %v2220 = vunpack.c.l.b16 %v2188
        %v2221 = vunpack.c.l.b16 %v2189
        %v2222 = vunpack.c.l.b16 %v2190
        %v2223 = vunpack.c.l.b16 %v2191
        %v2224 = vunpack.c.l.b16 %v2192
        %v2225 = vpack.c.b16 %v2210, %v2209
        %v2226 = vpack.c.b16 %v2212, %v2211
        %v2227 = vpack.c.b16 %v2214, %v2213
        %v2228 = vpack.c.b16 %v2216, %v2215
        %v2229 = vpack.c.b16 %v2218, %v2217
        %v2230 = vpack.c.b16 %v2220, %v2219
        %v2231 = vpack.c.b16 %v2222, %v2221
        %v2232 = vpack.c.b16 %v2224, %v2223
        %2241 = vmatprep.subr.bf16.mxu0 0
        %2242 = vmatpush1.bf16.msra.mxu0 %v2232
        %2243 = vmatprep.subr.bf16.mxu0 0
        %2244 = vmatpush1.bf16.msra.mxu0 %v2231
        %2245 = vmatprep.subr.bf16.mxu0 0
        %2246 = vmatpush1.bf16.msra.mxu0 %v2230
        %2247 = vmatprep.subr.bf16.mxu0 0
        %2248 = vmatpush1.bf16.msra.mxu0 %v2229
        %2249 = vmatprep.subr.bf16.mxu0 0
        %2250 = vmatpush1.bf16.msra.mxu0 %v2228
        %2251 = vmatprep.subr.bf16.mxu0 0
        %2252 = vmatpush1.bf16.msra.mxu0 %v2227
        %2253 = vmatprep.subr.bf16.mxu0 0
        %2254 = vmatpush1.bf16.msra.mxu0 %v2226
        %2255 = vmatprep.subr.bf16.mxu0 0
        %2256 = vmatpush1.bf16.msra.mxu0 %v2225
        %2257 = vmatprep.subr.bf16.mxu0 0
        %2258 = vmatpush2.bf16.msra.mxu0 0
        %2259 = vmatprep.subr.bf16.mxu0 0
        %2260 = vmatpush2.bf16.msra.mxu0 0
        %2261 = vmatprep.subr.bf16.mxu0 0
        %2262 = vmatpush2.bf16.msra.mxu0 0
        %2263 = vmatprep.subr.bf16.mxu0 0
        %2264 = vmatpush2.bf16.msra.mxu0 0
        %2265 = vmatprep.subr.bf16.mxu0 0
        %2266 = vmatpush2.bf16.msra.mxu0 0
        %2267 = vmatprep.subr.bf16.mxu0 0
        %2268 = vmatpush2.bf16.msra.mxu0 0
        %2269 = vmatprep.subr.bf16.mxu0 0
        %2270 = vmatpush2.bf16.msra.mxu0 0
        %2271 = vmatprep.subr.bf16.mxu0 0
        %2272 = vmatpush2.bf16.msra.mxu0 0
        %2273 = vmatprep.mubr.bf16.mxu0 0
        %2274 = vmatmul.mubr.bf16.gmra.mxu0 %v2161
        %v2275 = vpop.f32.mrf.mxu0
        %v2276 = vadd.f32 0.0, %v2275
        %v2277 = vpop.f32.mrf.mxu0
        %v2278 = vpop.f32.mrf.mxu0
        %v2279 = vadd.f32 0.0, %v2278
        %v2280 = vpop.f32.mrf.mxu0
        %2281 = vmatprep.mubr.bf16.mxu0 0
        %2282 = vmatmul.mubr.bf16.gmra.mxu0 %v2162
        %v2283 = vpop.f32.mrf.mxu0
        %v2284 = vadd.f32 0.0, %v2283
        %v2285 = vpop.f32.mrf.mxu0
        %v2286 = vpop.f32.mrf.mxu0
        %v2287 = vadd.f32 0.0, %v2286
        %v2288 = vpop.f32.mrf.mxu0
        %2289 = vmatprep.mubr.bf16.mxu0 0
        %2290 = vmatmul.mubr.bf16.gmra.mxu0 %v2163
        %v2291 = vpop.f32.mrf.mxu0
        %v2292 = vadd.f32 0.0, %v2291
        %v2293 = vpop.f32.mrf.mxu0
        %v2294 = vpop.f32.mrf.mxu0
        %v2295 = vadd.f32 0.0, %v2294
        %v2296 = vpop.f32.mrf.mxu0
        %2297 = vmatprep.mubr.bf16.mxu0 0
        %2298 = vmatmul.mubr.bf16.gmra.mxu0 %v2164
        %v2299 = vpop.f32.mrf.mxu0
        %v2300 = vadd.f32 0.0, %v2299
        %v2301 = vpop.f32.mrf.mxu0
        %v2302 = vpop.f32.mrf.mxu0
        %v2303 = vadd.f32 0.0, %v2302
        %v2304 = vpop.f32.mrf.mxu0
        %2305 = vmatprep.mubr.bf16.mxu0 0
        %2306 = vmatmul.mubr.bf16.gmra.mxu0 %v2165
        %v2307 = vpop.f32.mrf.mxu0
        %v2308 = vadd.f32 0.0, %v2307
        %v2309 = vpop.f32.mrf.mxu0
        %v2310 = vpop.f32.mrf.mxu0
        %v2311 = vadd.f32 0.0, %v2310
        %v2312 = vpop.f32.mrf.mxu0
        %2313 = vmatprep.mubr.bf16.mxu0 0
        %2314 = vmatmul.mubr.bf16.gmra.mxu0 %v2166
        %v2315 = vpop.f32.mrf.mxu0
        %v2316 = vadd.f32 0.0, %v2315
        %v2317 = vpop.f32.mrf.mxu0
        %v2318 = vpop.f32.mrf.mxu0
        %v2319 = vadd.f32 0.0, %v2318
        %v2320 = vpop.f32.mrf.mxu0
        %2321 = vmatprep.mubr.bf16.mxu0 0
        %2322 = vmatmul.mubr.bf16.gmra.mxu0 %v2167
        %v2323 = vpop.f32.mrf.mxu0
        %v2324 = vadd.f32 0.0, %v2323
        %v2325 = vpop.f32.mrf.mxu0
        %v2326 = vpop.f32.mrf.mxu0
        %v2327 = vadd.f32 0.0, %v2326
        %v2328 = vpop.f32.mrf.mxu0
        %2329 = vmatprep.mubr.bf16.mxu0 0
        %2330 = vmatmul.mubr.bf16.gmra.mxu0 %v2168
        %v2331 = vpop.f32.mrf.mxu0
        %v2332 = vadd.f32 0.0, %v2331
        %v2333 = vpop.f32.mrf.mxu0
        %v2334 = vpop.f32.mrf.mxu0
        %v2335 = vadd.f32 0.0, %v2334
        %v2336 = vpop.f32.mrf.mxu0
        %2337 = vmatprep.mubr.bf16.mxu0 0
        %2338 = vmatmul.mubr.bf16.gmra.mxu0 %v2169
        %v2339 = vpop.f32.mrf.mxu0
        %v2340 = vadd.f32 0.0, %v2339
        %v2341 = vpop.f32.mrf.mxu0
        %v2342 = vpop.f32.mrf.mxu0
        %v2343 = vadd.f32 0.0, %v2342
        %v2344 = vpop.f32.mrf.mxu0
        %2345 = vmatprep.mubr.bf16.mxu0 0
        %2346 = vmatmul.mubr.bf16.gmra.mxu0 %v2170
        %v2347 = vpop.f32.mrf.mxu0
        %v2348 = vadd.f32 0.0, %v2347
        %v2349 = vpop.f32.mrf.mxu0
        %v2350 = vpop.f32.mrf.mxu0
        %v2351 = vadd.f32 0.0, %v2350
        %v2352 = vpop.f32.mrf.mxu0
        %2353 = vmatprep.mubr.bf16.mxu0 0
        %2354 = vmatmul.mubr.bf16.gmra.mxu0 %v2171
        %v2355 = vpop.f32.mrf.mxu0
        %v2356 = vadd.f32 0.0, %v2355
        %v2357 = vpop.f32.mrf.mxu0
        %v2358 = vpop.f32.mrf.mxu0
        %v2359 = vadd.f32 0.0, %v2358
        %v2360 = vpop.f32.mrf.mxu0
        %2361 = vmatprep.mubr.bf16.mxu0 0
        %2362 = vmatmul.mubr.bf16.gmra.mxu0 %v2172
        %v2363 = vpop.f32.mrf.mxu0
        %v2364 = vadd.f32 0.0, %v2363
        %v2365 = vpop.f32.mrf.mxu0
        %v2366 = vpop.f32.mrf.mxu0
        %v2367 = vadd.f32 0.0, %v2366
        %v2368 = vpop.f32.mrf.mxu0
        %2369 = vmatprep.mubr.bf16.mxu0 0
        %2370 = vmatmul.mubr.bf16.gmra.mxu0 %v2173
        %v2371 = vpop.f32.mrf.mxu0
        %v2372 = vadd.f32 0.0, %v2371
        %v2373 = vpop.f32.mrf.mxu0
        %v2374 = vpop.f32.mrf.mxu0
        %v2375 = vadd.f32 0.0, %v2374
        %v2376 = vpop.f32.mrf.mxu0
        %2377 = vmatprep.mubr.bf16.mxu0 0
        %2378 = vmatmul.mubr.bf16.gmra.mxu0 %v2174
        %v2379 = vpop.f32.mrf.mxu0
        %v2380 = vadd.f32 0.0, %v2379
        %v2381 = vpop.f32.mrf.mxu0
        %v2382 = vpop.f32.mrf.mxu0
        %v2383 = vadd.f32 0.0, %v2382
        %v2384 = vpop.f32.mrf.mxu0
        %2385 = vmatprep.mubr.bf16.mxu0 0
        %2386 = vmatmul.mubr.bf16.gmra.mxu0 %v2175
        %v2387 = vpop.f32.mrf.mxu0
        %v2388 = vadd.f32 0.0, %v2387
        %v2389 = vpop.f32.mrf.mxu0
        %v2390 = vpop.f32.mrf.mxu0
        %v2391 = vadd.f32 0.0, %v2390
        %v2392 = vpop.f32.mrf.mxu0
        %2393 = vmatprep.mubr.bf16.mxu0 0
        %2394 = vmatmul.mubr.bf16.gmra.mxu0 %v2176
        %v2395 = vpop.f32.mrf.mxu0
        %v2396 = vadd.f32 0.0, %v2395
        %v2397 = vpop.f32.mrf.mxu0
        %v2398 = vpop.f32.mrf.mxu0
        %v2399 = vadd.f32 0.0, %v2398
        %v2400 = vpop.f32.mrf.mxu0
        %2401 = vdwg.mxu0
        %v2402 = vld [vmem:[#allocation9] sm:$0xff]
        %v2403 = vld [vmem:[#allocation9 + $0x8] sm:$0xff]
        %v2404 = vld [vmem:[#allocation9 + $0x10] sm:$0xff]
        %v2405 = vld [vmem:[#allocation9 + $0x18] sm:$0xff]
        %v2406 = vld [vmem:[#allocation9 + $0x20] sm:$0xff]
        %v2407 = vld [vmem:[#allocation9 + $0x28] sm:$0xff]
        %v2408 = vld [vmem:[#allocation9 + $0x30] sm:$0xff]
        %v2409 = vld [vmem:[#allocation9 + $0x38] sm:$0xff]
        %v2410 = vld [vmem:[#allocation9 + $0x40] sm:$0xff]
        %v2411 = vld [vmem:[#allocation9 + $0x48] sm:$0xff]
        %v2412 = vld [vmem:[#allocation9 + $0x50] sm:$0xff]
        %v2413 = vld [vmem:[#allocation9 + $0x58] sm:$0xff]
        %v2414 = vld [vmem:[#allocation9 + $0x60] sm:$0xff]
        %v2415 = vld [vmem:[#allocation9 + $0x68] sm:$0xff]
        %v2416 = vld [vmem:[#allocation9 + $0x70] sm:$0xff]
        %v2417 = vld [vmem:[#allocation9 + $0x78] sm:$0xff]
        %v2418 = vld [vmem:[#allocation7] sm:$0x1]
        %v2420 = vlaneseq
        %v2421 = vshrl.u32 %v2420, 7
        %v2422 = vsub.s32 0, %v2421
        %v2423 = vrot.slane %v2418, %v2422
        %2425 = vmatprep.subr.mxu0 0.0
        %2426 = vmatpush1.msra.mxu0 %v2335
        %2427 = vmatprep.subr.mxu0 0.0
        %2428 = vmatpush1.msra.mxu0 %v2332
        %2429 = vmatprep.subr.mxu0 0.0
        %2430 = vmatpush1.msra.mxu0 %v2327
        %2431 = vmatprep.subr.mxu0 0.0
        %2432 = vmatpush1.msra.mxu0 %v2324
        %2433 = vmatprep.subr.mxu0 0.0
        %2434 = vmatpush1.msra.mxu0 %v2319
        %2435 = vmatprep.subr.mxu0 0.0
        %2436 = vmatpush1.msra.mxu0 %v2316
        %2437 = vmatprep.subr.mxu0 0.0
        %2438 = vmatpush1.msra.mxu0 %v2311
        %2439 = vmatprep.subr.mxu0 0.0
        %2440 = vmatpush1.msra.mxu0 %v2308
        %2441 = vmatprep.subr.mxu0 0.0
        %2442 = vmatpush1.msra.mxu0 %v2303
        %2443 = vmatprep.subr.mxu0 0.0
        %2444 = vmatpush1.msra.mxu0 %v2300
        %2445 = vmatprep.subr.mxu0 0.0
        %2446 = vmatpush1.msra.mxu0 %v2295
        %2447 = vmatprep.subr.mxu0 0.0
        %2448 = vmatpush1.msra.mxu0 %v2292
        %2449 = vmatprep.subr.mxu0 0.0
        %2450 = vmatpush1.msra.mxu0 %v2287
        %2451 = vmatprep.subr.mxu0 0.0
        %2452 = vmatpush1.msra.mxu0 %v2284
        %2453 = vmatprep.subr.mxu0 0.0
        %2454 = vmatpush1.msra.mxu0 %v2279
        %2455 = vmatprep.subr.mxu0 0.0
        %2456 = vmatpush1.msra.mxu0 %v2276
        %2457 = vmatprep.subr.mxu0 0.0
        %2458 = vmatpush2.msra.mxu0 %v2399
        %2459 = vmatprep.subr.mxu0 0.0
        %2460 = vmatpush2.msra.mxu0 %v2396
        %2461 = vmatprep.subr.mxu0 0.0
        %2462 = vmatpush2.msra.mxu0 %v2391
        %2463 = vmatprep.subr.mxu0 0.0
        %2464 = vmatpush2.msra.mxu0 %v2388
        %2465 = vmatprep.subr.mxu0 0.0
        %2466 = vmatpush2.msra.mxu0 %v2383
        %2467 = vmatprep.subr.mxu0 0.0
        %2468 = vmatpush2.msra.mxu0 %v2380
        %2469 = vmatprep.subr.mxu0 0.0
        %2470 = vmatpush2.msra.mxu0 %v2375
        %2471 = vmatprep.subr.mxu0 0.0
        %2472 = vmatpush2.msra.mxu0 %v2372
        %2473 = vmatprep.subr.mxu0 0.0
        %2474 = vmatpush2.msra.mxu0 %v2367
        %2475 = vmatprep.subr.mxu0 0.0
        %2476 = vmatpush2.msra.mxu0 %v2364
        %2477 = vmatprep.subr.mxu0 0.0
        %2478 = vmatpush2.msra.mxu0 %v2359
        %2479 = vmatprep.subr.mxu0 0.0
        %2480 = vmatpush2.msra.mxu0 %v2356
        %2481 = vmatprep.subr.mxu0 0.0
        %2482 = vmatpush2.msra.mxu0 %v2351
        %2483 = vmatprep.subr.mxu0 0.0
        %2484 = vmatpush2.msra.mxu0 %v2348
        %2485 = vmatprep.subr.mxu0 0.0
        %2486 = vmatpush2.msra.mxu0 %v2343
        %2487 = vmatprep.subr.mxu0 0.0
        %2488 = vmatpush2.msra.mxu0 %v2340
        %2489 = vmatprep.mubr.f32.mxu0 %v2403
        %2490 = vmatmul.mubr.f32.gmra.mxu0 %v2402
        %v2491 = vpop.f32.mrf.mxu0
        %v2492 = vadd.f32 %v2423, %v2491
        %v2493 = vpop.f32.mrf.mxu0
        %2494 = vmatprep.mubr.f32.mxu0 %v2405
        %2495 = vmatmul.mubr.f32.gmra.mxu0 %v2404
        %v2496 = vpop.f32.mrf.mxu0
        %v2497 = vadd.f32 %v2423, %v2496
        %v2498 = vpop.f32.mrf.mxu0
        %2499 = vmatprep.mubr.f32.mxu0 %v2407
        %2500 = vmatmul.mubr.f32.gmra.mxu0 %v2406
        %v2501 = vpop.f32.mrf.mxu0
        %v2502 = vadd.f32 %v2423, %v2501
        %v2503 = vpop.f32.mrf.mxu0
        %2504 = vmatprep.mubr.f32.mxu0 %v2409
        %2505 = vmatmul.mubr.f32.gmra.mxu0 %v2408
        %v2506 = vpop.f32.mrf.mxu0
        %v2507 = vadd.f32 %v2423, %v2506
        %v2508 = vpop.f32.mrf.mxu0
        %2509 = vmatprep.mubr.f32.mxu0 %v2411
        %2510 = vmatmul.mubr.f32.gmra.mxu0 %v2410
        %v2511 = vpop.f32.mrf.mxu0
        %v2512 = vadd.f32 %v2423, %v2511
        %v2513 = vpop.f32.mrf.mxu0
        %2514 = vmatprep.mubr.f32.mxu0 %v2413
        %2515 = vmatmul.mubr.f32.gmra.mxu0 %v2412
        %v2516 = vpop.f32.mrf.mxu0
        %v2517 = vadd.f32 %v2423, %v2516
        %v2518 = vpop.f32.mrf.mxu0
        %2519 = vmatprep.mubr.f32.mxu0 %v2415
        %2520 = vmatmul.mubr.f32.gmra.mxu0 %v2414
        %v2521 = vpop.f32.mrf.mxu0
        %v2522 = vadd.f32 %v2423, %v2521
        %v2523 = vpop.f32.mrf.mxu0
        %2524 = vmatprep.mubr.f32.mxu0 %v2417
        %2525 = vmatmul.mubr.f32.gmra.mxu0 %v2416
        %v2526 = vpop.f32.mrf.mxu0
        %v2527 = vadd.f32 %v2423, %v2526
        %v2528 = vpop.f32.mrf.mxu0
        %2529 = vdwg.mxu0
        %vm2530 = vcmask 130048
        %2531 = vst.msk [vmem:[%s468] sm:$0xff] %vm2530, %v2492
        %2532 = vst.msk [vmem:[%s468 + $0x8] sm:$0xff] %vm2530, %v2497
        %2533 = vst.msk [vmem:[%s468 + $0x10] sm:$0xff] %vm2530, %v2502
        %2534 = vst.msk [vmem:[%s468 + $0x18] sm:$0xff] %vm2530, %v2507
        %2535 = vst.msk [vmem:[%s468 + $0x20] sm:$0xff] %vm2530, %v2512
        %2536 = vst.msk [vmem:[%s468 + $0x28] sm:$0xff] %vm2530, %v2517
        %2537 = vst.msk [vmem:[%s468 + $0x30] sm:$0xff] %vm2530, %v2522
        %2538 = vst.msk [vmem:[%s468 + $0x38] sm:$0xff] %vm2530, %v2527
        %p2539 = scmp.lt.s32.totalorder %s25, 1
        %s2540 = scalar_select %p2539, %s25, 1
        %s2541 = smul.addr %s2540, 8
        %s2542 = smul.addr %s2541, 8
        %s2543 = scalar_lea.vmem %s11, %s2542
        // Predicated region
        $region85: #{affine_net_forward.3} parent=63 // pred_check
          %p2544 = pneg %p284
        $region86: #{affine_net_forward.3} parent=63 // pred_check_branch
          %2546 = sbr.rel (%p2544) target = $region88
        $region87: #{affine_net_forward.3} parent=63 // pred_region
          _
        $region88: #{affine_net_forward.3} parent=63 // pred_fallthru
          _
      $region64: #{affine_net_forward.3} parent=5 // pred_fallthru
        _
      %p2547 = scmp.le.s32.totalorder 2, %s20
      // Predicated region
      $region89: #{affine_net_forward.3} parent=5 // pred_check
        %p2548 = pneg %p2547
      $region90: #{affine_net_forward.3} parent=5 // pred_check_branch
        %2550 = sbr.rel (%p2548) target = $region92
      $region91: #{affine_net_forward.3} parent=5 // pred_region
        %s2551 = ssub.s32 %s20, 2
        // Predicated region
        $region93: #{affine_net_forward.3} parent=91 // pred_check
          %p2552 = pneg %p290
        $region94: #{affine_net_forward.3} parent=91 // pred_check_branch
          %2554 = sbr.rel (%p2552) target = $region96
        $region95: #{affine_net_forward.3} parent=91 // pred_region
          %p2555 = scmp.lt.s32.totalorder %s26, 1
          %s2556 = scalar_select %p2555, %s26, 1
          %s2557 = smul.addr %s2556, 8
          %s2558 = smul.addr %s2557, 8
          %s2559 = scalar_lea.vmem %s11, %s2558
        $region96: #{affine_net_forward.3} parent=91 // pred_fallthru
          _
      $region92: #{affine_net_forward.3} parent=5 // pred_fallthru
        _
    $region6: #{affine_net_forward.3} parent=1 // loop_footer
      %s24 = sadd.s32 1, %s20
    $region7: #{affine_net_forward.3} parent=1 // loop_footer_branch
      %19 = sbr.rel target = $region3
    $region8: #{affine_net_forward.3} parent=1 // loop_exit
      _
    %2560 = vsyncpa [#allocation3], 1
    %s2561 = scalar_lea.sflag [#allocation3], 1
    %2562 = vsyncpa %s2561, 1
    %2563 = vsyncpa [#allocation5], 1
    %2564 = vsyncpa [#allocation8], 1

// kernel: affine_net_forward.2
$region0: #{affine_net_forward.2}
  #allocation0 [shape = 'u32[]', space=smem, size = 0x4, offset = 0x4, fixed_abs, tag = 'smem constant byte address 0x4 - core index']
  #allocation1 [shape = 'u32[144,128]{1,0:T(1,128)}', space=vmem, size = 0x12000, scoped, tag = 'internal scratch']
  %s0 = inlined_call_operand.smem [shape: u32[35], index: -1, kind: input, shape index: {}]
  %s1 = sld [smem:[%s0]]
  %s2 = scalar_lea.smem %s0, 1
  %s3 = sld [smem:[%s2]]
  %s4 = scalar_lea.smem %s0, 2
  %s5 = sld [smem:[%s4]]
  %s6 = scalar_lea.smem %s0, 3
  %s7 = sld [smem:[%s6]]
  %s8 = scalar_lea.smem %s0, 4
  %s9 = sld [smem:[%s8]]
  %s10 = scalar_lea.smem %s0, 5
  %s11 = sld [smem:[%s10]]
  %s12 = scalar_lea.smem %s0, 6
  %s13 = sld [smem:[%s12]]
  %s14 = scalar_lea.smem %s0, 7
  %s15 = sld [smem:[%s14]]
  %s16 = scalar_lea.smem %s0, 8
  %s17 = sld [smem:[%s16]]
  %s18 = scalar_lea.smem %s0, 9
  %s19 = sld [smem:[%s18]]
  %s20 = scalar_lea.smem %s0, 10
  %s21 = sld [smem:[%s20]]
  %s22 = scalar_lea.smem %s0, 11
  %s23 = sld [smem:[%s22]]
  %s24 = scalar_lea.smem %s0, 12
  %s25 = sld [smem:[%s24]]
  %s26 = scalar_lea.smem %s0, 13
  %s27 = sld [smem:[%s26]]
  %s28 = scalar_lea.smem %s0, 14
  %s29 = sld [smem:[%s28]]
  %s30 = scalar_lea.smem %s0, 15
  %s31 = sld [smem:[%s30]]
  %s32 = scalar_lea.smem %s0, 16
  %s33 = sld [smem:[%s32]]
  %s34 = scalar_lea.smem %s0, 17
  %s35 = sld [smem:[%s34]]
  %s36 = scalar_lea.smem %s0, 18
  %s37 = sld [smem:[%s36]]
  %s38 = scalar_lea.smem %s0, 19
  %s39 = sld [smem:[%s38]]
  %s40 = scalar_lea.smem %s0, 20
  %s41 = sld [smem:[%s40]]
  %s42 = scalar_lea.smem %s0, 21
  %s43 = sld [smem:[%s42]]
  %s44 = scalar_lea.smem %s0, 22
  %s45 = sld [smem:[%s44]]
  %s46 = scalar_lea.smem %s0, 23
  %s47 = sld [smem:[%s46]]
  %s48 = scalar_lea.smem %s0, 24
  %s49 = sld [smem:[%s48]]
  %s50 = scalar_lea.smem %s0, 25
  %s51 = sld [smem:[%s50]]
  %s52 = scalar_lea.smem %s0, 26
  %s53 = sld [smem:[%s52]]
  %s54 = scalar_lea.smem %s0, 27
  %s55 = sld [smem:[%s54]]
  %s56 = scalar_lea.smem %s0, 28
  %s57 = sld [smem:[%s56]]
  %s58 = scalar_lea.smem %s0, 29
  %s59 = sld [smem:[%s58]]
  %s60 = scalar_lea.smem %s0, 30
  %s61 = sld [smem:[%s60]]
  %s62 = scalar_lea.smem %s0, 31
  %s63 = sld [smem:[%s62]]
  %s64 = scalar_lea.smem %s0, 32
  %s65 = sld [smem:[%s64]]
  %s66 = scalar_lea.smem %s0, 33
  %s67 = sld [smem:[%s66]]
  %s68 = scalar_lea.smem %s0, 34
  %s69 = sld [smem:[%s68]]
  %s70 = sld [smem:[#allocation0]]
  $region222: #{affine_net_forward.2} parent=0
    _
  %s72 = ssub.s32 1, %s70
  %s73 = scalar_select 0, %s72, %s70
  $region1: #{affine_net_forward.2} parent=0
    #allocation2 [shape = 'u8[512]{0}', space=vmem, size = 0x400, scoped, tag = 'input window, operand 3, single buffered']
    #allocation3 [shape = 's32[1]{0}', space=sflag, size = 0x4, scoped, tag = 'scoped memory for affine_net_forward.2']
    #allocation4 [shape = 'u8[20480]{0}', space=vmem, size = 0x5000, scoped, tag = 'input window, operand 5, single buffered']
    #allocation5 [shape = 's32[1]{0}', space=sflag, size = 0x4, scoped, tag = 'scoped memory for affine_net_forward.2']
    #allocation6 [shape = 'u8[20480]{0}', space=vmem, size = 0x5000, scoped, tag = 'input window, operand 7, single buffered']
    #allocation7 [shape = 'u8[4096]{0}', space=vmem, size = 0x1000, scoped, tag = 'input window, operand 8, single buffered']
    #allocation8 [shape = 's32[1]{0}', space=sflag, size = 0x4, scoped, tag = 'scoped memory for affine_net_forward.2']
    #allocation9 [shape = 'u8[4096]{0}', space=vmem, size = 0x1000, scoped, tag = 'input window, operand 9, single buffered']
    #allocation10 [shape = 'u8[4096]{0}', space=vmem, size = 0x1000, scoped, tag = 'input window, operand 11, single buffered']
    #allocation11 [shape = 's32[1]{0}', space=sflag, size = 0x4, scoped, tag = 'scoped memory for affine_net_forward.2']
    #allocation12 [shape = 'u8[4096]{0}', space=vmem, size = 0x1000, scoped, tag = 'input window, operand 15, single buffered']
    #allocation13 [shape = 'u8[4096]{0}', space=vmem, size = 0x1000, scoped, tag = 'input window, operand 16, single buffered']
    #allocation14 [shape = 's32[1]{0}', space=sflag, size = 0x4, scoped, tag = 'scoped memory for affine_net_forward.2']
    #allocation15 [shape = 'u8[4096]{0}', space=vmem, size = 0x1000, scoped, tag = 'input window, operand 17, single buffered']
    #allocation16 [shape = 'u8[4096]{0}', space=vmem, size = 0x1000, scoped, tag = 'input window, operand 18, single buffered']
    #allocation17 [shape = 's32[1]{0}', space=sflag, size = 0x4, scoped, tag = 'scoped memory for affine_net_forward.2']
    #allocation18 [shape = 'u8[4096]{0}', space=vmem, size = 0x1000, scoped, tag = 'input window, operand 19, single buffered']
    #allocation19 [shape = 'u8[4096]{0}', space=vmem, size = 0x1000, scoped, tag = 'input window, operand 20, single buffered']
    #allocation20 [shape = 's32[1]{0}', space=sflag, size = 0x4, scoped, tag = 'scoped memory for affine_net_forward.2']
    #allocation21 [shape = 'u8[512]{0}', space=vmem, size = 0x400, scoped, tag = 'input window, operand 21, single buffered']
    #allocation22 [shape = 'u8[4096]{0}', space=vmem, size = 0x1000, scoped, tag = 'input window, operand 24, single buffered']
    #allocation23 [shape = 's32[1]{0}', space=sflag, size = 0x4, scoped, tag = 'scoped memory for affine_net_forward.2']
    #allocation24 [shape = 'u8[512]{0}', space=vmem, size = 0x400, scoped, tag = 'input window, operand 25, single buffered']
    #allocation25 [shape = 'u8[8192]{0}', space=vmem, size = 0x2000, scoped, tag = 'input window, operand 26, single buffered']
    #allocation26 [shape = 's32[1]{0}', space=sflag, size = 0x4, scoped, tag = 'scoped memory for affine_net_forward.2']
    #allocation27 [shape = 'u8[512]{0}', space=vmem, size = 0x400, scoped, tag = 'input window, operand 27, single buffered']
    #allocation28 [shape = 'u8[8192]{0}', space=vmem, size = 0x2000, scoped, tag = 'input window, operand 30, single buffered']
    #allocation29 [shape = 's32[1]{0}', space=sflag, size = 0x4, scoped, tag = 'scoped memory for affine_net_forward.2']
    #allocation30 [shape = 'u8[512]{0}', space=vmem, size = 0x400, scoped, tag = 'input window, operand 31, single buffered']
    %74 = vsyncpa [#allocation3], 0
    %75 = vsyncpa [#allocation5], 0
    %76 = vsyncpa [#allocation8], 0
    %77 = vsyncpa [#allocation11], 0
    %78 = vsyncpa [#allocation14], 0
    %79 = vsyncpa [#allocation17], 0
    %80 = vsyncpa [#allocation20], 0
    %81 = vsyncpa [#allocation23], 0
    %82 = vsyncpa [#allocation26], 0
    %83 = vsyncpa [#allocation29], 0
    // Predicated region
    $region2: #{affine_net_forward.2} parent=1 // pred_check
      _
    $region3: #{affine_net_forward.2} parent=1 // pred_check_branch
      %85 = sbr.rel (0) target = $region5
    $region4: #{affine_net_forward.2} parent=1 // pred_region
      _
    $region5: #{affine_net_forward.2} parent=1 // pred_fallthru
      _
    // Predicated region
    $region6: #{affine_net_forward.2} parent=1 // pred_check
      _
    $region7: #{affine_net_forward.2} parent=1 // pred_check_branch
      %87 = sbr.rel (0) target = $region9
    $region8: #{affine_net_forward.2} parent=1 // pred_region
      _
    $region9: #{affine_net_forward.2} parent=1 // pred_fallthru
      _
    // Predicated region
    $region10: #{affine_net_forward.2} parent=1 // pred_check
      _
    $region11: #{affine_net_forward.2} parent=1 // pred_check_branch
      %89 = sbr.rel (0) target = $region13
    $region12: #{affine_net_forward.2} parent=1 // pred_region
      _
    $region13: #{affine_net_forward.2} parent=1 // pred_fallthru
      _
    // Predicated region
    $region14: #{affine_net_forward.2} parent=1 // pred_check
      _
    $region15: #{affine_net_forward.2} parent=1 // pred_check_branch
      %91 = sbr.rel (0) target = $region17
    $region16: #{affine_net_forward.2} parent=1 // pred_region
      %s93 = ssub.s32 16, 16
      %94 = vsyncadd [#allocation3], %s93
      %s96 = sshll.u32 [#allocation2], 4
      %s97 = int_to_ptr.vmem [resolvable:$true] %s96
      %99 = dma.hbm_to_vmem [thread:$0]  %s7, 16, %s97, [#allocation3]
    $region17: #{affine_net_forward.2} parent=1 // pred_fallthru
      _
    // Predicated region
    $region18: #{affine_net_forward.2} parent=1 // pred_check
      _
    $region19: #{affine_net_forward.2} parent=1 // pred_check_branch
      %101 = sbr.rel (0) target = $region21
    $region20: #{affine_net_forward.2} parent=1 // pred_region
      _
    $region21: #{affine_net_forward.2} parent=1 // pred_fallthru
      _
    // Predicated region
    $region22: #{affine_net_forward.2} parent=1 // pred_check
      _
    $region23: #{affine_net_forward.2} parent=1 // pred_check_branch
      %103 = sbr.rel (0) target = $region25
    $region24: #{affine_net_forward.2} parent=1 // pred_region
      %s105 = ssub.s32 640, 640
      %106 = vsyncadd [#allocation5], %s105
      %s107 = sshll.u32 [#allocation4], 4
      %s108 = int_to_ptr.vmem [resolvable:$true] %s107
      %113 = dma.hbm_to_vmem [thread:$0]  %s11, 640, %s108, [#allocation5], 128, 128, 8
    $region25: #{affine_net_forward.2} parent=1 // pred_fallthru
      _
    // Predicated region
    $region26: #{affine_net_forward.2} parent=1 // pred_check
      _
    $region27: #{affine_net_forward.2} parent=1 // pred_check_branch
      %115 = sbr.rel (0) target = $region29
    $region28: #{affine_net_forward.2} parent=1 // pred_region
      _
    $region29: #{affine_net_forward.2} parent=1 // pred_fallthru
      _
    // Predicated region
    $region30: #{affine_net_forward.2} parent=1 // pred_check
      _
    $region31: #{affine_net_forward.2} parent=1 // pred_check_branch
      %117 = sbr.rel (0) target = $region33
    $region32: #{affine_net_forward.2} parent=1 // pred_region
      %s119 = ssub.s32 640, 640
      %120 = vsyncadd [#allocation5], %s119
      %s121 = sshll.u32 [#allocation6], 4
      %s122 = int_to_ptr.vmem [resolvable:$true] %s121
      %127 = dma.hbm_to_vmem [thread:$0]  %s15, 640, %s122, [#allocation5], 128, 128, 8
    $region33: #{affine_net_forward.2} parent=1 // pred_fallthru
      _
    // Predicated region
    $region34: #{affine_net_forward.2} parent=1 // pred_check
      _
    $region35: #{affine_net_forward.2} parent=1 // pred_check_branch
      %129 = sbr.rel (0) target = $region37
    $region36: #{affine_net_forward.2} parent=1 // pred_region
      %s131 = ssub.s32 128, 128
      %132 = vsyncadd [#allocation8], %s131
      %s134 = sshll.u32 [#allocation7], 4
      %s135 = int_to_ptr.vmem [resolvable:$true] %s134
      %137 = dma.hbm_to_vmem [thread:$0]  %s17, 128, %s135, [#allocation8]
    $region37: #{affine_net_forward.2} parent=1 // pred_fallthru
      _
    // Predicated region
    $region38: #{affine_net_forward.2} parent=1 // pred_check
      _
    $region39: #{affine_net_forward.2} parent=1 // pred_check_branch
      %139 = sbr.rel (0) target = $region41
    $region40: #{affine_net_forward.2} parent=1 // pred_region
      %s141 = ssub.s32 128, 128
      %142 = vsyncadd [#allocation8], %s141
      %s144 = sshll.u32 [#allocation9], 4
      %s145 = int_to_ptr.vmem [resolvable:$true] %s144
      %147 = dma.hbm_to_vmem [thread:$0]  %s19, 128, %s145, [#allocation8]
    $region41: #{affine_net_forward.2} parent=1 // pred_fallthru
      _
    // Predicated region
    $region42: #{affine_net_forward.2} parent=1 // pred_check
      _
    $region43: #{affine_net_forward.2} parent=1 // pred_check_branch
      %149 = sbr.rel (0) target = $region45
    $region44: #{affine_net_forward.2} parent=1 // pred_region
      _
    $region45: #{affine_net_forward.2} parent=1 // pred_fallthru
      _
    // Predicated region
    $region46: #{affine_net_forward.2} parent=1 // pred_check
      _
    $region47: #{affine_net_forward.2} parent=1 // pred_check_branch
      %151 = sbr.rel (0) target = $region49
    $region48: #{affine_net_forward.2} parent=1 // pred_region
      %s153 = ssub.s32 128, 128
      %154 = vsyncadd [#allocation11], %s153
      %s156 = sshll.u32 [#allocation10], 4
      %s157 = int_to_ptr.vmem [resolvable:$true] %s156
      %159 = dma.hbm_to_vmem [thread:$0]  %s23, 128, %s157, [#allocation11]
    $region49: #{affine_net_forward.2} parent=1 // pred_fallthru
      _
    // Predicated region
    $region50: #{affine_net_forward.2} parent=1 // pred_check
      _
    $region51: #{affine_net_forward.2} parent=1 // pred_check_branch
      %161 = sbr.rel (0) target = $region53
    $region52: #{affine_net_forward.2} parent=1 // pred_region
      _
    $region53: #{affine_net_forward.2} parent=1 // pred_fallthru
      _
    // Predicated region
    $region54: #{affine_net_forward.2} parent=1 // pred_check
      _
    $region55: #{affine_net_forward.2} parent=1 // pred_check_branch
      %163 = sbr.rel (0) target = $region57
    $region56: #{affine_net_forward.2} parent=1 // pred_region
      _
    $region57: #{affine_net_forward.2} parent=1 // pred_fallthru
      _
    // Predicated region
    $region58: #{affine_net_forward.2} parent=1 // pred_check
      _
    $region59: #{affine_net_forward.2} parent=1 // pred_check_branch
      %165 = sbr.rel (0) target = $region61
    $region60: #{affine_net_forward.2} parent=1 // pred_region
      _
    $region61: #{affine_net_forward.2} parent=1 // pred_fallthru
      _
    // Predicated region
    $region62: #{affine_net_forward.2} parent=1 // pred_check
      _
    $region63: #{affine_net_forward.2} parent=1 // pred_check_branch
      %167 = sbr.rel (0) target = $region65
    $region64: #{affine_net_forward.2} parent=1 // pred_region
      %s169 = ssub.s32 128, 128
      %170 = vsyncadd [#allocation11], %s169
      %s171 = sshll.u32 [#allocation12], 4
      %s172 = int_to_ptr.vmem [resolvable:$true] %s171
      %177 = dma.hbm_to_vmem [thread:$0]  %s31, 128, %s172, [#allocation11], 64, 64, 4
    $region65: #{affine_net_forward.2} parent=1 // pred_fallthru
      _
    // Predicated region
    $region66: #{affine_net_forward.2} parent=1 // pred_check
      _
    $region67: #{affine_net_forward.2} parent=1 // pred_check_branch
      %179 = sbr.rel (0) target = $region69
    $region68: #{affine_net_forward.2} parent=1 // pred_region
      %s181 = ssub.s32 128, 128
      %182 = vsyncadd [#allocation14], %s181
      %s183 = sshll.u32 [#allocation13], 4
      %s184 = int_to_ptr.vmem [resolvable:$true] %s183
      %189 = dma.hbm_to_vmem [thread:$0]  %s33, 128, %s184, [#allocation14], 64, 64, 4
    $region69: #{affine_net_forward.2} parent=1 // pred_fallthru
      _
    // Predicated region
    $region70: #{affine_net_forward.2} parent=1 // pred_check
      _
    $region71: #{affine_net_forward.2} parent=1 // pred_check_branch
      %191 = sbr.rel (0) target = $region73
    $region72: #{affine_net_forward.2} parent=1 // pred_region
      %s193 = ssub.s32 128, 128
      %194 = vsyncadd [#allocation14], %s193
      %s195 = sshll.u32 [#allocation15], 4
      %s196 = int_to_ptr.vmem [resolvable:$true] %s195
      %201 = dma.hbm_to_vmem [thread:$0]  %s35, 128, %s196, [#allocation14], 64, 64, 4
    $region73: #{affine_net_forward.2} parent=1 // pred_fallthru
      _
    // Predicated region
    $region74: #{affine_net_forward.2} parent=1 // pred_check
      _
    $region75: #{affine_net_forward.2} parent=1 // pred_check_branch
      %203 = sbr.rel (0) target = $region77
    $region76: #{affine_net_forward.2} parent=1 // pred_region
      %s205 = ssub.s32 128, 128
      %206 = vsyncadd [#allocation17], %s205
      %s208 = sshll.u32 [#allocation16], 4
      %s209 = int_to_ptr.vmem [resolvable:$true] %s208
      %211 = dma.hbm_to_vmem [thread:$0]  %s37, 128, %s209, [#allocation17]
    $region77: #{affine_net_forward.2} parent=1 // pred_fallthru
      _
    // Predicated region
    $region78: #{affine_net_forward.2} parent=1 // pred_check
      _
    $region79: #{affine_net_forward.2} parent=1 // pred_check_branch
      %213 = sbr.rel (0) target = $region81
    $region80: #{affine_net_forward.2} parent=1 // pred_region
      %s215 = ssub.s32 128, 128
      %216 = vsyncadd [#allocation17], %s215
      %s218 = sshll.u32 [#allocation18], 4
      %s219 = int_to_ptr.vmem [resolvable:$true] %s218
      %221 = dma.hbm_to_vmem [thread:$0]  %s39, 128, %s219, [#allocation17]
    $region81: #{affine_net_forward.2} parent=1 // pred_fallthru
      _
    // Predicated region
    $region82: #{affine_net_forward.2} parent=1 // pred_check
      _
    $region83: #{affine_net_forward.2} parent=1 // pred_check_branch
      %223 = sbr.rel (0) target = $region85
    $region84: #{affine_net_forward.2} parent=1 // pred_region
      %s225 = ssub.s32 128, 128
      %226 = vsyncadd [#allocation20], %s225
      %s227 = sshll.u32 [#allocation19], 4
      %s228 = int_to_ptr.vmem [resolvable:$true] %s227
      %233 = dma.hbm_to_vmem [thread:$0]  %s41, 128, %s228, [#allocation20], 64, 64, 4
    $region85: #{affine_net_forward.2} parent=1 // pred_fallthru
      _
    // Predicated region
    $region86: #{affine_net_forward.2} parent=1 // pred_check
      _
    $region87: #{affine_net_forward.2} parent=1 // pred_check_branch
      %235 = sbr.rel (0) target = $region89
    $region88: #{affine_net_forward.2} parent=1 // pred_region
      %s237 = ssub.s32 16, 16
      %238 = vsyncadd [#allocation20], %s237
      %s240 = sshll.u32 [#allocation21], 4
      %s241 = int_to_ptr.vmem [resolvable:$true] %s240
      %243 = dma.hbm_to_vmem [thread:$0]  %s43, 16, %s241, [#allocation20]
    $region89: #{affine_net_forward.2} parent=1 // pred_fallthru
      _
    // Predicated region
    $region90: #{affine_net_forward.2} parent=1 // pred_check
      _
    $region91: #{affine_net_forward.2} parent=1 // pred_check_branch
      %245 = sbr.rel (0) target = $region93
    $region92: #{affine_net_forward.2} parent=1 // pred_region
      _
    $region93: #{affine_net_forward.2} parent=1 // pred_fallthru
      _
    // Predicated region
    $region94: #{affine_net_forward.2} parent=1 // pred_check
      _
    $region95: #{affine_net_forward.2} parent=1 // pred_check_branch
      %247 = sbr.rel (0) target = $region97
    $region96: #{affine_net_forward.2} parent=1 // pred_region
      _
    $region97: #{affine_net_forward.2} parent=1 // pred_fallthru
      _
    // Predicated region
    $region98: #{affine_net_forward.2} parent=1 // pred_check
      _
    $region99: #{affine_net_forward.2} parent=1 // pred_check_branch
      %249 = sbr.rel (0) target = $region101
    $region100: #{affine_net_forward.2} parent=1 // pred_region
      %s251 = ssub.s32 128, 128
      %252 = vsyncadd [#allocation23], %s251
      %s253 = sshll.u32 [#allocation22], 4
      %s254 = int_to_ptr.vmem [resolvable:$true] %s253
      %259 = dma.hbm_to_vmem [thread:$0]  %s49, 128, %s254, [#allocation23], 64, 64, 4
    $region101: #{affine_net_forward.2} parent=1 // pred_fallthru
      _
    // Predicated region
    $region102: #{affine_net_forward.2} parent=1 // pred_check
      _
    $region103: #{affine_net_forward.2} parent=1 // pred_check_branch
      %261 = sbr.rel (0) target = $region105
    $region104: #{affine_net_forward.2} parent=1 // pred_region
      %s263 = ssub.s32 16, 16
      %264 = vsyncadd [#allocation23], %s263
      %s266 = sshll.u32 [#allocation24], 4
      %s267 = int_to_ptr.vmem [resolvable:$true] %s266
      %269 = dma.hbm_to_vmem [thread:$0]  %s51, 16, %s267, [#allocation23]
    $region105: #{affine_net_forward.2} parent=1 // pred_fallthru
      _
    // Predicated region
    $region106: #{affine_net_forward.2} parent=1 // pred_check
      _
    $region107: #{affine_net_forward.2} parent=1 // pred_check_branch
      %271 = sbr.rel (0) target = $region109
    $region108: #{affine_net_forward.2} parent=1 // pred_region
      %s273 = ssub.s32 256, 256
      %274 = vsyncadd [#allocation26], %s273
      %s275 = sshll.u32 [#allocation25], 4
      %s276 = int_to_ptr.vmem [resolvable:$true] %s275
      %281 = dma.hbm_to_vmem [thread:$0]  %s53, 256, %s276, [#allocation26], 64, 64, 4
    $region109: #{affine_net_forward.2} parent=1 // pred_fallthru
      _
    // Predicated region
    $region110: #{affine_net_forward.2} parent=1 // pred_check
      _
    $region111: #{affine_net_forward.2} parent=1 // pred_check_branch
      %283 = sbr.rel (0) target = $region113
    $region112: #{affine_net_forward.2} parent=1 // pred_region
      %s285 = ssub.s32 16, 16
      %286 = vsyncadd [#allocation26], %s285
      %s288 = sshll.u32 [#allocation27], 4
      %s289 = int_to_ptr.vmem [resolvable:$true] %s288
      %291 = dma.hbm_to_vmem [thread:$0]  %s55, 16, %s289, [#allocation26]
    $region113: #{affine_net_forward.2} parent=1 // pred_fallthru
      _
    // Predicated region
    $region114: #{affine_net_forward.2} parent=1 // pred_check
      _
    $region115: #{affine_net_forward.2} parent=1 // pred_check_branch
      %293 = sbr.rel (0) target = $region117
    $region116: #{affine_net_forward.2} parent=1 // pred_region
      _
    $region117: #{affine_net_forward.2} parent=1 // pred_fallthru
      _
    // Predicated region
    $region118: #{affine_net_forward.2} parent=1 // pred_check
      _
    $region119: #{affine_net_forward.2} parent=1 // pred_check_branch
      %295 = sbr.rel (0) target = $region121
    $region120: #{affine_net_forward.2} parent=1 // pred_region
      _
    $region121: #{affine_net_forward.2} parent=1 // pred_fallthru
      _
    // Predicated region
    $region122: #{affine_net_forward.2} parent=1 // pred_check
      _
    $region123: #{affine_net_forward.2} parent=1 // pred_check_branch
      %297 = sbr.rel (0) target = $region125
    $region124: #{affine_net_forward.2} parent=1 // pred_region
      %s299 = ssub.s32 256, 256
      %300 = vsyncadd [#allocation29], %s299
      %s301 = sshll.u32 [#allocation28], 4
      %s302 = int_to_ptr.vmem [resolvable:$true] %s301
      %307 = dma.hbm_to_vmem [thread:$0]  %s61, 256, %s302, [#allocation29], 128, 128, 8
    $region125: #{affine_net_forward.2} parent=1 // pred_fallthru
      _
    // Predicated region
    $region126: #{affine_net_forward.2} parent=1 // pred_check
      _
    $region127: #{affine_net_forward.2} parent=1 // pred_check_branch
      %309 = sbr.rel (0) target = $region129
    $region128: #{affine_net_forward.2} parent=1 // pred_region
      %s311 = ssub.s32 16, 16
      %312 = vsyncadd [#allocation29], %s311
      %s314 = sshll.u32 [#allocation30], 4
      %s315 = int_to_ptr.vmem [resolvable:$true] %s314
      %317 = dma.hbm_to_vmem [thread:$0]  %s63, 16, %s315, [#allocation29]
    $region129: #{affine_net_forward.2} parent=1 // pred_fallthru
      _
    // Predicated region
    $region130: #{affine_net_forward.2} parent=1 // pred_check
      _
    $region131: #{affine_net_forward.2} parent=1 // pred_check_branch
      %319 = sbr.rel (0) target = $region133
    $region132: #{affine_net_forward.2} parent=1 // pred_region
      _
    $region133: #{affine_net_forward.2} parent=1 // pred_fallthru
      _
    // Predicated region
    $region134: #{affine_net_forward.2} parent=1 // pred_check
      _
    $region135: #{affine_net_forward.2} parent=1 // pred_check_branch
      %321 = sbr.rel (0) target = $region137
    $region136: #{affine_net_forward.2} parent=1 // pred_region
      _
    $region137: #{affine_net_forward.2} parent=1 // pred_fallthru
      _
    // Predicated region
    $region138: #{affine_net_forward.2} parent=1 // pred_check
      _
    $region139: #{affine_net_forward.2} parent=1 // pred_check_branch
      %323 = sbr.rel (0) target = $region141
    $region140: #{affine_net_forward.2} parent=1 // pred_region
      %324 = dma.done [#allocation3], 16
    $region141: #{affine_net_forward.2} parent=1 // pred_fallthru
      _
    // Predicated region
    $region142: #{affine_net_forward.2} parent=1 // pred_check
      _
    $region143: #{affine_net_forward.2} parent=1 // pred_check_branch
      %326 = sbr.rel (0) target = $region145
    $region144: #{affine_net_forward.2} parent=1 // pred_region
      %327 = dma.done [#allocation5], 640
    $region145: #{affine_net_forward.2} parent=1 // pred_fallthru
      _
    // Predicated region
    $region146: #{affine_net_forward.2} parent=1 // pred_check
      _
    $region147: #{affine_net_forward.2} parent=1 // pred_check_branch
      %329 = sbr.rel (0) target = $region149
    $region148: #{affine_net_forward.2} parent=1 // pred_region
      %330 = dma.done [#allocation5], 640
    $region149: #{affine_net_forward.2} parent=1 // pred_fallthru
      _
    // Predicated region
    $region150: #{affine_net_forward.2} parent=1 // pred_check
      _
    $region151: #{affine_net_forward.2} parent=1 // pred_check_branch
      %332 = sbr.rel (0) target = $region153
    $region152: #{affine_net_forward.2} parent=1 // pred_region
      %333 = dma.done [#allocation8], 128
    $region153: #{affine_net_forward.2} parent=1 // pred_fallthru
      _
    // Predicated region
    $region154: #{affine_net_forward.2} parent=1 // pred_check
      _
    $region155: #{affine_net_forward.2} parent=1 // pred_check_branch
      %335 = sbr.rel (0) target = $region157
    $region156: #{affine_net_forward.2} parent=1 // pred_region
      %336 = dma.done [#allocation8], 128
    $region157: #{affine_net_forward.2} parent=1 // pred_fallthru
      _
    // Predicated region
    $region158: #{affine_net_forward.2} parent=1 // pred_check
      _
    $region159: #{affine_net_forward.2} parent=1 // pred_check_branch
      %338 = sbr.rel (0) target = $region161
    $region160: #{affine_net_forward.2} parent=1 // pred_region
      %339 = dma.done [#allocation11], 128
    $region161: #{affine_net_forward.2} parent=1 // pred_fallthru
      _
    // Predicated region
    $region162: #{affine_net_forward.2} parent=1 // pred_check
      _
    $region163: #{affine_net_forward.2} parent=1 // pred_check_branch
      %341 = sbr.rel (0) target = $region165
    $region164: #{affine_net_forward.2} parent=1 // pred_region
      %342 = dma.done [#allocation11], 128
    $region165: #{affine_net_forward.2} parent=1 // pred_fallthru
      _
    // Predicated region
    $region166: #{affine_net_forward.2} parent=1 // pred_check
      _
    $region167: #{affine_net_forward.2} parent=1 // pred_check_branch
      %344 = sbr.rel (0) target = $region169
    $region168: #{affine_net_forward.2} parent=1 // pred_region
      %345 = dma.done [#allocation14], 128
    $region169: #{affine_net_forward.2} parent=1 // pred_fallthru
      _
    // Predicated region
    $region170: #{affine_net_forward.2} parent=1 // pred_check
      _
    $region171: #{affine_net_forward.2} parent=1 // pred_check_branch
      %347 = sbr.rel (0) target = $region173
    $region172: #{affine_net_forward.2} parent=1 // pred_region
      %348 = dma.done [#allocation14], 128
    $region173: #{affine_net_forward.2} parent=1 // pred_fallthru
      _
    // Predicated region
    $region174: #{affine_net_forward.2} parent=1 // pred_check
      _
    $region175: #{affine_net_forward.2} parent=1 // pred_check_branch
      %350 = sbr.rel (0) target = $region177
    $region176: #{affine_net_forward.2} parent=1 // pred_region
      %351 = dma.done [#allocation17], 128
    $region177: #{affine_net_forward.2} parent=1 // pred_fallthru
      _
    // Predicated region
    $region178: #{affine_net_forward.2} parent=1 // pred_check
      _
    $region179: #{affine_net_forward.2} parent=1 // pred_check_branch
      %353 = sbr.rel (0) target = $region181
    $region180: #{affine_net_forward.2} parent=1 // pred_region
      %354 = dma.done [#allocation17], 128
    $region181: #{affine_net_forward.2} parent=1 // pred_fallthru
      _
    // Predicated region
    $region182: #{affine_net_forward.2} parent=1 // pred_check
      _
    $region183: #{affine_net_forward.2} parent=1 // pred_check_branch
      %356 = sbr.rel (0) target = $region185
    $region184: #{affine_net_forward.2} parent=1 // pred_region
      %357 = dma.done [#allocation20], 128
    $region185: #{affine_net_forward.2} parent=1 // pred_fallthru
      _
    // Predicated region
    $region186: #{affine_net_forward.2} parent=1 // pred_check
      _
    $region187: #{affine_net_forward.2} parent=1 // pred_check_branch
      %359 = sbr.rel (0) target = $region189
    $region188: #{affine_net_forward.2} parent=1 // pred_region
      %360 = dma.done [#allocation20], 16
    $region189: #{affine_net_forward.2} parent=1 // pred_fallthru
      _
    // Predicated region
    $region190: #{affine_net_forward.2} parent=1 // pred_check
      _
    $region191: #{affine_net_forward.2} parent=1 // pred_check_branch
      %362 = sbr.rel (0) target = $region193
    $region192: #{affine_net_forward.2} parent=1 // pred_region
      %363 = dma.done [#allocation23], 128
    $region193: #{affine_net_forward.2} parent=1 // pred_fallthru
      _
    // Predicated region
    $region194: #{affine_net_forward.2} parent=1 // pred_check
      _
    $region195: #{affine_net_forward.2} parent=1 // pred_check_branch
      %365 = sbr.rel (0) target = $region197
    $region196: #{affine_net_forward.2} parent=1 // pred_region
      %366 = dma.done [#allocation23], 16
    $region197: #{affine_net_forward.2} parent=1 // pred_fallthru
      _
    // Predicated region
    $region198: #{affine_net_forward.2} parent=1 // pred_check
      _
    $region199: #{affine_net_forward.2} parent=1 // pred_check_branch
      %368 = sbr.rel (0) target = $region201
    $region200: #{affine_net_forward.2} parent=1 // pred_region
      %369 = dma.done [#allocation26], 256
    $region201: #{affine_net_forward.2} parent=1 // pred_fallthru
      _
    // Predicated region
    $region202: #{affine_net_forward.2} parent=1 // pred_check
      _
    $region203: #{affine_net_forward.2} parent=1 // pred_check_branch
      %371 = sbr.rel (0) target = $region205
    $region204: #{affine_net_forward.2} parent=1 // pred_region
      %372 = dma.done [#allocation26], 16
    $region205: #{affine_net_forward.2} parent=1 // pred_fallthru
      _
    // Predicated region
    $region206: #{affine_net_forward.2} parent=1 // pred_check
      _
    $region207: #{affine_net_forward.2} parent=1 // pred_check_branch
      %374 = sbr.rel (0) target = $region209
    $region208: #{affine_net_forward.2} parent=1 // pred_region
      %375 = dma.done [#allocation29], 256
    $region209: #{affine_net_forward.2} parent=1 // pred_fallthru
      _
    // Predicated region
    $region210: #{affine_net_forward.2} parent=1 // pred_check
      _
    $region211: #{affine_net_forward.2} parent=1 // pred_check_branch
      %377 = sbr.rel (0) target = $region213
    $region212: #{affine_net_forward.2} parent=1 // pred_region
      %378 = dma.done [#allocation29], 16
    $region213: #{affine_net_forward.2} parent=1 // pred_fallthru
      _
    %v380 = vld [vmem:[%s1] sm:$0x3]
    %v381 = vld [vmem:[#allocation6] sm:$0xff]
    %v382 = vld [vmem:[#allocation6 + $0x8] sm:$0xff]
    %v383 = vld [vmem:[#allocation6 + $0x10] sm:$0xff]
    %v384 = vld [vmem:[#allocation6 + $0x18] sm:$0xff]
    %v385 = vld [vmem:[#allocation6 + $0x20] sm:$0x3]
    %v386 = vld [vmem:[#allocation7] sm:$0xff]
    %v387 = vld [vmem:[#allocation9] sm:$0xff]
    %v388 = vld [vmem:[%s21] sm:$0x3]
    %v389 = vld [vmem:[#allocation10] sm:$0xff]
    %v390 = vld [vmem:[%s3] sm:$0xff]
    %v391 = vld [vmem:[%s3 + $0x8] sm:$0xff]
    %v392 = vld [vmem:[%s5] sm:$0xff]
    %v393 = vld [vmem:[%s5 + $0x8] sm:$0xff]
    %v394 = vld [vmem:[%s5 + $0x10] sm:$0xff]
    %v395 = vld [vmem:[%s5 + $0x18] sm:$0xff]
    %v396 = vld [vmem:[%s5 + $0x20] sm:$0xff]
    %v397 = vld [vmem:[%s5 + $0x28] sm:$0xff]
    %v398 = vld [vmem:[%s5 + $0x30] sm:$0xff]
    %v399 = vld [vmem:[%s5 + $0x38] sm:$0xff]
    %v400 = vld [vmem:[%s5 + $0x40] sm:$0xff]
    %v401 = vld [vmem:[%s5 + $0x48] sm:$0xff]
    %v402 = vld [vmem:[%s5 + $0x50] sm:$0xff]
    %v403 = vld [vmem:[%s5 + $0x58] sm:$0xff]
    %v404 = vld [vmem:[%s5 + $0x60] sm:$0xff]
    %v405 = vld [vmem:[%s5 + $0x68] sm:$0xff]
    %v406 = vld [vmem:[%s5 + $0x70] sm:$0xff]
    %v407 = vld [vmem:[%s5 + $0x78] sm:$0xff]
    %v408 = vld [vmem:[%s5 + $0x80] sm:$0xff]
    %v409 = vld [vmem:[%s5 + $0x88] sm:$0xff]
    %v410 = vld [vmem:[%s5 + $0x90] sm:$0xff]
    %v411 = vld [vmem:[%s5 + $0x98] sm:$0xff]
    %v412 = vld [vmem:[%s5 + $0xa0] sm:$0xff]
    %v413 = vld [vmem:[%s5 + $0xa8] sm:$0xff]
    %v414 = vld [vmem:[%s5 + $0xb0] sm:$0xff]
    %v415 = vld [vmem:[%s5 + $0xb8] sm:$0xff]
    %v416 = vld [vmem:[%s5 + $0xc0] sm:$0xff]
    %v417 = vld [vmem:[%s5 + $0xc8] sm:$0xff]
    %v418 = vld [vmem:[%s5 + $0xd0] sm:$0xff]
    %v419 = vld [vmem:[%s5 + $0xd8] sm:$0xff]
    %v420 = vld [vmem:[%s5 + $0xe0] sm:$0xff]
    %v421 = vld [vmem:[%s5 + $0xe8] sm:$0xff]
    %v422 = vld [vmem:[%s5 + $0xf0] sm:$0xff]
    %v423 = vld [vmem:[%s5 + $0xf8] sm:$0xff]
    %v424 = vld [vmem:[#allocation2] sm:$0x1]
    %v426 = vlaneseq
    %v427 = vshrl.u32 %v426, 7
    %v428 = vsub.s32 0, %v427
    %v429 = vrot.slane %v424, %v428
    %431 = vmatprep.subr.mxu0 0.0
    %432 = vmatpush1.msra.mxu0 %v407
    %433 = vmatprep.subr.mxu0 0.0
    %434 = vmatpush1.msra.mxu0 %v406
    %435 = vmatprep.subr.mxu0 0.0
    %436 = vmatpush1.msra.mxu0 %v405
    %437 = vmatprep.subr.mxu0 0.0
    %438 = vmatpush1.msra.mxu0 %v404
    %439 = vmatprep.subr.mxu0 0.0
    %440 = vmatpush1.msra.mxu0 %v403
    %441 = vmatprep.subr.mxu0 0.0
    %442 = vmatpush1.msra.mxu0 %v402
    %443 = vmatprep.subr.mxu0 0.0
    %444 = vmatpush1.msra.mxu0 %v401
    %445 = vmatprep.subr.mxu0 0.0
    %446 = vmatpush1.msra.mxu0 %v400
    %447 = vmatprep.subr.mxu0 0.0
    %448 = vmatpush1.msra.mxu0 %v399
    %449 = vmatprep.subr.mxu0 0.0
    %450 = vmatpush1.msra.mxu0 %v398
    %451 = vmatprep.subr.mxu0 0.0
    %452 = vmatpush1.msra.mxu0 %v397
    %453 = vmatprep.subr.mxu0 0.0
    %454 = vmatpush1.msra.mxu0 %v396
    %455 = vmatprep.subr.mxu0 0.0
    %456 = vmatpush1.msra.mxu0 %v395
    %457 = vmatprep.subr.mxu0 0.0
    %458 = vmatpush1.msra.mxu0 %v394
    %459 = vmatprep.subr.mxu0 0.0
    %460 = vmatpush1.msra.mxu0 %v393
    %461 = vmatprep.subr.mxu0 0.0
    %462 = vmatpush1.msra.mxu0 %v392
    %463 = vmatprep.subr.mxu0 0.0
    %464 = vmatpush2.msra.mxu0 %v423
    %465 = vmatprep.subr.mxu0 0.0
    %466 = vmatpush2.msra.mxu0 %v422
    %467 = vmatprep.subr.mxu0 0.0
    %468 = vmatpush2.msra.mxu0 %v421
    %469 = vmatprep.subr.mxu0 0.0
    %470 = vmatpush2.msra.mxu0 %v420
    %471 = vmatprep.subr.mxu0 0.0
    %472 = vmatpush2.msra.mxu0 %v419
    %473 = vmatprep.subr.mxu0 0.0
    %474 = vmatpush2.msra.mxu0 %v418
    %475 = vmatprep.subr.mxu0 0.0
    %476 = vmatpush2.msra.mxu0 %v417
    %477 = vmatprep.subr.mxu0 0.0
    %478 = vmatpush2.msra.mxu0 %v416
    %479 = vmatprep.subr.mxu0 0.0
    %480 = vmatpush2.msra.mxu0 %v415
    %481 = vmatprep.subr.mxu0 0.0
    %482 = vmatpush2.msra.mxu0 %v414
    %483 = vmatprep.subr.mxu0 0.0
    %484 = vmatpush2.msra.mxu0 %v413
    %485 = vmatprep.subr.mxu0 0.0
    %486 = vmatpush2.msra.mxu0 %v412
    %487 = vmatprep.subr.mxu0 0.0
    %488 = vmatpush2.msra.mxu0 %v411
    %489 = vmatprep.subr.mxu0 0.0
    %490 = vmatpush2.msra.mxu0 %v410
    %491 = vmatprep.subr.mxu0 0.0
    %492 = vmatpush2.msra.mxu0 %v409
    %493 = vmatprep.subr.mxu0 0.0
    %494 = vmatpush2.msra.mxu0 %v408
    %495 = vmatprep.mubr.f32.mxu0 %v391
    %496 = vmatmul.mubr.f32.gmra.mxu0 %v390
    %v497 = vpop.f32.mrf.mxu0
    %v498 = vadd.f32 %v429, %v497
    %v499 = vpop.f32.mrf.mxu0
    %500 = vdwg.mxu0
    %v501 = vld [vmem:[%s9] sm:$0xff]
    %v502 = vld [vmem:[%s9 + $0x8] sm:$0xff]
    %v503 = vld [vmem:[%s9 + $0x10] sm:$0xff]
    %v504 = vld [vmem:[%s9 + $0x18] sm:$0xff]
    %v505 = vld [vmem:[%s9 + $0x20] sm:$0x3]
    %vm506 = vcmask 64512
    %v508 = vsel %vm506, %v501, 0
    %v511 = vsel %vm506, %v502, 0
    %v514 = vsel %vm506, %v503, 0
    %v517 = vsel %vm506, %v504, 0
    %v520 = vsel %vm506, %v505, 0
    %522 = vmatprep.subr.mxu0 0.0
    %523 = vmatpush1.msra.mxu0 0.0
    %524 = vmatprep.subr.mxu0 0.0
    %525 = vmatpush1.msra.mxu0 0.0
    %526 = vmatprep.subr.mxu0 0.0
    %527 = vmatpush1.msra.mxu0 0.0
    %528 = vmatprep.subr.mxu0 0.0
    %529 = vmatpush1.msra.mxu0 0.0
    %530 = vmatprep.subr.mxu0 0.0
    %531 = vmatpush1.msra.mxu0 0.0
    %532 = vmatprep.subr.mxu0 0.0
    %533 = vmatpush1.msra.mxu0 0.0
    %534 = vmatprep.subr.mxu0 0.0
    %535 = vmatpush1.msra.mxu0 0.0
    %536 = vmatprep.subr.mxu0 0.0
    %537 = vmatpush1.msra.mxu0 0.0
    %538 = vmatprep.subr.mxu0 0.0
    %539 = vmatpush1.msra.mxu0 0.0
    %540 = vmatprep.subr.mxu0 0.0
    %541 = vmatpush1.msra.mxu0 0.0
    %542 = vmatprep.subr.mxu0 0.0
    %543 = vmatpush1.msra.mxu0 0.0
    %544 = vmatprep.subr.mxu0 0.0
    %545 = vmatpush1.msra.mxu0 0.0
    %546 = vmatprep.subr.mxu0 0.0
    %547 = vmatpush1.msra.mxu0 0.0
    %548 = vmatprep.subr.mxu0 0.0
    %549 = vmatpush1.msra.mxu0 0.0
    %550 = vmatprep.subr.mxu0 0.0
    %551 = vmatpush1.msra.mxu0 0.0
    %552 = vmatprep.subr.mxu0 0.0
    %553 = vmatpush1.msra.mxu0 %v498
    %554 = vmatprep.subr.mxu0 0.0
    %555 = vmatpush2.msra.mxu0 0.0
    %556 = vmatprep.subr.mxu0 0.0
    %557 = vmatpush2.msra.mxu0 0.0
    %558 = vmatprep.subr.mxu0 0.0
    %559 = vmatpush2.msra.mxu0 0.0
    %560 = vmatprep.subr.mxu0 0.0
    %561 = vmatpush2.msra.mxu0 0.0
    %562 = vmatprep.subr.mxu0 0.0
    %563 = vmatpush2.msra.mxu0 0.0
    %564 = vmatprep.subr.mxu0 0.0
    %565 = vmatpush2.msra.mxu0 0.0
    %566 = vmatprep.subr.mxu0 0.0
    %567 = vmatpush2.msra.mxu0 0.0
    %568 = vmatprep.subr.mxu0 0.0
    %569 = vmatpush2.msra.mxu0 0.0
    %570 = vmatprep.subr.mxu0 0.0
    %571 = vmatpush2.msra.mxu0 0.0
    %572 = vmatprep.subr.mxu0 0.0
    %573 = vmatpush2.msra.mxu0 0.0
    %574 = vmatprep.subr.mxu0 0.0
    %575 = vmatpush2.msra.mxu0 0.0
    %576 = vmatprep.subr.mxu0 0.0
    %577 = vmatpush2.msra.mxu0 0.0
    %578 = vmatprep.subr.mxu0 0.0
    %579 = vmatpush2.msra.mxu0 0.0
    %580 = vmatprep.subr.mxu0 0.0
    %581 = vmatpush2.msra.mxu0 0.0
    %582 = vmatprep.subr.mxu0 0.0
    %583 = vmatpush2.msra.mxu0 0.0
    %584 = vmatprep.subr.mxu0 0.0
    %585 = vmatpush2.msra.mxu0 0.0
    %586 = vmatprep.mubr.f32.mxu0 0.0
    %587 = vmatmul.mubr.f32.gmra.mxu0 %v508
    %v588 = vpop.f32.mrf.mxu0
    %v589 = vadd.f32 0.0, %v588
    %v590 = vpop.f32.mrf.mxu0
    %591 = vmatprep.mubr.f32.mxu0 0.0
    %592 = vmatmul.mubr.f32.gmra.mxu0 %v511
    %v593 = vpop.f32.mrf.mxu0
    %v594 = vadd.f32 0.0, %v593
    %v595 = vpop.f32.mrf.mxu0
    %596 = vmatprep.mubr.f32.mxu0 0.0
    %597 = vmatmul.mubr.f32.gmra.mxu0 %v514
    %v598 = vpop.f32.mrf.mxu0
    %v599 = vadd.f32 0.0, %v598
    %v600 = vpop.f32.mrf.mxu0
    %601 = vmatprep.mubr.f32.mxu0 0.0
    %602 = vmatmul.mubr.f32.gmra.mxu0 %v517
    %v603 = vpop.f32.mrf.mxu0
    %v604 = vadd.f32 0.0, %v603
    %v605 = vpop.f32.mrf.mxu0
    %606 = vmatprep.mubr.f32.mxu0 0.0
    %607 = vmatmul.mubr.f32.gmra.mxu0 %v520
    %v608 = vpop.f32.mrf.mxu0
    %v609 = vadd.f32 0.0, %v608
    %v610 = vpop.f32.mrf.mxu0
    %611 = vdwg.mxu0
    %v612 = vld [vmem:[#allocation4] sm:$0xff]
    %v613 = vld [vmem:[#allocation4 + $0x8] sm:$0xff]
    %v614 = vld [vmem:[#allocation4 + $0x10] sm:$0xff]
    %v615 = vld [vmem:[#allocation4 + $0x18] sm:$0xff]
    %v616 = vld [vmem:[#allocation4 + $0x20] sm:$0x3]
    %v617 = vmul.f32 %v589, %v612
    %v618 = vmul.f32 %v594, %v613
    %v619 = vmul.f32 %v599, %v614
    %v620 = vmul.f32 %v604, %v615
    %v621 = vmul.f32 %v609, %v616
    %v622 = vld [vmem:[%s13] sm:$0xff]
    %v623 = vld [vmem:[%s13 + $0x8] sm:$0xff]
    %v624 = vld [vmem:[%s13 + $0x10] sm:$0xff]
    %v625 = vld [vmem:[%s13 + $0x18] sm:$0xff]
    %v626 = vld [vmem:[%s13 + $0x20] sm:$0xff]
    %v627 = vld [vmem:[%s13 + $0x28] sm:$0xff]
    %v628 = vld [vmem:[%s13 + $0x30] sm:$0xff]
    %v629 = vld [vmem:[%s13 + $0x38] sm:$0xff]
    %vm630 = vcmask 523264
    %v632 = vsel %vm630, %v617, 0
    %v635 = vsel %vm630, %v618, 0
    %v638 = vsel %vm630, %v619, 0
    %v641 = vsel %vm630, %v620, 0
    %v644 = vsel %vm630, %v621, 0
    %646 = vmatprep.subr.mxu0 0.0
    %647 = vmatpush1.msra.mxu0 0.0
    %648 = vmatprep.subr.mxu0 0.0
    %649 = vmatpush1.msra.mxu0 0.0
    %650 = vmatprep.subr.mxu0 0.0
    %651 = vmatpush1.msra.mxu0 0.0
    %652 = vmatprep.subr.mxu0 0.0
    %653 = vmatpush1.msra.mxu0 0.0
    %654 = vmatprep.subr.mxu0 0.0
    %655 = vmatpush1.msra.mxu0 0.0
    %656 = vmatprep.subr.mxu0 0.0
    %657 = vmatpush1.msra.mxu0 0.0
    %658 = vmatprep.subr.mxu0 0.0
    %659 = vmatpush1.msra.mxu0 0.0
    %660 = vmatprep.subr.mxu0 0.0
    %661 = vmatpush1.msra.mxu0 0.0
    %662 = vmatprep.subr.mxu0 0.0
    %663 = vmatpush1.msra.mxu0 %v629
    %664 = vmatprep.subr.mxu0 0.0
    %665 = vmatpush1.msra.mxu0 %v628
    %666 = vmatprep.subr.mxu0 0.0
    %667 = vmatpush1.msra.mxu0 %v627
    %668 = vmatprep.subr.mxu0 0.0
    %669 = vmatpush1.msra.mxu0 %v626
    %670 = vmatprep.subr.mxu0 0.0
    %671 = vmatpush1.msra.mxu0 %v625
    %672 = vmatprep.subr.mxu0 0.0
    %673 = vmatpush1.msra.mxu0 %v624
    %674 = vmatprep.subr.mxu0 0.0
    %675 = vmatpush1.msra.mxu0 %v623
    %676 = vmatprep.subr.mxu0 0.0
    %677 = vmatpush1.msra.mxu0 %v622
    %678 = vmatprep.subr.mxu0 0.0
    %679 = vmatpush2.msra.mxu0 0.0
    %680 = vmatprep.subr.mxu0 0.0
    %681 = vmatpush2.msra.mxu0 0.0
    %682 = vmatprep.subr.mxu0 0.0
    %683 = vmatpush2.msra.mxu0 0.0
    %684 = vmatprep.subr.mxu0 0.0
    %685 = vmatpush2.msra.mxu0 0.0
    %686 = vmatprep.subr.mxu0 0.0
    %687 = vmatpush2.msra.mxu0 0.0
    %688 = vmatprep.subr.mxu0 0.0
    %689 = vmatpush2.msra.mxu0 0.0
    %690 = vmatprep.subr.mxu0 0.0
    %691 = vmatpush2.msra.mxu0 0.0
    %692 = vmatprep.subr.mxu0 0.0
    %693 = vmatpush2.msra.mxu0 0.0
    %694 = vmatprep.subr.mxu0 0.0
    %695 = vmatpush2.msra.mxu0 0.0
    %696 = vmatprep.subr.mxu0 0.0
    %697 = vmatpush2.msra.mxu0 0.0
    %698 = vmatprep.subr.mxu0 0.0
    %699 = vmatpush2.msra.mxu0 0.0
    %700 = vmatprep.subr.mxu0 0.0
    %701 = vmatpush2.msra.mxu0 0.0
    %702 = vmatprep.subr.mxu0 0.0
    %703 = vmatpush2.msra.mxu0 0.0
    %704 = vmatprep.subr.mxu0 0.0
    %705 = vmatpush2.msra.mxu0 0.0
    %706 = vmatprep.subr.mxu0 0.0
    %707 = vmatpush2.msra.mxu0 0.0
    %708 = vmatprep.subr.mxu0 0.0
    %709 = vmatpush2.msra.mxu0 0.0
    %710 = vmatprep.mubr.f32.mxu0 0.0
    %711 = vmatmul.mubr.f32.gmra.mxu0 %v632
    %v712 = vpop.f32.mrf.mxu0
    %v713 = vadd.f32 0.0, %v712
    %v714 = vpop.f32.mrf.mxu0
    %715 = vmatprep.mubr.f32.mxu0 0.0
    %716 = vmatmul.mubr.f32.gmra.mxu0 %v635
    %v717 = vpop.f32.mrf.mxu0
    %v718 = vadd.f32 0.0, %v717
    %v719 = vpop.f32.mrf.mxu0
    %720 = vmatprep.mubr.f32.mxu0 0.0
    %721 = vmatmul.mubr.f32.gmra.mxu0 %v638
    %v722 = vpop.f32.mrf.mxu0
    %v723 = vadd.f32 0.0, %v722
    %v724 = vpop.f32.mrf.mxu0
    %725 = vmatprep.mubr.f32.mxu0 0.0
    %726 = vmatmul.mubr.f32.gmra.mxu0 %v641
    %v727 = vpop.f32.mrf.mxu0
    %v728 = vadd.f32 0.0, %v727
    %v729 = vpop.f32.mrf.mxu0
    %730 = vmatprep.mubr.f32.mxu0 0.0
    %731 = vmatmul.mubr.f32.gmra.mxu0 %v644
    %v732 = vpop.f32.mrf.mxu0
    %v733 = vadd.f32 0.0, %v732
    %v734 = vpop.f32.mrf.mxu0
    %735 = vdwg.mxu0
    %v736 = vld [vmem:[%s27] sm:$0x1]
    %v737 = vld [vmem:[%s29] sm:$0x1]
    %vm738 = vcmask 123904
    %v739 = vsel %vm738, %v380, 0.0
    %740 = vadd.xlane.f32.xlu0 %v739
    %v741 = vpop.xlane.xlu0 %740
    %v742 = vrcp.pop 16.0
    %v743 = vmul.f32 %v741, %v742
    %v744 = vsub.f32 %v380, %v743
    %v745 = vmul.f32 %v744, %v744
    %v746 = vsel %vm738, %v745, 0.0
    %747 = vadd.xlane.f32.xlu0 %v746
    %v748 = vpop.xlane.xlu0 %747
    %v749 = vmul.f32 %v748, %v742
    %v750 = vadd.f32 %v749, 1e-05
    %v751 = vrsqrt.pop %v750
    %v752 = vmul.f32 %v744, %v751
    %v754 = vlaneseq
    %v755 = vshrl.u32 %v754, 7
    %v756 = vsub.s32 0, %v755
    %v757 = vrot.slane %v736, %v756
    %v759 = vmul.f32 %v752, %v757
    %v761 = vlaneseq
    %v762 = vshrl.u32 %v761, 7
    %v763 = vsub.s32 0, %v762
    %v764 = vrot.slane %v737, %v763
    %v766 = vadd.f32 %v759, %v764
    %vm767 = vcmask 15360
    %v769 = vsel %vm767, %v381, 0
    %v772 = vsel %vm767, %v382, 0
    %v775 = vsel %vm767, %v383, 0
    %v778 = vsel %vm767, %v384, 0
    %v781 = vsel %vm767, %v385, 0
    %vm783 = vcmask 1041408
    %v785 = vsel %vm783, %v766, 0
    %787 = vmatprep.subr.mxu0 0.0
    %788 = vmatpush1.msra.mxu0 0.0
    %789 = vmatprep.subr.mxu0 0.0
    %790 = vmatpush1.msra.mxu0 0.0
    %791 = vmatprep.subr.mxu0 0.0
    %792 = vmatpush1.msra.mxu0 0.0
    %793 = vmatprep.subr.mxu0 0.0
    %794 = vmatpush1.msra.mxu0 0.0
    %795 = vmatprep.subr.mxu0 0.0
    %796 = vmatpush1.msra.mxu0 0.0
    %797 = vmatprep.subr.mxu0 0.0
    %798 = vmatpush1.msra.mxu0 0.0
    %799 = vmatprep.subr.mxu0 0.0
    %800 = vmatpush1.msra.mxu0 0.0
    %801 = vmatprep.subr.mxu0 0.0
    %802 = vmatpush1.msra.mxu0 0.0
    %803 = vmatprep.subr.mxu0 0.0
    %804 = vmatpush1.msra.mxu0 0.0
    %805 = vmatprep.subr.mxu0 0.0
    %806 = vmatpush1.msra.mxu0 0.0
    %807 = vmatprep.subr.mxu0 0.0
    %808 = vmatpush1.msra.mxu0 0.0
    %809 = vmatprep.subr.mxu0 0.0
    %810 = vmatpush1.msra.mxu0 0.0
    %811 = vmatprep.subr.mxu0 0.0
    %812 = vmatpush1.msra.mxu0 0.0
    %813 = vmatprep.subr.mxu0 0.0
    %814 = vmatpush1.msra.mxu0 0.0
    %815 = vmatprep.subr.mxu0 0.0
    %816 = vmatpush1.msra.mxu0 0.0
    %817 = vmatprep.subr.mxu0 0.0
    %818 = vmatpush1.msra.mxu0 %v785
    %819 = vmatprep.subr.mxu0 0.0
    %820 = vmatpush2.msra.mxu0 0.0
    %821 = vmatprep.subr.mxu0 0.0
    %822 = vmatpush2.msra.mxu0 0.0
    %823 = vmatprep.subr.mxu0 0.0
    %824 = vmatpush2.msra.mxu0 0.0
    %825 = vmatprep.subr.mxu0 0.0
    %826 = vmatpush2.msra.mxu0 0.0
    %827 = vmatprep.subr.mxu0 0.0
    %828 = vmatpush2.msra.mxu0 0.0
    %829 = vmatprep.subr.mxu0 0.0
    %830 = vmatpush2.msra.mxu0 0.0
    %831 = vmatprep.subr.mxu0 0.0
    %832 = vmatpush2.msra.mxu0 0.0
    %833 = vmatprep.subr.mxu0 0.0
    %834 = vmatpush2.msra.mxu0 0.0
    %835 = vmatprep.subr.mxu0 0.0
    %836 = vmatpush2.msra.mxu0 0.0
    %837 = vmatprep.subr.mxu0 0.0
    %838 = vmatpush2.msra.mxu0 0.0
    %839 = vmatprep.subr.mxu0 0.0
    %840 = vmatpush2.msra.mxu0 0.0
    %841 = vmatprep.subr.mxu0 0.0
    %842 = vmatpush2.msra.mxu0 0.0
    %843 = vmatprep.subr.mxu0 0.0
    %844 = vmatpush2.msra.mxu0 0.0
    %845 = vmatprep.subr.mxu0 0.0
    %846 = vmatpush2.msra.mxu0 0.0
    %847 = vmatprep.subr.mxu0 0.0
    %848 = vmatpush2.msra.mxu0 0.0
    %849 = vmatprep.subr.mxu0 0.0
    %850 = vmatpush2.msra.mxu0 0.0
    %851 = vmatprep.mubr.f32.mxu0 0.0
    %852 = vmatmul.mubr.f32.gmra.mxu0 %v769
    %v853 = vpop.f32.mrf.mxu0
    %v854 = vadd.f32 %v713, %v853
    %v855 = vpop.f32.mrf.mxu0
    %856 = vmatprep.mubr.f32.mxu0 0.0
    %857 = vmatmul.mubr.f32.gmra.mxu0 %v772
    %v858 = vpop.f32.mrf.mxu0
    %v859 = vadd.f32 %v718, %v858
    %v860 = vpop.f32.mrf.mxu0
    %861 = vmatprep.mubr.f32.mxu0 0.0
    %862 = vmatmul.mubr.f32.gmra.mxu0 %v775
    %v863 = vpop.f32.mrf.mxu0
    %v864 = vadd.f32 %v723, %v863
    %v865 = vpop.f32.mrf.mxu0
    %866 = vmatprep.mubr.f32.mxu0 0.0
    %867 = vmatmul.mubr.f32.gmra.mxu0 %v778
    %v868 = vpop.f32.mrf.mxu0
    %v869 = vadd.f32 %v728, %v868
    %v870 = vpop.f32.mrf.mxu0
    %871 = vmatprep.mubr.f32.mxu0 0.0
    %872 = vmatmul.mubr.f32.gmra.mxu0 %v781
    %v873 = vpop.f32.mrf.mxu0
    %v874 = vadd.f32 %v733, %v873
    %v875 = vpop.f32.mrf.mxu0
    %876 = vdwg.mxu0
    %v877 = vpack.c.bf16 %v859, %v854
    %v878 = vpack.c.bf16 %v869, %v864
    %v879 = vpack.c.bf16 %v874, %v874
    %v880 = vpack.c.bf16 %v766, %v766
    %v881 = vld [vmem:[#allocation12] sm:$0xf]
    %v882 = vld [vmem:[#allocation12 + $0x4] sm:$0xf]
    %v885 = vunpack.c.l.b16 %v881
    %v886 = vunpack.c.l.b16 %v882
    %v887 = vpack.c.b16 %v886, %v885
    %vm889 = vcmask 130048
    %v891 = vsel %vm889, %v880, 0
    %893 = vmatprep.subr.bf16.mxu0 0
    %894 = vmatpush1.bf16.msra.mxu0 0
    %895 = vmatprep.subr.bf16.mxu0 0
    %896 = vmatpush1.bf16.msra.mxu0 0
    %897 = vmatprep.subr.bf16.mxu0 0
    %898 = vmatpush1.bf16.msra.mxu0 0
    %899 = vmatprep.subr.bf16.mxu0 0
    %900 = vmatpush1.bf16.msra.mxu0 0
    %901 = vmatprep.subr.bf16.mxu0 0
    %902 = vmatpush1.bf16.msra.mxu0 0
    %903 = vmatprep.subr.bf16.mxu0 0
    %904 = vmatpush1.bf16.msra.mxu0 0
    %905 = vmatprep.subr.bf16.mxu0 0
    %906 = vmatpush1.bf16.msra.mxu0 0
    %907 = vmatprep.subr.bf16.mxu0 0
    %908 = vmatpush1.bf16.msra.mxu0 %v887
    %909 = vmatprep.subr.bf16.mxu0 0
    %910 = vmatpush2.bf16.msra.mxu0 0
    %911 = vmatprep.subr.bf16.mxu0 0
    %912 = vmatpush2.bf16.msra.mxu0 0
    %913 = vmatprep.subr.bf16.mxu0 0
    %914 = vmatpush2.bf16.msra.mxu0 0
    %915 = vmatprep.subr.bf16.mxu0 0
    %916 = vmatpush2.bf16.msra.mxu0 0
    %917 = vmatprep.subr.bf16.mxu0 0
    %918 = vmatpush2.bf16.msra.mxu0 0
    %919 = vmatprep.subr.bf16.mxu0 0
    %920 = vmatpush2.bf16.msra.mxu0 0
    %921 = vmatprep.subr.bf16.mxu0 0
    %922 = vmatpush2.bf16.msra.mxu0 0
    %923 = vmatprep.subr.bf16.mxu0 0
    %924 = vmatpush2.bf16.msra.mxu0 0
    %925 = vmatprep.mubr.bf16.mxu0 0
    %926 = vmatmul.mubr.bf16.gmra.mxu0 %v891
    %v927 = vpop.f32.mrf.mxu0
    %v928 = vadd.f32 0.0, %v927
    %v929 = vpop.f32.mrf.mxu0
    %v930 = vpop.f32.mrf.mxu0
    %v931 = vpop.f32.mrf.mxu0
    %932 = vdwg.mxu0
    %v933 = vld [vmem:[#allocation13] sm:$0xf]
    %v934 = vld [vmem:[#allocation13 + $0x4] sm:$0xf]
    %v937 = vunpack.c.l.b16 %v933
    %v938 = vunpack.c.l.b16 %v934
    %v939 = vpack.c.b16 %v938, %v937
    %v942 = vsel %vm889, %v877, 0
    %v945 = vsel %vm889, %v878, 0
    %v948 = vsel %vm889, %v879, 0
    %950 = vmatprep.subr.bf16.mxu0 0
    %951 = vmatpush1.bf16.msra.mxu0 0
    %952 = vmatprep.subr.bf16.mxu0 0
    %953 = vmatpush1.bf16.msra.mxu0 0
    %954 = vmatprep.subr.bf16.mxu0 0
    %955 = vmatpush1.bf16.msra.mxu0 0
    %956 = vmatprep.subr.bf16.mxu0 0
    %957 = vmatpush1.bf16.msra.mxu0 0
    %958 = vmatprep.subr.bf16.mxu0 0
    %959 = vmatpush1.bf16.msra.mxu0 0
    %960 = vmatprep.subr.bf16.mxu0 0
    %961 = vmatpush1.bf16.msra.mxu0 0
    %962 = vmatprep.subr.bf16.mxu0 0
    %963 = vmatpush1.bf16.msra.mxu0 0
    %964 = vmatprep.subr.bf16.mxu0 0
    %965 = vmatpush1.bf16.msra.mxu0 %v939
    %966 = vmatprep.subr.bf16.mxu0 0
    %967 = vmatpush2.bf16.msra.mxu0 0
    %968 = vmatprep.subr.bf16.mxu0 0
    %969 = vmatpush2.bf16.msra.mxu0 0
    %970 = vmatprep.subr.bf16.mxu0 0
    %971 = vmatpush2.bf16.msra.mxu0 0
    %972 = vmatprep.subr.bf16.mxu0 0
    %973 = vmatpush2.bf16.msra.mxu0 0
    %974 = vmatprep.subr.bf16.mxu0 0
    %975 = vmatpush2.bf16.msra.mxu0 0
    %976 = vmatprep.subr.bf16.mxu0 0
    %977 = vmatpush2.bf16.msra.mxu0 0
    %978 = vmatprep.subr.bf16.mxu0 0
    %979 = vmatpush2.bf16.msra.mxu0 0
    %980 = vmatprep.subr.bf16.mxu0 0
    %981 = vmatpush2.bf16.msra.mxu0 0
    %982 = vmatprep.mubr.bf16.mxu0 0
    %983 = vmatmul.mubr.bf16.gmra.mxu0 %v942
    %v984 = vpop.f32.mrf.mxu0
    %v985 = vadd.f32 0.0, %v984
    %v986 = vpop.f32.mrf.mxu0
    %v987 = vpop.f32.mrf.mxu0
    %v988 = vadd.f32 0.0, %v987
    %v989 = vpop.f32.mrf.mxu0
    %990 = vmatprep.mubr.bf16.mxu0 0
    %991 = vmatmul.mubr.bf16.gmra.mxu0 %v945
    %v992 = vpop.f32.mrf.mxu0
    %v993 = vadd.f32 0.0, %v992
    %v994 = vpop.f32.mrf.mxu0
    %v995 = vpop.f32.mrf.mxu0
    %v996 = vadd.f32 0.0, %v995
    %v997 = vpop.f32.mrf.mxu0
    %998 = vmatprep.mubr.bf16.mxu0 0
    %999 = vmatmul.mubr.bf16.gmra.mxu0 %v948
    %v1000 = vpop.f32.mrf.mxu0
    %v1001 = vadd.f32 0.0, %v1000
    %v1002 = vpop.f32.mrf.mxu0
    %v1003 = vpop.f32.mrf.mxu0
    %v1004 = vpop.f32.mrf.mxu0
    %1005 = vdwg.mxu0
    %v1006 = vld [vmem:[#allocation15] sm:$0xf]
    %v1007 = vld [vmem:[#allocation15 + $0x4] sm:$0xf]
    %v1010 = vunpack.c.l.b16 %v1006
    %v1011 = vunpack.c.l.b16 %v1007
    %v1012 = vpack.c.b16 %v1011, %v1010
    %1014 = vmatprep.subr.bf16.mxu0 0
    %1015 = vmatpush1.bf16.msra.mxu0 0
    %1016 = vmatprep.subr.bf16.mxu0 0
    %1017 = vmatpush1.bf16.msra.mxu0 0
    %1018 = vmatprep.subr.bf16.mxu0 0
    %1019 = vmatpush1.bf16.msra.mxu0 0
    %1020 = vmatprep.subr.bf16.mxu0 0
    %1021 = vmatpush1.bf16.msra.mxu0 0
    %1022 = vmatprep.subr.bf16.mxu0 0
    %1023 = vmatpush1.bf16.msra.mxu0 0
    %1024 = vmatprep.subr.bf16.mxu0 0
    %1025 = vmatpush1.bf16.msra.mxu0 0
    %1026 = vmatprep.subr.bf16.mxu0 0
    %1027 = vmatpush1.bf16.msra.mxu0 0
    %1028 = vmatprep.subr.bf16.mxu0 0
    %1029 = vmatpush1.bf16.msra.mxu0 %v1012
    %1030 = vmatprep.subr.bf16.mxu0 0
    %1031 = vmatpush2.bf16.msra.mxu0 0
    %1032 = vmatprep.subr.bf16.mxu0 0
    %1033 = vmatpush2.bf16.msra.mxu0 0
    %1034 = vmatprep.subr.bf16.mxu0 0
    %1035 = vmatpush2.bf16.msra.mxu0 0
    %1036 = vmatprep.subr.bf16.mxu0 0
    %1037 = vmatpush2.bf16.msra.mxu0 0
    %1038 = vmatprep.subr.bf16.mxu0 0
    %1039 = vmatpush2.bf16.msra.mxu0 0
    %1040 = vmatprep.subr.bf16.mxu0 0
    %1041 = vmatpush2.bf16.msra.mxu0 0
    %1042 = vmatprep.subr.bf16.mxu0 0
    %1043 = vmatpush2.bf16.msra.mxu0 0
    %1044 = vmatprep.subr.bf16.mxu0 0
    %1045 = vmatpush2.bf16.msra.mxu0 0
    %1046 = vmatprep.mubr.bf16.mxu0 0
    %1047 = vmatmul.mubr.bf16.gmra.mxu0 %v942
    %v1048 = vpop.f32.mrf.mxu0
    %v1049 = vadd.f32 0.0, %v1048
    %v1050 = vpop.f32.mrf.mxu0
    %v1051 = vpop.f32.mrf.mxu0
    %v1052 = vadd.f32 0.0, %v1051
    %v1053 = vpop.f32.mrf.mxu0
    %1054 = vmatprep.mubr.bf16.mxu0 0
    %1055 = vmatmul.mubr.bf16.gmra.mxu0 %v945
    %v1056 = vpop.f32.mrf.mxu0
    %v1057 = vadd.f32 0.0, %v1056
    %v1058 = vpop.f32.mrf.mxu0
    %v1059 = vpop.f32.mrf.mxu0
    %v1060 = vadd.f32 0.0, %v1059
    %v1061 = vpop.f32.mrf.mxu0
    %1062 = vmatprep.mubr.bf16.mxu0 0
    %1063 = vmatmul.mubr.bf16.gmra.mxu0 %v948
    %v1064 = vpop.f32.mrf.mxu0
    %v1065 = vadd.f32 0.0, %v1064
    %v1066 = vpop.f32.mrf.mxu0
    %v1067 = vpop.f32.mrf.mxu0
    %v1068 = vpop.f32.mrf.mxu0
    %1069 = vdwg.mxu0
    %v1071 = vsel %vm767, %v386, 0
    %v1074 = vsel %vm783, %v928, 0
    %1076 = vmatprep.subr.mxu0 0.0
    %1077 = vmatpush1.msra.mxu0 0.0
    %1078 = vmatprep.subr.mxu0 0.0
    %1079 = vmatpush1.msra.mxu0 0.0
    %1080 = vmatprep.subr.mxu0 0.0
    %1081 = vmatpush1.msra.mxu0 0.0
    %1082 = vmatprep.subr.mxu0 0.0
    %1083 = vmatpush1.msra.mxu0 0.0
    %1084 = vmatprep.subr.mxu0 0.0
    %1085 = vmatpush1.msra.mxu0 0.0
    %1086 = vmatprep.subr.mxu0 0.0
    %1087 = vmatpush1.msra.mxu0 0.0
    %1088 = vmatprep.subr.mxu0 0.0
    %1089 = vmatpush1.msra.mxu0 0.0
    %1090 = vmatprep.subr.mxu0 0.0
    %1091 = vmatpush1.msra.mxu0 0.0
    %1092 = vmatprep.subr.mxu0 0.0
    %1093 = vmatpush1.msra.mxu0 0.0
    %1094 = vmatprep.subr.mxu0 0.0
    %1095 = vmatpush1.msra.mxu0 0.0
    %1096 = vmatprep.subr.mxu0 0.0
    %1097 = vmatpush1.msra.mxu0 0.0
    %1098 = vmatprep.subr.mxu0 0.0
    %1099 = vmatpush1.msra.mxu0 0.0
    %1100 = vmatprep.subr.mxu0 0.0
    %1101 = vmatpush1.msra.mxu0 0.0
    %1102 = vmatprep.subr.mxu0 0.0
    %1103 = vmatpush1.msra.mxu0 0.0
    %1104 = vmatprep.subr.mxu0 0.0
    %1105 = vmatpush1.msra.mxu0 0.0
    %1106 = vmatprep.subr.mxu0 0.0
    %1107 = vmatpush1.msra.mxu0 %v1074
    %1108 = vmatprep.subr.mxu0 0.0
    %1109 = vmatpush2.msra.mxu0 0.0
    %1110 = vmatprep.subr.mxu0 0.0
    %1111 = vmatpush2.msra.mxu0 0.0
    %1112 = vmatprep.subr.mxu0 0.0
    %1113 = vmatpush2.msra.mxu0 0.0
    %1114 = vmatprep.subr.mxu0 0.0
    %1115 = vmatpush2.msra.mxu0 0.0
    %1116 = vmatprep.subr.mxu0 0.0
    %1117 = vmatpush2.msra.mxu0 0.0
    %1118 = vmatprep.subr.mxu0 0.0
    %1119 = vmatpush2.msra.mxu0 0.0
    %1120 = vmatprep.subr.mxu0 0.0
    %1121 = vmatpush2.msra.mxu0 0.0
    %1122 = vmatprep.subr.mxu0 0.0
    %1123 = vmatpush2.msra.mxu0 0.0
    %1124 = vmatprep.subr.mxu0 0.0
    %1125 = vmatpush2.msra.mxu0 0.0
    %1126 = vmatprep.subr.mxu0 0.0
    %1127 = vmatpush2.msra.mxu0 0.0
    %1128 = vmatprep.subr.mxu0 0.0
    %1129 = vmatpush2.msra.mxu0 0.0
    %1130 = vmatprep.subr.mxu0 0.0
    %1131 = vmatpush2.msra.mxu0 0.0
    %1132 = vmatprep.subr.mxu0 0.0
    %1133 = vmatpush2.msra.mxu0 0.0
    %1134 = vmatprep.subr.mxu0 0.0
    %1135 = vmatpush2.msra.mxu0 0.0
    %1136 = vmatprep.subr.mxu0 0.0
    %1137 = vmatpush2.msra.mxu0 0.0
    %1138 = vmatprep.subr.mxu0 0.0
    %1139 = vmatpush2.msra.mxu0 0.0
    %1140 = vmatprep.mubr.f32.mxu0 0.0
    %1141 = vmatmul.mubr.f32.gmra.mxu0 %v1071
    %v1142 = vpop.f32.mrf.mxu0
    %v1143 = vadd.f32 0.0, %v1142
    %v1144 = vpop.f32.mrf.mxu0
    %1145 = vdwg.mxu0
    %v1146 = vmul.f32 %v1143, %v387
    %v1148 = vsel %vm889, %v1146, 0
    %v1151 = vsel %vm889, %v985, 0
    %v1154 = vsel %vm889, %v988, 0
    %v1157 = vsel %vm889, %v993, 0
    %v1160 = vsel %vm889, %v996, 0
    %v1163 = vsel %vm889, %v1001, 0
    %1165 = vmatprep.subr.mxu0 0.0
    %1166 = vmatpush1.xpose.msra.mxu0 0.0
    %1167 = vmatprep.subr.mxu0 0.0
    %1168 = vmatpush1.xpose.msra.mxu0 0.0
    %1169 = vmatprep.subr.mxu0 0.0
    %1170 = vmatpush1.xpose.msra.mxu0 0.0
    %1171 = vmatprep.subr.mxu0 0.0
    %1172 = vmatpush1.xpose.msra.mxu0 0.0
    %1173 = vmatprep.subr.mxu0 0.0
    %1174 = vmatpush1.xpose.msra.mxu0 0.0
    %1175 = vmatprep.subr.mxu0 0.0
    %1176 = vmatpush1.xpose.msra.mxu0 0.0
    %1177 = vmatprep.subr.mxu0 0.0
    %1178 = vmatpush1.xpose.msra.mxu0 0.0
    %1179 = vmatprep.subr.mxu0 0.0
    %1180 = vmatpush1.xpose.msra.mxu0 0.0
    %1181 = vmatprep.subr.mxu0 0.0
    %1182 = vmatpush1.xpose.msra.mxu0 0.0
    %1183 = vmatprep.subr.mxu0 0.0
    %1184 = vmatpush1.xpose.msra.mxu0 0.0
    %1185 = vmatprep.subr.mxu0 0.0
    %1186 = vmatpush1.xpose.msra.mxu0 0.0
    %1187 = vmatprep.subr.mxu0 0.0
    %1188 = vmatpush1.xpose.msra.mxu0 %v1163
    %1189 = vmatprep.subr.mxu0 0.0
    %1190 = vmatpush1.xpose.msra.mxu0 %v1160
    %1191 = vmatprep.subr.mxu0 0.0
    %1192 = vmatpush1.xpose.msra.mxu0 %v1157
    %1193 = vmatprep.subr.mxu0 0.0
    %1194 = vmatpush1.xpose.msra.mxu0 %v1154
    %1195 = vmatprep.subr.mxu0 0.0
    %1196 = vmatpush1.xpose.msra.mxu0 %v1151
    %1197 = vmatprep.subr.mxu0 0.0
    %1198 = vmatpush2.xpose.msra.mxu0 0.0
    %1199 = vmatprep.subr.mxu0 0.0
    %1200 = vmatpush2.xpose.msra.mxu0 0.0
    %1201 = vmatprep.subr.mxu0 0.0
    %1202 = vmatpush2.xpose.msra.mxu0 0.0
    %1203 = vmatprep.subr.mxu0 0.0
    %1204 = vmatpush2.xpose.msra.mxu0 0.0
    %1205 = vmatprep.subr.mxu0 0.0
    %1206 = vmatpush2.xpose.msra.mxu0 0.0
    %1207 = vmatprep.subr.mxu0 0.0
    %1208 = vmatpush2.xpose.msra.mxu0 0.0
    %1209 = vmatprep.subr.mxu0 0.0
    %1210 = vmatpush2.xpose.msra.mxu0 0.0
    %1211 = vmatprep.subr.mxu0 0.0
    %1212 = vmatpush2.xpose.msra.mxu0 0.0
    %1213 = vmatprep.subr.mxu0 0.0
    %1214 = vmatpush2.xpose.msra.mxu0 0.0
    %1215 = vmatprep.subr.mxu0 0.0
    %1216 = vmatpush2.xpose.msra.mxu0 0.0
    %1217 = vmatprep.subr.mxu0 0.0
    %1218 = vmatpush2.xpose.msra.mxu0 0.0
    %1219 = vmatprep.subr.mxu0 0.0
    %1220 = vmatpush2.xpose.msra.mxu0 0.0
    %1221 = vmatprep.subr.mxu0 0.0
    %1222 = vmatpush2.xpose.msra.mxu0 0.0
    %1223 = vmatprep.subr.mxu0 0.0
    %1224 = vmatpush2.xpose.msra.mxu0 0.0
    %1225 = vmatprep.subr.mxu0 0.0
    %1226 = vmatpush2.xpose.msra.mxu0 0.0
    %1227 = vmatprep.subr.mxu0 0.0
    %1228 = vmatpush2.xpose.msra.mxu0 0.0
    %1229 = vmatprep.mubr.f32.mxu0 0.0
    %1230 = vmatmul.mubr.f32.gmra.mxu0 %v1148
    %v1231 = vpop.f32.mrf.mxu0
    %v1232 = vadd.f32 0.0, %v1231
    %v1233 = vpop.f32.mrf.mxu0
    %1234 = vdwg.mxu0
    %v1235 = vmul.f32 %v1232, 0.5
    %v1236 = vld [vmem:[#allocation16] sm:$0xff]
    %v1238 = vsel %vm506, %v1236, 0
    %1240 = vmatprep.subr.mxu0 0.0
    %1241 = vmatpush1.msra.mxu0 0.0
    %1242 = vmatprep.subr.mxu0 0.0
    %1243 = vmatpush1.msra.mxu0 0.0
    %1244 = vmatprep.subr.mxu0 0.0
    %1245 = vmatpush1.msra.mxu0 0.0
    %1246 = vmatprep.subr.mxu0 0.0
    %1247 = vmatpush1.msra.mxu0 0.0
    %1248 = vmatprep.subr.mxu0 0.0
    %1249 = vmatpush1.msra.mxu0 0.0
    %1250 = vmatprep.subr.mxu0 0.0
    %1251 = vmatpush1.msra.mxu0 0.0
    %1252 = vmatprep.subr.mxu0 0.0
    %1253 = vmatpush1.msra.mxu0 0.0
    %1254 = vmatprep.subr.mxu0 0.0
    %1255 = vmatpush1.msra.mxu0 0.0
    %1256 = vmatprep.subr.mxu0 0.0
    %1257 = vmatpush1.msra.mxu0 0.0
    %1258 = vmatprep.subr.mxu0 0.0
    %1259 = vmatpush1.msra.mxu0 0.0
    %1260 = vmatprep.subr.mxu0 0.0
    %1261 = vmatpush1.msra.mxu0 0.0
    %1262 = vmatprep.subr.mxu0 0.0
    %1263 = vmatpush1.msra.mxu0 0.0
    %1264 = vmatprep.subr.mxu0 0.0
    %1265 = vmatpush1.msra.mxu0 0.0
    %1266 = vmatprep.subr.mxu0 0.0
    %1267 = vmatpush1.msra.mxu0 0.0
    %1268 = vmatprep.subr.mxu0 0.0
    %1269 = vmatpush1.msra.mxu0 0.0
    %1270 = vmatprep.subr.mxu0 0.0
    %1271 = vmatpush1.msra.mxu0 %v1235
    %1272 = vmatprep.subr.mxu0 0.0
    %1273 = vmatpush2.msra.mxu0 0.0
    %1274 = vmatprep.subr.mxu0 0.0
    %1275 = vmatpush2.msra.mxu0 0.0
    %1276 = vmatprep.subr.mxu0 0.0
    %1277 = vmatpush2.msra.mxu0 0.0
    %1278 = vmatprep.subr.mxu0 0.0
    %1279 = vmatpush2.msra.mxu0 0.0
    %1280 = vmatprep.subr.mxu0 0.0
    %1281 = vmatpush2.msra.mxu0 0.0
    %1282 = vmatprep.subr.mxu0 0.0
    %1283 = vmatpush2.msra.mxu0 0.0
    %1284 = vmatprep.subr.mxu0 0.0
    %1285 = vmatpush2.msra.mxu0 0.0
    %1286 = vmatprep.subr.mxu0 0.0
    %1287 = vmatpush2.msra.mxu0 0.0
    %1288 = vmatprep.subr.mxu0 0.0
    %1289 = vmatpush2.msra.mxu0 0.0
    %1290 = vmatprep.subr.mxu0 0.0
    %1291 = vmatpush2.msra.mxu0 0.0
    %1292 = vmatprep.subr.mxu0 0.0
    %1293 = vmatpush2.msra.mxu0 0.0
    %1294 = vmatprep.subr.mxu0 0.0
    %1295 = vmatpush2.msra.mxu0 0.0
    %1296 = vmatprep.subr.mxu0 0.0
    %1297 = vmatpush2.msra.mxu0 0.0
    %1298 = vmatprep.subr.mxu0 0.0
    %1299 = vmatpush2.msra.mxu0 0.0
    %1300 = vmatprep.subr.mxu0 0.0
    %1301 = vmatpush2.msra.mxu0 0.0
    %1302 = vmatprep.subr.mxu0 0.0
    %1303 = vmatpush2.msra.mxu0 0.0
    %1304 = vmatprep.mubr.f32.mxu0 0.0
    %1305 = vmatmul.mubr.f32.gmra.mxu0 %v1238
    %v1306 = vpop.f32.mrf.mxu0
    %v1307 = vadd.f32 %v389, %v1306
    %v1308 = vpop.f32.mrf.mxu0
    %1309 = vdwg.mxu0
    %vm1310 = vcmask 277504
    %v1311 = vsel %vm1310, %v1307, -inf
    %1312 = vmax.xlane.f32.xlu0 %v1311
    %v1313 = vpop.xlane.xlu0 %1312
    %v1314 = vsub.f32 %v1307, %v1313
    %v1315 = vmul.f32 %v1314, 1.442695
    %v1316 = vpow.pop %v1315
    %v1317 = vsel %vm1310, %v1316, 0.0
    %1318 = vadd.xlane.f32.xlu0 %v1317
    %v1319 = vpop.xlane.xlu0 %1318
    %v1320 = vrcp.pop %v1319
    %v1321 = vmul.f32 %v1316, %v1320
    %v1322 = vld [vmem:[#allocation18] sm:$0xff]
    %v1324 = vsel %vm506, %v1322, 0
    %1326 = vmatprep.subr.mxu0 0.0
    %1327 = vmatpush1.msra.mxu0 0.0
    %1328 = vmatprep.subr.mxu0 0.0
    %1329 = vmatpush1.msra.mxu0 0.0
    %1330 = vmatprep.subr.mxu0 0.0
    %1331 = vmatpush1.msra.mxu0 0.0
    %1332 = vmatprep.subr.mxu0 0.0
    %1333 = vmatpush1.msra.mxu0 0.0
    %1334 = vmatprep.subr.mxu0 0.0
    %1335 = vmatpush1.msra.mxu0 0.0
    %1336 = vmatprep.subr.mxu0 0.0
    %1337 = vmatpush1.msra.mxu0 0.0
    %1338 = vmatprep.subr.mxu0 0.0
    %1339 = vmatpush1.msra.mxu0 0.0
    %1340 = vmatprep.subr.mxu0 0.0
    %1341 = vmatpush1.msra.mxu0 0.0
    %1342 = vmatprep.subr.mxu0 0.0
    %1343 = vmatpush1.msra.mxu0 0.0
    %1344 = vmatprep.subr.mxu0 0.0
    %1345 = vmatpush1.msra.mxu0 0.0
    %1346 = vmatprep.subr.mxu0 0.0
    %1347 = vmatpush1.msra.mxu0 0.0
    %1348 = vmatprep.subr.mxu0 0.0
    %1349 = vmatpush1.msra.mxu0 0.0
    %1350 = vmatprep.subr.mxu0 0.0
    %1351 = vmatpush1.msra.mxu0 0.0
    %1352 = vmatprep.subr.mxu0 0.0
    %1353 = vmatpush1.msra.mxu0 0.0
    %1354 = vmatprep.subr.mxu0 0.0
    %1355 = vmatpush1.msra.mxu0 0.0
    %1356 = vmatprep.subr.mxu0 0.0
    %1357 = vmatpush1.msra.mxu0 %v1321
    %1358 = vmatprep.subr.mxu0 0.0
    %1359 = vmatpush2.msra.mxu0 0.0
    %1360 = vmatprep.subr.mxu0 0.0
    %1361 = vmatpush2.msra.mxu0 0.0
    %1362 = vmatprep.subr.mxu0 0.0
    %1363 = vmatpush2.msra.mxu0 0.0
    %1364 = vmatprep.subr.mxu0 0.0
    %1365 = vmatpush2.msra.mxu0 0.0
    %1366 = vmatprep.subr.mxu0 0.0
    %1367 = vmatpush2.msra.mxu0 0.0
    %1368 = vmatprep.subr.mxu0 0.0
    %1369 = vmatpush2.msra.mxu0 0.0
    %1370 = vmatprep.subr.mxu0 0.0
    %1371 = vmatpush2.msra.mxu0 0.0
    %1372 = vmatprep.subr.mxu0 0.0
    %1373 = vmatpush2.msra.mxu0 0.0
    %1374 = vmatprep.subr.mxu0 0.0
    %1375 = vmatpush2.msra.mxu0 0.0
    %1376 = vmatprep.subr.mxu0 0.0
    %1377 = vmatpush2.msra.mxu0 0.0
    %1378 = vmatprep.subr.mxu0 0.0
    %1379 = vmatpush2.msra.mxu0 0.0
    %1380 = vmatprep.subr.mxu0 0.0
    %1381 = vmatpush2.msra.mxu0 0.0
    %1382 = vmatprep.subr.mxu0 0.0
    %1383 = vmatpush2.msra.mxu0 0.0
    %1384 = vmatprep.subr.mxu0 0.0
    %1385 = vmatpush2.msra.mxu0 0.0
    %1386 = vmatprep.subr.mxu0 0.0
    %1387 = vmatpush2.msra.mxu0 0.0
    %1388 = vmatprep.subr.mxu0 0.0
    %1389 = vmatpush2.msra.mxu0 0.0
    %1390 = vmatprep.mubr.f32.mxu0 0.0
    %1391 = vmatmul.mubr.f32.gmra.mxu0 %v1324
    %v1392 = vpop.f32.mrf.mxu0
    %v1393 = vadd.f32 0.0, %v1392
    %v1394 = vpop.f32.mrf.mxu0
    %1395 = vdwg.mxu0
    %v1397 = vsel %vm1310, %v1393, 0
    %v1400 = vsel %vm783, %v1065, 0
    %1402 = vmatprep.subr.mxu0 0.0
    %1403 = vmatpush1.msra.mxu0 0.0
    %1404 = vmatprep.subr.mxu0 0.0
    %1405 = vmatpush1.msra.mxu0 0.0
    %1406 = vmatprep.subr.mxu0 0.0
    %1407 = vmatpush1.msra.mxu0 0.0
    %1408 = vmatprep.subr.mxu0 0.0
    %1409 = vmatpush1.msra.mxu0 0.0
    %1410 = vmatprep.subr.mxu0 0.0
    %1411 = vmatpush1.msra.mxu0 0.0
    %1412 = vmatprep.subr.mxu0 0.0
    %1413 = vmatpush1.msra.mxu0 0.0
    %1414 = vmatprep.subr.mxu0 0.0
    %1415 = vmatpush1.msra.mxu0 0.0
    %1416 = vmatprep.subr.mxu0 0.0
    %1417 = vmatpush1.msra.mxu0 0.0
    %1418 = vmatprep.subr.mxu0 0.0
    %1419 = vmatpush1.msra.mxu0 0.0
    %1420 = vmatprep.subr.mxu0 0.0
    %1421 = vmatpush1.msra.mxu0 0.0
    %1422 = vmatprep.subr.mxu0 0.0
    %1423 = vmatpush1.msra.mxu0 0.0
    %1424 = vmatprep.subr.mxu0 0.0
    %1425 = vmatpush1.msra.mxu0 %v1400
    %1426 = vmatprep.subr.mxu0 0.0
    %1427 = vmatpush1.msra.mxu0 %v1060
    %1428 = vmatprep.subr.mxu0 0.0
    %1429 = vmatpush1.msra.mxu0 %v1057
    %1430 = vmatprep.subr.mxu0 0.0
    %1431 = vmatpush1.msra.mxu0 %v1052
    %1432 = vmatprep.subr.mxu0 0.0
    %1433 = vmatpush1.msra.mxu0 %v1049
    %1434 = vmatprep.subr.mxu0 0.0
    %1435 = vmatpush2.msra.mxu0 0.0
    %1436 = vmatprep.subr.mxu0 0.0
    %1437 = vmatpush2.msra.mxu0 0.0
    %1438 = vmatprep.subr.mxu0 0.0
    %1439 = vmatpush2.msra.mxu0 0.0
    %1440 = vmatprep.subr.mxu0 0.0
    %1441 = vmatpush2.msra.mxu0 0.0
    %1442 = vmatprep.subr.mxu0 0.0
    %1443 = vmatpush2.msra.mxu0 0.0
    %1444 = vmatprep.subr.mxu0 0.0
    %1445 = vmatpush2.msra.mxu0 0.0
    %1446 = vmatprep.subr.mxu0 0.0
    %1447 = vmatpush2.msra.mxu0 0.0
    %1448 = vmatprep.subr.mxu0 0.0
    %1449 = vmatpush2.msra.mxu0 0.0
    %1450 = vmatprep.subr.mxu0 0.0
    %1451 = vmatpush2.msra.mxu0 0.0
    %1452 = vmatprep.subr.mxu0 0.0
    %1453 = vmatpush2.msra.mxu0 0.0
    %1454 = vmatprep.subr.mxu0 0.0
    %1455 = vmatpush2.msra.mxu0 0.0
    %1456 = vmatprep.subr.mxu0 0.0
    %1457 = vmatpush2.msra.mxu0 0.0
    %1458 = vmatprep.subr.mxu0 0.0
    %1459 = vmatpush2.msra.mxu0 0.0
    %1460 = vmatprep.subr.mxu0 0.0
    %1461 = vmatpush2.msra.mxu0 0.0
    %1462 = vmatprep.subr.mxu0 0.0
    %1463 = vmatpush2.msra.mxu0 0.0
    %1464 = vmatprep.subr.mxu0 0.0
    %1465 = vmatpush2.msra.mxu0 0.0
    %1466 = vmatprep.mubr.f32.mxu0 0.0
    %1467 = vmatmul.mubr.f32.gmra.mxu0 %v1397
    %v1468 = vpop.f32.mrf.mxu0
    %v1469 = vadd.f32 0.0, %v1468
    %v1470 = vpop.f32.mrf.mxu0
    %1471 = vdwg.mxu0
    %v1472 = vmul.f32 %v1469, %v387
    %v1474 = vsel %vm506, %v388, 0
    %1476 = vmatprep.subr.mxu0 0.0
    %1477 = vmatpush1.msra.mxu0 0.0
    %1478 = vmatprep.subr.mxu0 0.0
    %1479 = vmatpush1.msra.mxu0 0.0
    %1480 = vmatprep.subr.mxu0 0.0
    %1481 = vmatpush1.msra.mxu0 0.0
    %1482 = vmatprep.subr.mxu0 0.0
    %1483 = vmatpush1.msra.mxu0 0.0
    %1484 = vmatprep.subr.mxu0 0.0
    %1485 = vmatpush1.msra.mxu0 0.0
    %1486 = vmatprep.subr.mxu0 0.0
    %1487 = vmatpush1.msra.mxu0 0.0
    %1488 = vmatprep.subr.mxu0 0.0
    %1489 = vmatpush1.msra.mxu0 0.0
    %1490 = vmatprep.subr.mxu0 0.0
    %1491 = vmatpush1.msra.mxu0 0.0
    %1492 = vmatprep.subr.mxu0 0.0
    %1493 = vmatpush1.msra.mxu0 0.0
    %1494 = vmatprep.subr.mxu0 0.0
    %1495 = vmatpush1.msra.mxu0 0.0
    %1496 = vmatprep.subr.mxu0 0.0
    %1497 = vmatpush1.msra.mxu0 0.0
    %1498 = vmatprep.subr.mxu0 0.0
    %1499 = vmatpush1.msra.mxu0 0.0
    %1500 = vmatprep.subr.mxu0 0.0
    %1501 = vmatpush1.msra.mxu0 0.0
    %1502 = vmatprep.subr.mxu0 0.0
    %1503 = vmatpush1.msra.mxu0 0.0
    %1504 = vmatprep.subr.mxu0 0.0
    %1505 = vmatpush1.msra.mxu0 0.0
    %1506 = vmatprep.subr.mxu0 0.0
    %1507 = vmatpush1.msra.mxu0 %v1472
    %1508 = vmatprep.subr.mxu0 0.0
    %1509 = vmatpush2.msra.mxu0 0.0
    %1510 = vmatprep.subr.mxu0 0.0
    %1511 = vmatpush2.msra.mxu0 0.0
    %1512 = vmatprep.subr.mxu0 0.0
    %1513 = vmatpush2.msra.mxu0 0.0
    %1514 = vmatprep.subr.mxu0 0.0
    %1515 = vmatpush2.msra.mxu0 0.0
    %1516 = vmatprep.subr.mxu0 0.0
    %1517 = vmatpush2.msra.mxu0 0.0
    %1518 = vmatprep.subr.mxu0 0.0
    %1519 = vmatpush2.msra.mxu0 0.0
    %1520 = vmatprep.subr.mxu0 0.0
    %1521 = vmatpush2.msra.mxu0 0.0
    %1522 = vmatprep.subr.mxu0 0.0
    %1523 = vmatpush2.msra.mxu0 0.0
    %1524 = vmatprep.subr.mxu0 0.0
    %1525 = vmatpush2.msra.mxu0 0.0
    %1526 = vmatprep.subr.mxu0 0.0
    %1527 = vmatpush2.msra.mxu0 0.0
    %1528 = vmatprep.subr.mxu0 0.0
    %1529 = vmatpush2.msra.mxu0 0.0
    %1530 = vmatprep.subr.mxu0 0.0
    %1531 = vmatpush2.msra.mxu0 0.0
    %1532 = vmatprep.subr.mxu0 0.0
    %1533 = vmatpush2.msra.mxu0 0.0
    %1534 = vmatprep.subr.mxu0 0.0
    %1535 = vmatpush2.msra.mxu0 0.0
    %1536 = vmatprep.subr.mxu0 0.0
    %1537 = vmatpush2.msra.mxu0 0.0
    %1538 = vmatprep.subr.mxu0 0.0
    %1539 = vmatpush2.msra.mxu0 0.0
    %1540 = vmatprep.mubr.f32.mxu0 0.0
    %1541 = vmatmul.mubr.f32.gmra.mxu0 %v1474
    %v1542 = vpop.f32.mrf.mxu0
    %v1543 = vadd.f32 0.0, %v1542
    %v1544 = vpop.f32.mrf.mxu0
    %1545 = vdwg.mxu0
    %v1546 = vpack.c.bf16 %v1543, %v1543
    %v1547 = vld [vmem:[#allocation19] sm:$0xf]
    %v1548 = vld [vmem:[#allocation19 + $0x4] sm:$0xf]
    %v1551 = vunpack.c.l.b16 %v1547
    %v1552 = vunpack.c.l.b16 %v1548
    %v1553 = vpack.c.b16 %v1552, %v1551
    %v1556 = vsel %vm889, %v1546, 0
    %1558 = vmatprep.subr.bf16.mxu0 0
    %1559 = vmatpush1.bf16.msra.mxu0 0
    %1560 = vmatprep.subr.bf16.mxu0 0
    %1561 = vmatpush1.bf16.msra.mxu0 0
    %1562 = vmatprep.subr.bf16.mxu0 0
    %1563 = vmatpush1.bf16.msra.mxu0 0
    %1564 = vmatprep.subr.bf16.mxu0 0
    %1565 = vmatpush1.bf16.msra.mxu0 0
    %1566 = vmatprep.subr.bf16.mxu0 0
    %1567 = vmatpush1.bf16.msra.mxu0 0
    %1568 = vmatprep.subr.bf16.mxu0 0
    %1569 = vmatpush1.bf16.msra.mxu0 0
    %1570 = vmatprep.subr.bf16.mxu0 0
    %1571 = vmatpush1.bf16.msra.mxu0 0
    %1572 = vmatprep.subr.bf16.mxu0 0
    %1573 = vmatpush1.bf16.msra.mxu0 %v1553
    %1574 = vmatprep.subr.bf16.mxu0 0
    %1575 = vmatpush2.bf16.msra.mxu0 0
    %1576 = vmatprep.subr.bf16.mxu0 0
    %1577 = vmatpush2.bf16.msra.mxu0 0
    %1578 = vmatprep.subr.bf16.mxu0 0
    %1579 = vmatpush2.bf16.msra.mxu0 0
    %1580 = vmatprep.subr.bf16.mxu0 0
    %1581 = vmatpush2.bf16.msra.mxu0 0
    %1582 = vmatprep.subr.bf16.mxu0 0
    %1583 = vmatpush2.bf16.msra.mxu0 0
    %1584 = vmatprep.subr.bf16.mxu0 0
    %1585 = vmatpush2.bf16.msra.mxu0 0
    %1586 = vmatprep.subr.bf16.mxu0 0
    %1587 = vmatpush2.bf16.msra.mxu0 0
    %1588 = vmatprep.subr.bf16.mxu0 0
    %1589 = vmatpush2.bf16.msra.mxu0 0
    %1590 = vmatprep.mubr.bf16.mxu0 0
    %1591 = vmatmul.mubr.bf16.gmra.mxu0 %v1556
    %v1592 = vpop.f32.mrf.mxu0
    %v1593 = vadd.f32 0.0, %v1592
    %v1594 = vpop.f32.mrf.mxu0
    %v1595 = vpop.f32.mrf.mxu0
    %v1596 = vpop.f32.mrf.mxu0
    %1597 = vdwg.mxu0
    %v1598 = vadd.f32 %v380, %v1593
    %v1599 = vld [vmem:[#allocation21] sm:$0x1]
    %v1601 = vlaneseq
    %v1602 = vshrl.u32 %v1601, 7
    %v1603 = vsub.s32 0, %v1602
    %v1604 = vrot.slane %v1599, %v1603
    %v1606 = vadd.f32 %v1598, %v1604
    %v1607 = vld [vmem:[%s45] sm:$0x1]
    %v1608 = vld [vmem:[%s47] sm:$0x1]
    %v1609 = vsel %vm738, %v1606, 0.0
    %1610 = vadd.xlane.f32.xlu0 %v1609
    %v1611 = vpop.xlane.xlu0 %1610
    %v1612 = vmul.f32 %v1611, %v742
    %v1613 = vsub.f32 %v1606, %v1612
    %v1614 = vmul.f32 %v1613, %v1613
    %v1615 = vsel %vm738, %v1614, 0.0
    %1616 = vadd.xlane.f32.xlu0 %v1615
    %v1617 = vpop.xlane.xlu0 %1616
    %v1618 = vmul.f32 %v1617, %v742
    %v1619 = vadd.f32 %v1618, 1e-05
    %v1620 = vrsqrt.pop %v1619
    %v1621 = vmul.f32 %v1613, %v1620
    %v1623 = vlaneseq
    %v1624 = vshrl.u32 %v1623, 7
    %v1625 = vsub.s32 0, %v1624
    %v1626 = vrot.slane %v1607, %v1625
    %v1628 = vmul.f32 %v1621, %v1626
    %v1630 = vlaneseq
    %v1631 = vshrl.u32 %v1630, 7
    %v1632 = vsub.s32 0, %v1631
    %v1633 = vrot.slane %v1608, %v1632
    %v1635 = vadd.f32 %v1628, %v1633
    %v1636 = vpack.c.bf16 %v1635, %v1635
    %v1637 = vld [vmem:[#allocation22] sm:$0xf]
    %v1638 = vld [vmem:[#allocation22 + $0x4] sm:$0xf]
    %v1639 = vld [vmem:[#allocation24] sm:$0x1]
    %v1641 = vlaneseq
    %v1642 = vshrl.u32 %v1641, 7
    %v1643 = vsub.s32 0, %v1642
    %v1644 = vrot.slane %v1639, %v1643
    %v1648 = vunpack.c.l.b16 %v1637
    %v1649 = vunpack.c.l.b16 %v1638
    %v1650 = vpack.c.b16 %v1649, %v1648
    %v1653 = vsel %vm889, %v1636, 0
    %1655 = vmatprep.subr.bf16.mxu0 0
    %1656 = vmatpush1.bf16.msra.mxu0 0
    %1657 = vmatprep.subr.bf16.mxu0 0
    %1658 = vmatpush1.bf16.msra.mxu0 0
    %1659 = vmatprep.subr.bf16.mxu0 0
    %1660 = vmatpush1.bf16.msra.mxu0 0
    %1661 = vmatprep.subr.bf16.mxu0 0
    %1662 = vmatpush1.bf16.msra.mxu0 0
    %1663 = vmatprep.subr.bf16.mxu0 0
    %1664 = vmatpush1.bf16.msra.mxu0 0
    %1665 = vmatprep.subr.bf16.mxu0 0
    %1666 = vmatpush1.bf16.msra.mxu0 0
    %1667 = vmatprep.subr.bf16.mxu0 0
    %1668 = vmatpush1.bf16.msra.mxu0 0
    %1669 = vmatprep.subr.bf16.mxu0 0
    %1670 = vmatpush1.bf16.msra.mxu0 %v1650
    %1671 = vmatprep.subr.bf16.mxu0 0
    %1672 = vmatpush2.bf16.msra.mxu0 0
    %1673 = vmatprep.subr.bf16.mxu0 0
    %1674 = vmatpush2.bf16.msra.mxu0 0
    %1675 = vmatprep.subr.bf16.mxu0 0
    %1676 = vmatpush2.bf16.msra.mxu0 0
    %1677 = vmatprep.subr.bf16.mxu0 0
    %1678 = vmatpush2.bf16.msra.mxu0 0
    %1679 = vmatprep.subr.bf16.mxu0 0
    %1680 = vmatpush2.bf16.msra.mxu0 0
    %1681 = vmatprep.subr.bf16.mxu0 0
    %1682 = vmatpush2.bf16.msra.mxu0 0
    %1683 = vmatprep.subr.bf16.mxu0 0
    %1684 = vmatpush2.bf16.msra.mxu0 0
    %1685 = vmatprep.subr.bf16.mxu0 0
    %1686 = vmatpush2.bf16.msra.mxu0 0
    %1687 = vmatprep.mubr.bf16.mxu0 0
    %1688 = vmatmul.mubr.bf16.gmra.mxu0 %v1653
    %v1689 = vpop.f32.mrf.mxu0
    %v1690 = vadd.f32 %v1644, %v1689
    %v1691 = vpop.f32.mrf.mxu0
    %v1692 = vpop.f32.mrf.mxu0
    %v1693 = vpop.f32.mrf.mxu0
    %1694 = vdwg.mxu0
    %v1695 = vmul.f32 %v1690, 0.5
    %v1696 = vmul.f32 %v1690, 0.70710677
    %v1697 = verf.f32.pop %v1696
    %v1698 = vadd.f32 %v1697, 1.0
    %v1699 = vmul.f32 %v1695, %v1698
    %v1700 = vpack.c.bf16 %v1699, %v1699
    %v1701 = vld [vmem:[#allocation25] sm:$0xf]
    %v1702 = vld [vmem:[#allocation25 + $0x4] sm:$0xf]
    %v1703 = vld [vmem:[#allocation25 + $0x8] sm:$0xf]
    %v1704 = vld [vmem:[#allocation25 + $0xc] sm:$0xf]
    %v1709 = vunpack.c.l.b16 %v1701
    %v1710 = vunpack.c.l.b16 %v1702
    %v1711 = vunpack.c.l.b16 %v1703
    %v1712 = vunpack.c.l.b16 %v1704
    %v1713 = vpack.c.b16 %v1710, %v1709
    %v1714 = vpack.c.b16 %v1712, %v1711
    %vm1717 = vcmask 261120
    %v1719 = vsel %vm1717, %v1700, 0
    %1721 = vmatprep.subr.bf16.mxu0 0
    %1722 = vmatpush1.bf16.msra.mxu0 0
    %1723 = vmatprep.subr.bf16.mxu0 0
    %1724 = vmatpush1.bf16.msra.mxu0 0
    %1725 = vmatprep.subr.bf16.mxu0 0
    %1726 = vmatpush1.bf16.msra.mxu0 0
    %1727 = vmatprep.subr.bf16.mxu0 0
    %1728 = vmatpush1.bf16.msra.mxu0 0
    %1729 = vmatprep.subr.bf16.mxu0 0
    %1730 = vmatpush1.bf16.msra.mxu0 0
    %1731 = vmatprep.subr.bf16.mxu0 0
    %1732 = vmatpush1.bf16.msra.mxu0 0
    %1733 = vmatprep.subr.bf16.mxu0 0
    %1734 = vmatpush1.bf16.msra.mxu0 %v1714
    %1735 = vmatprep.subr.bf16.mxu0 0
    %1736 = vmatpush1.bf16.msra.mxu0 %v1713
    %1737 = vmatprep.subr.bf16.mxu0 0
    %1738 = vmatpush2.bf16.msra.mxu0 0
    %1739 = vmatprep.subr.bf16.mxu0 0
    %1740 = vmatpush2.bf16.msra.mxu0 0
    %1741 = vmatprep.subr.bf16.mxu0 0
    %1742 = vmatpush2.bf16.msra.mxu0 0
    %1743 = vmatprep.subr.bf16.mxu0 0
    %1744 = vmatpush2.bf16.msra.mxu0 0
    %1745 = vmatprep.subr.bf16.mxu0 0
    %1746 = vmatpush2.bf16.msra.mxu0 0
    %1747 = vmatprep.subr.bf16.mxu0 0
    %1748 = vmatpush2.bf16.msra.mxu0 0
    %1749 = vmatprep.subr.bf16.mxu0 0
    %1750 = vmatpush2.bf16.msra.mxu0 0
    %1751 = vmatprep.subr.bf16.mxu0 0
    %1752 = vmatpush2.bf16.msra.mxu0 0
    %1753 = vmatprep.mubr.bf16.mxu0 0
    %1754 = vmatmul.mubr.bf16.gmra.mxu0 %v1719
    %v1755 = vpop.f32.mrf.mxu0
    %v1756 = vadd.f32 0.0, %v1755
    %v1757 = vpop.f32.mrf.mxu0
    %v1758 = vpop.f32.mrf.mxu0
    %v1759 = vpop.f32.mrf.mxu0
    %1760 = vdwg.mxu0
    %v1761 = vadd.f32 %v1606, %v1756
    %v1762 = vld [vmem:[#allocation27] sm:$0x1]
    %v1764 = vlaneseq
    %v1765 = vshrl.u32 %v1764, 7
    %v1766 = vsub.s32 0, %v1765
    %v1767 = vrot.slane %v1762, %v1766
    %v1769 = vadd.f32 %v1761, %v1767
    %v1770 = vld [vmem:[%s25] sm:$0x3]
    %v1772 = vsel %vm767, %v1770, 0
    %v1775 = vsel %vm783, %v1769, 0
    %1777 = vmatprep.subr.mxu0 0.0
    %1778 = vmatpush1.msra.mxu0 0.0
    %1779 = vmatprep.subr.mxu0 0.0
    %1780 = vmatpush1.msra.mxu0 0.0
    %1781 = vmatprep.subr.mxu0 0.0
    %1782 = vmatpush1.msra.mxu0 0.0
    %1783 = vmatprep.subr.mxu0 0.0
    %1784 = vmatpush1.msra.mxu0 0.0
    %1785 = vmatprep.subr.mxu0 0.0
    %1786 = vmatpush1.msra.mxu0 0.0
    %1787 = vmatprep.subr.mxu0 0.0
    %1788 = vmatpush1.msra.mxu0 0.0
    %1789 = vmatprep.subr.mxu0 0.0
    %1790 = vmatpush1.msra.mxu0 0.0
    %1791 = vmatprep.subr.mxu0 0.0
    %1792 = vmatpush1.msra.mxu0 0.0
    %1793 = vmatprep.subr.mxu0 0.0
    %1794 = vmatpush1.msra.mxu0 0.0
    %1795 = vmatprep.subr.mxu0 0.0
    %1796 = vmatpush1.msra.mxu0 0.0
    %1797 = vmatprep.subr.mxu0 0.0
    %1798 = vmatpush1.msra.mxu0 0.0
    %1799 = vmatprep.subr.mxu0 0.0
    %1800 = vmatpush1.msra.mxu0 0.0
    %1801 = vmatprep.subr.mxu0 0.0
    %1802 = vmatpush1.msra.mxu0 0.0
    %1803 = vmatprep.subr.mxu0 0.0
    %1804 = vmatpush1.msra.mxu0 0.0
    %1805 = vmatprep.subr.mxu0 0.0
    %1806 = vmatpush1.msra.mxu0 0.0
    %1807 = vmatprep.subr.mxu0 0.0
    %1808 = vmatpush1.msra.mxu0 %v1775
    %1809 = vmatprep.subr.mxu0 0.0
    %1810 = vmatpush2.msra.mxu0 0.0
    %1811 = vmatprep.subr.mxu0 0.0
    %1812 = vmatpush2.msra.mxu0 0.0
    %1813 = vmatprep.subr.mxu0 0.0
    %1814 = vmatpush2.msra.mxu0 0.0
    %1815 = vmatprep.subr.mxu0 0.0
    %1816 = vmatpush2.msra.mxu0 0.0
    %1817 = vmatprep.subr.mxu0 0.0
    %1818 = vmatpush2.msra.mxu0 0.0
    %1819 = vmatprep.subr.mxu0 0.0
    %1820 = vmatpush2.msra.mxu0 0.0
    %1821 = vmatprep.subr.mxu0 0.0
    %1822 = vmatpush2.msra.mxu0 0.0
    %1823 = vmatprep.subr.mxu0 0.0
    %1824 = vmatpush2.msra.mxu0 0.0
    %1825 = vmatprep.subr.mxu0 0.0
    %1826 = vmatpush2.msra.mxu0 0.0
    %1827 = vmatprep.subr.mxu0 0.0
    %1828 = vmatpush2.msra.mxu0 0.0
    %1829 = vmatprep.subr.mxu0 0.0
    %1830 = vmatpush2.msra.mxu0 0.0
    %1831 = vmatprep.subr.mxu0 0.0
    %1832 = vmatpush2.msra.mxu0 0.0
    %1833 = vmatprep.subr.mxu0 0.0
    %1834 = vmatpush2.msra.mxu0 0.0
    %1835 = vmatprep.subr.mxu0 0.0
    %1836 = vmatpush2.msra.mxu0 0.0
    %1837 = vmatprep.subr.mxu0 0.0
    %1838 = vmatpush2.msra.mxu0 0.0
    %1839 = vmatprep.subr.mxu0 0.0
    %1840 = vmatpush2.msra.mxu0 0.0
    %1841 = vmatprep.mubr.f32.mxu0 0.0
    %1842 = vmatmul.mubr.f32.gmra.mxu0 %v1772
    %v1843 = vpop.f32.mrf.mxu0
    %v1844 = vadd.f32 0.0, %v1843
    %v1845 = vpop.f32.mrf.mxu0
    %1846 = vdwg.mxu0
    %v1847 = vld [vmem:[%s57] sm:$0x1]
    %v1848 = vld [vmem:[%s59] sm:$0x1]
    %v1849 = vsel %vm738, %v1844, 0.0
    %1850 = vadd.xlane.f32.xlu0 %v1849
    %v1851 = vpop.xlane.xlu0 %1850
    %v1852 = vmul.f32 %v1851, %v742
    %v1853 = vsub.f32 %v1844, %v1852
    %v1854 = vmul.f32 %v1853, %v1853
    %v1855 = vsel %vm738, %v1854, 0.0
    %1856 = vadd.xlane.f32.xlu0 %v1855
    %v1857 = vpop.xlane.xlu0 %1856
    %v1858 = vmul.f32 %v1857, %v742
    %v1859 = vadd.f32 %v1858, 1e-05
    %v1860 = vrsqrt.pop %v1859
    %v1861 = vmul.f32 %v1853, %v1860
    %v1863 = vlaneseq
    %v1864 = vshrl.u32 %v1863, 7
    %v1865 = vsub.s32 0, %v1864
    %v1866 = vrot.slane %v1847, %v1865
    %v1868 = vmul.f32 %v1861, %v1866
    %v1870 = vlaneseq
    %v1871 = vshrl.u32 %v1870, 7
    %v1872 = vsub.s32 0, %v1871
    %v1873 = vrot.slane %v1848, %v1872
    %v1875 = vadd.f32 %v1868, %v1873
    %v1876 = vld [vmem:[#allocation28] sm:$0xff]
    %v1877 = vld [vmem:[#allocation28 + $0x8] sm:$0xff]
    %v1878 = vld [vmem:[#allocation30] sm:$0x1]
    %v1880 = vlaneseq
    %v1881 = vshrl.u32 %v1880, 7
    %v1882 = vsub.s32 0, %v1881
    %v1883 = vrot.slane %v1878, %v1882
    %v1886 = vsel %vm889, %v1875, 0
    %1888 = vmatprep.subr.mxu0 0.0
    %1889 = vmatpush1.msra.mxu0 0.0
    %1890 = vmatprep.subr.mxu0 0.0
    %1891 = vmatpush1.msra.mxu0 0.0
    %1892 = vmatprep.subr.mxu0 0.0
    %1893 = vmatpush1.msra.mxu0 0.0
    %1894 = vmatprep.subr.mxu0 0.0
    %1895 = vmatpush1.msra.mxu0 0.0
    %1896 = vmatprep.subr.mxu0 0.0
    %1897 = vmatpush1.msra.mxu0 0.0
    %1898 = vmatprep.subr.mxu0 0.0
    %1899 = vmatpush1.msra.mxu0 0.0
    %1900 = vmatprep.subr.mxu0 0.0
    %1901 = vmatpush1.msra.mxu0 0.0
    %1902 = vmatprep.subr.mxu0 0.0
    %1903 = vmatpush1.msra.mxu0 0.0
    %1904 = vmatprep.subr.mxu0 0.0
    %1905 = vmatpush1.msra.mxu0 0.0
    %1906 = vmatprep.subr.mxu0 0.0
    %1907 = vmatpush1.msra.mxu0 0.0
    %1908 = vmatprep.subr.mxu0 0.0
    %1909 = vmatpush1.msra.mxu0 0.0
    %1910 = vmatprep.subr.mxu0 0.0
    %1911 = vmatpush1.msra.mxu0 0.0
    %1912 = vmatprep.subr.mxu0 0.0
    %1913 = vmatpush1.msra.mxu0 0.0
    %1914 = vmatprep.subr.mxu0 0.0
    %1915 = vmatpush1.msra.mxu0 0.0
    %1916 = vmatprep.subr.mxu0 0.0
    %1917 = vmatpush1.msra.mxu0 %v1877
    %1918 = vmatprep.subr.mxu0 0.0
    %1919 = vmatpush1.msra.mxu0 %v1876
    %1920 = vmatprep.subr.mxu0 0.0
    %1921 = vmatpush2.msra.mxu0 0.0
    %1922 = vmatprep.subr.mxu0 0.0
    %1923 = vmatpush2.msra.mxu0 0.0
    %1924 = vmatprep.subr.mxu0 0.0
    %1925 = vmatpush2.msra.mxu0 0.0
    %1926 = vmatprep.subr.mxu0 0.0
    %1927 = vmatpush2.msra.mxu0 0.0
    %1928 = vmatprep.subr.mxu0 0.0
    %1929 = vmatpush2.msra.mxu0 0.0
    %1930 = vmatprep.subr.mxu0 0.0
    %1931 = vmatpush2.msra.mxu0 0.0
    %1932 = vmatprep.subr.mxu0 0.0
    %1933 = vmatpush2.msra.mxu0 0.0
    %1934 = vmatprep.subr.mxu0 0.0
    %1935 = vmatpush2.msra.mxu0 0.0
    %1936 = vmatprep.subr.mxu0 0.0
    %1937 = vmatpush2.msra.mxu0 0.0
    %1938 = vmatprep.subr.mxu0 0.0
    %1939 = vmatpush2.msra.mxu0 0.0
    %1940 = vmatprep.subr.mxu0 0.0
    %1941 = vmatpush2.msra.mxu0 0.0
    %1942 = vmatprep.subr.mxu0 0.0
    %1943 = vmatpush2.msra.mxu0 0.0
    %1944 = vmatprep.subr.mxu0 0.0
    %1945 = vmatpush2.msra.mxu0 0.0
    %1946 = vmatprep.subr.mxu0 0.0
    %1947 = vmatpush2.msra.mxu0 0.0
    %1948 = vmatprep.subr.mxu0 0.0
    %1949 = vmatpush2.msra.mxu0 0.0
    %1950 = vmatprep.subr.mxu0 0.0
    %1951 = vmatpush2.msra.mxu0 0.0
    %1952 = vmatprep.mubr.f32.mxu0 0.0
    %1953 = vmatmul.mubr.f32.gmra.mxu0 %v1886
    %v1954 = vpop.f32.mrf.mxu0
    %v1955 = vadd.f32 %v1883, %v1954
    %v1956 = vpop.f32.mrf.mxu0
    %1957 = vdwg.mxu0
    %v1958 = vsub.f32 0.0, %v1955
    %v1959 = vmul.f32 %v1958, 1.442695
    %v1960 = vpow.pop %v1959
    %v1961 = vadd.f32 %v1960, 1.0
    %v1962 = vrcp.pop %v1961
    %v1963 = vmul.f32 1.0, %v1962
    %v1964 = vsub.f32 %v1963, 0.5
    %v1965 = vld [vmem:[%s65] sm:$0x1]
    %v1967 = vlaneseq
    %v1968 = vshrl.u32 %v1967, 7
    %v1969 = vsub.s32 0, %v1968
    %v1970 = vrot.slane %v1965, %v1969
    %v1972 = vmul.f32 %v1964, %v1970
    %v1973 = vld [vmem:[%s67] sm:$0x1]
    %v1975 = vlaneseq
    %v1976 = vshrl.u32 %v1975, 7
    %v1977 = vsub.s32 0, %v1976
    %v1978 = vrot.slane %v1973, %v1977
    %v1980 = vadd.f32 %v1972, %v1978
    %vm1981 = vcmask 189440
    %1982 = vst.msk [vmem:[%s69] sm:$0x3] %vm1981, %v1980
    // Predicated region
    $region214: #{affine_net_forward.2} parent=1 // pred_check
      _
    $region215: #{affine_net_forward.2} parent=1 // pred_check_branch
      %1984 = sbr.rel (0) target = $region217
    $region216: #{affine_net_forward.2} parent=1 // pred_region
      _
    $region217: #{affine_net_forward.2} parent=1 // pred_fallthru
      _
    // Predicated region
    $region218: #{affine_net_forward.2} parent=1 // pred_check
      _
    $region219: #{affine_net_forward.2} parent=1 // pred_check_branch
      %1986 = sbr.rel (0) target = $region221
    $region220: #{affine_net_forward.2} parent=1 // pred_region
      _
    $region221: #{affine_net_forward.2} parent=1 // pred_fallthru
      _
    %1987 = vsyncpa [#allocation3], 1
    %1988 = vsyncpa [#allocation5], 1
    %1989 = vsyncpa [#allocation8], 1
    %1990 = vsyncpa [#allocation11], 1
    %1991 = vsyncpa [#allocation14], 1
    %1992 = vsyncpa [#allocation17], 1
    %1993 = vsyncpa [#allocation20], 1
    %1994 = vsyncpa [#allocation23], 1
    %1995 = vsyncpa [#allocation26], 1
    %1996 = vsyncpa [#allocation29], 1

</llo_original>
